<compile_context>
chip_gen: v7x
topology: tpu7x:2x2x1
jax: 0.10.0
libtpu: 0.0.40
codegen_flags: <defaults>
</compile_context>

<pallas_src>
import functools

import jax
import jax.numpy as jnp
from jax import lax
from jax.experimental import pallas as pl
from jax.experimental.pallas import tpu as pltpu


def _make_kernel(num_layers):
    """Build a kernel closure for a fixed number of hidden layers."""

    def kernel(*refs):
        # refs = [p_emb, h_emb, W0p, W0h, b0, (W_i, b_i) * (num_layers-1),
        #         W_pred, b_pred, out]
        idx = 0
        p_ref = refs[idx]; idx += 1
        h_ref = refs[idx]; idx += 1
        w0p_ref = refs[idx]; idx += 1
        w0h_ref = refs[idx]; idx += 1
        b0_ref = refs[idx]; idx += 1
        hidden_refs = refs[idx: idx + 2 * (num_layers - 1)]
        idx += 2 * (num_layers - 1)
        wp_ref = refs[idx]; idx += 1
        bp_ref = refs[idx]; idx += 1
        out_ref = refs[idx]

        # 2. max-pool premise / hypothesis over the sequence axis (sublane reduce).
        #    Inputs arrive in bf16 (half HBM traffic); pooled values are already the
        #    MXU operand dtype, so no per-dot cast is needed for the first layer.
        p = jnp.max(p_ref[...], axis=1)          # (B_blk, E) bf16
        h = jnp.max(h_ref[...], axis=1)          # (B_blk, E) bf16

        # 3/5. first feedforward layer on the *split* weight: equivalent to
        #      concat([p, h], axis=1) @ W0 + b0, with no lane-axis concat.
        x = (jnp.dot(p, w0p_ref[...], preferred_element_type=jnp.float32)
             + jnp.dot(h, w0h_ref[...], preferred_element_type=jnp.float32)
             + b0_ref[...])
        x = jnp.maximum(x, 0.0)                  # (B_blk, H_pad) f32

        # 4. remaining hidden layers + ReLU (bf16 MXU operands, f32 accumulation,
        #    elementwise math kept in f32 so it is safe on v5e as well).
        for i in range(num_layers - 1):
            w = hidden_refs[2 * i][...]           # (H_pad, H_pad) bf16
            b = hidden_refs[2 * i + 1][...]       # (1, H_pad) f32
            x = jnp.dot(x.astype(jnp.bfloat16), w,
                        preferred_element_type=jnp.float32) + b
            x = jnp.maximum(x, 0.0)

        # 6. prediction head: contract wp (1, H_pad) with x (B_blk, H_pad) over H
        #    -> lane-dense (1, B_blk) logits (no transpose, no 128x broadcast).
        logit = lax.dot_general(
            wp_ref[...], x.astype(jnp.bfloat16),
            dimension_numbers=(((1,), (1,)), ((), ())),
            preferred_element_type=jnp.float32) + bp_ref[...]      # (1, B_blk)
        prob = pl.reciprocal(1.0 + jnp.exp(-logit), approx=True)    # EUP sigmoid
        out_ref[...] = prob                                         # unmasked lane-dense vst

    return kernel


def _resident_spec(arr):
    zeros = (0,) * arr.ndim
    return pl.BlockSpec(arr.shape, lambda g, _z=zeros: _z)


def _pad_last(a, n):
    return a if a.shape[-1] == n else jnp.pad(a, [(0, 0)] * (a.ndim - 1) + [(0, n - a.shape[-1])])


def _pad_rows(a, n):
    return a if a.shape[0] == n else jnp.pad(a, [(0, n - a.shape[0])] + [(0, 0)] * (a.ndim - 1))


@functools.partial(jax.jit, static_argnames=("num_layers", "batch_block"))
def deep_network_forward(premise, hypothesis, params, *, num_layers, batch_block=128):
    """premise, hypothesis: int32 token indices of shape (B, L_p), (B, L_h)."""
    assert batch_block % 128 == 0, "batch_block must be a multiple of 128 (lane-dense output)"

    emb_table = params["embedding"]               # (V, E) f32
    E = emb_table.shape[1]
    B = premise.shape[0]
    L_p = premise.shape[1]
    L_h = hypothesis.shape[1]

    # Pad batch to a multiple of the batch block (pad rows are sliced off below).
    B_pad = -(-B // batch_block) * batch_block
    pad = B_pad - B
    if pad:
        premise = jnp.pad(premise, ((0, pad), (0, 0)))
        hypothesis = jnp.pad(hypothesis, ((0, pad), (0, 0)))

    # 1. embedding lookup (gather) — plain JAX glue; bf16 output halves the
    #    dominant HBM traffic into the kernel (convert fuses into the gather).
    p_emb = jnp.take(emb_table, premise, axis=0).astype(jnp.bfloat16)     # (B_pad, L_p, E)
    h_emb = jnp.take(emb_table, hypothesis, axis=0).astype(jnp.bfloat16)  # (B_pad, L_h, E)

    # Weight preparation: split first-layer weight, zero-pad H to a lane multiple,
    # bf16 MXU operands, f32 biases.  Zero padding is exact (ReLU(0) = 0 chains).
    H = params["ff_b"][0].shape[1]
    H_pad = -(-H // 128) * 128

    w0 = params["ff_w"][0]                                          # (2E, H)
    w0p = _pad_last(w0[:E], H_pad).astype(jnp.bfloat16)             # (E, H_pad)
    w0h = _pad_last(w0[E:], H_pad).astype(jnp.bfloat16)             # (E, H_pad)
    b0 = _pad_last(params["ff_b"][0], H_pad)                        # (1, H_pad) f32

    hidden = []
    for i in range(1, num_layers):
        w = _pad_rows(_pad_last(params["ff_w"][i], H_pad), H_pad)   # (H_pad, H_pad)
        hidden.append(w.astype(jnp.bfloat16))
        hidden.append(_pad_last(params["ff_b"][i], H_pad))          # (1, H_pad) f32

    wp = _pad_last(params["pred_w"].reshape(1, H), H_pad).astype(jnp.bfloat16)  # (1, H_pad)
    bp = params["pred_b"]                                           # (1, 1) f32

    weight_args = [w0p, w0h, b0] + hidden + [wp, bp]
    G = B_pad // batch_block

    # Explicit VMEM budget: 2 double-buffered input blocks + resident weights
    # + activation headroom; clamp to [32 MiB, 64 MiB] so it is legal on v5e..v7x.
    blk_in_bytes = batch_block * (L_p + L_h) * E * 2                # bf16 inputs
    weight_bytes = sum(int(a.size) * a.dtype.itemsize for a in weight_args)
    act_bytes = 8 * batch_block * max(H_pad, E) * 4
    needed = 2 * (blk_in_bytes + weight_bytes + batch_block * 4) + act_bytes
    vmem_limit = int(min(max(2 * needed, 32 * 2**20), 64 * 2**20))

    flops = 2 * B_pad * (2 * E * H_pad + (num_layers - 1) * H_pad * H_pad + H_pad)
    bytes_accessed = int(p_emb.size * 2 + h_emb.size * 2 + weight_bytes + B_pad * 4)
    cost = pl.CostEstimate(flops=flops, transcendentals=B_pad,
                           bytes_accessed=bytes_accessed)

    in_specs = [
        pl.BlockSpec((batch_block, L_p, E), lambda g: (g, 0, 0)),
        pl.BlockSpec((batch_block, L_h, E), lambda g: (g, 0, 0)),
    ] + [_resident_spec(a) for a in weight_args]

    out = pl.pallas_call(
        _make_kernel(num_layers),
        out_shape=jax.ShapeDtypeStruct((1, B_pad), jnp.float32),
        grid=(G,),
        in_specs=in_specs,
        out_specs=pl.BlockSpec((1, batch_block), lambda g: (0, g)),
        compiler_params=pltpu.CompilerParams(
            dimension_semantics=("parallel",),
            vmem_limit_bytes=vmem_limit),
        cost_estimate=cost,
    )(p_emb, h_emb, *weight_args)

    # matches torch.reshape(output, (output.shape[0],))
    return out[0, :B]


def init_params(key, vocab_size, embed_dim, hidden_size, num_layers):
    """Deterministic synthetic parameter init (no checkpoint loading)."""
    keys = jax.random.split(key, 2 * num_layers + 3)
    params = {}
    params["embedding"] = (
        jax.random.normal(keys[0], (vocab_size, embed_dim), jnp.float32) * 0.1
    )
    ff_w, ff_b = [], []
    in_dim = 2 * embed_dim
    for i in range(num_layers):
        w = jax.random.normal(keys[1 + 2 * i], (in_dim, hidden_size), jnp.float32) * 0.1
        b = jax.random.normal(keys[2 + 2 * i], (1, hidden_size), jnp.float32) * 0.1
        ff_w.append(w)
        ff_b.append(b)
        in_dim = hidden_size
    params["ff_w"] = ff_w
    params["ff_b"] = ff_b
    params["pred_w"] = (
        jax.random.normal(keys[2 * num_layers + 1], (hidden_size, 1), jnp.float32) * 0.1
    )
    params["pred_b"] = (
        jax.random.normal(keys[2 * num_layers + 2], (1, 1), jnp.float32) * 0.1
    )
    return params


def reference_forward(premise, hypothesis, params, num_layers):
    """Pure-JAX reference matching the PyTorch module semantics."""
    emb = params["embedding"]
    p = jnp.max(jnp.take(emb, premise, axis=0), axis=1)
    h = jnp.max(jnp.take(emb, hypothesis, axis=0), axis=1)
    x = jnp.concatenate([p, h], axis=1)
    for i in range(num_layers):
        x = jnp.maximum(x @ params["ff_w"][i] + params["ff_b"][i], 0.0)
    logits = x @ params["pred_w"] + params["pred_b"]
    return jax.nn.sigmoid(logits).reshape(-1)


if __name__ == "__main__":
    # Small shapes consistent with the module's forward pass.
    B = 2            # batch
    L_P = 8          # premise length
    L_H = 8          # hypothesis length
    E = 32           # embedding dim
    H = 32           # hidden size
    NUM_LAYERS = 2
    VOCAB = 50

    key = jax.random.PRNGKey(0)
    k_params, k_p, k_h = jax.random.split(key, 3)

    params = init_params(k_params, VOCAB, E, H, NUM_LAYERS)
    premise = jax.random.randint(k_p, (B, L_P), 0, VOCAB, dtype=jnp.int32)
    hypothesis = jax.random.randint(k_h, (B, L_H), 0, VOCAB, dtype=jnp.int32)

    out = deep_network_forward(premise, hypothesis, params, num_layers=NUM_LAYERS)
    jax.block_until_ready(out)

    ref = reference_forward(premise, hypothesis, params, NUM_LAYERS)

    assert out.shape == (B,), out.shape
    # bf16 MXU inputs / bf16 pooled embeddings + approx-reciprocal sigmoid ->
    # small deviation vs f32 reference.
    assert bool(jnp.all(jnp.isfinite(out)))
    assert bool(jnp.allclose(out, ref, atol=2e-2, rtol=2e-2)), (out, ref)
    print("KERNEL_OK")
</pallas_src>

<mosaic_0001>
module attributes {stable_mosaic.version = 11 : i64} {
  func.func @kernel(%arg0: i32, %arg1: memref<128x8x32xbf16, #tpu.memory_space<vmem>>, %arg2: memref<128x8x32xbf16, #tpu.memory_space<vmem>>, %arg3: memref<32x128xbf16, #tpu.memory_space<vmem>>, %arg4: memref<32x128xbf16, #tpu.memory_space<vmem>>, %arg5: memref<1x128xf32, #tpu.memory_space<vmem>>, %arg6: memref<128x128xbf16, #tpu.memory_space<vmem>>, %arg7: memref<1x128xf32, #tpu.memory_space<vmem>>, %arg8: memref<1x128xbf16, #tpu.memory_space<vmem>>, %arg9: memref<1x1xf32, #tpu.memory_space<vmem>>, %arg10: memref<1x128xf32, #tpu.memory_space<vmem>>) attributes {dimension_semantics = [#tpu.dimension_semantics<parallel>], iteration_bounds = array<i64: 1>, scalar_prefetch = 0 : i64, scratch_operands = 0 : i64, tpu.core_type = #tpu.core_type<tc>, window_params = [{transform_indices = @transform_0, window_bounds = array<i64: 128, 8, 32>}, {transform_indices = @transform_1, window_bounds = array<i64: 128, 8, 32>}, {pipeline_mode = #tpu.pipeline_mode<synchronous>, transform_indices = @transform_2, window_bounds = array<i64: 32, 128>}, {pipeline_mode = #tpu.pipeline_mode<synchronous>, transform_indices = @transform_3, window_bounds = array<i64: 32, 128>}, {pipeline_mode = #tpu.pipeline_mode<synchronous>, transform_indices = @transform_4, window_bounds = array<i64: 1, 128>}, {pipeline_mode = #tpu.pipeline_mode<synchronous>, transform_indices = @transform_5, window_bounds = array<i64: 128, 128>}, {pipeline_mode = #tpu.pipeline_mode<synchronous>, transform_indices = @transform_6, window_bounds = array<i64: 1, 128>}, {pipeline_mode = #tpu.pipeline_mode<synchronous>, transform_indices = @transform_7, window_bounds = array<i64: 1, 128>}, {pipeline_mode = #tpu.pipeline_mode<synchronous>, transform_indices = @transform_8, window_bounds = array<i64: 1, 1>}, {transform_indices = @transform_9, window_bounds = array<i64: 1, 128>}]} {
    %c0 = arith.constant 0 : index
    %c0_0 = arith.constant 0 : index
    %c0_1 = arith.constant 0 : index
    %0 = vector.load %arg1[%c0, %c0_0, %c0_1] : memref<128x8x32xbf16, #tpu.memory_space<vmem>>, vector<128x8x32xbf16>
    %cst = arith.constant dense<0xFF80> : vector<128x32xbf16>
    %1 = vector.multi_reduction <maximumf>, %0, %cst [1] : vector<128x8x32xbf16> to vector<128x32xbf16>
    %c0_2 = arith.constant 0 : index
    %c0_3 = arith.constant 0 : index
    %c0_4 = arith.constant 0 : index
    %2 = vector.load %arg2[%c0_2, %c0_3, %c0_4] : memref<128x8x32xbf16, #tpu.memory_space<vmem>>, vector<128x8x32xbf16>
    %cst_5 = arith.constant dense<0xFF80> : vector<128x32xbf16>
    %3 = vector.multi_reduction <maximumf>, %2, %cst_5 [1] : vector<128x8x32xbf16> to vector<128x32xbf16>
    %c0_6 = arith.constant 0 : index
    %c0_7 = arith.constant 0 : index
    %4 = vector.load %arg3[%c0_6, %c0_7] : memref<32x128xbf16, #tpu.memory_space<vmem>>, vector<32x128xbf16>
    %cst_8 = arith.constant dense<0.000000e+00> : vector<128x128xf32>
    %5 = tpu.matmul %1, %4, %cst_8 {dimension_numbers = #tpu.dot_dimension_numbers<[1], [0], [0], [1], [0, 0, 1, 1], [], []>} : vector<128x32xbf16>, vector<32x128xbf16>, vector<128x128xf32> -> vector<128x128xf32>
    %c0_9 = arith.constant 0 : index
    %c0_10 = arith.constant 0 : index
    %6 = vector.load %arg4[%c0_9, %c0_10] : memref<32x128xbf16, #tpu.memory_space<vmem>>, vector<32x128xbf16>
    %cst_11 = arith.constant dense<0.000000e+00> : vector<128x128xf32>
    %7 = tpu.matmul %3, %6, %cst_11 {dimension_numbers = #tpu.dot_dimension_numbers<[1], [0], [0], [1], [0, 0, 1, 1], [], []>} : vector<128x32xbf16>, vector<32x128xbf16>, vector<128x128xf32> -> vector<128x128xf32>
    %8 = arith.addf %5, %7 : vector<128x128xf32>
    %c0_12 = arith.constant 0 : index
    %c0_13 = arith.constant 0 : index
    %9 = vector.load %arg5[%c0_12, %c0_13] : memref<1x128xf32, #tpu.memory_space<vmem>>, vector<1x128xf32>
    %10 = vector.broadcast %9 : vector<1x128xf32> to vector<128x128xf32>
    %11 = arith.addf %8, %10 : vector<128x128xf32>
    %cst_14 = arith.constant 0.000000e+00 : f32
    %12 = vector.broadcast %cst_14 : f32 to vector<128x128xf32>
    %13 = arith.maximumf %11, %12 : vector<128x128xf32>
    %c0_15 = arith.constant 0 : index
    %c0_16 = arith.constant 0 : index
    %14 = vector.load %arg6[%c0_15, %c0_16] : memref<128x128xbf16, #tpu.memory_space<vmem>>, vector<128x128xbf16>
    %c0_17 = arith.constant 0 : index
    %c0_18 = arith.constant 0 : index
    %15 = vector.load %arg7[%c0_17, %c0_18] : memref<1x128xf32, #tpu.memory_space<vmem>>, vector<1x128xf32>
    %16 = arith.truncf %13 : vector<128x128xf32> to vector<128x128xbf16>
    %cst_19 = arith.constant dense<0.000000e+00> : vector<128x128xf32>
    %17 = tpu.matmul %16, %14, %cst_19 {dimension_numbers = #tpu.dot_dimension_numbers<[1], [0], [0], [1], [0, 0, 1, 1], [], []>} : vector<128x128xbf16>, vector<128x128xbf16>, vector<128x128xf32> -> vector<128x128xf32>
    %18 = vector.broadcast %15 : vector<1x128xf32> to vector<128x128xf32>
    %19 = arith.addf %17, %18 : vector<128x128xf32>
    %cst_20 = arith.constant 0.000000e+00 : f32
    %20 = vector.broadcast %cst_20 : f32 to vector<128x128xf32>
    %21 = arith.maximumf %19, %20 : vector<128x128xf32>
    %c0_21 = arith.constant 0 : index
    %c0_22 = arith.constant 0 : index
    %22 = vector.load %arg8[%c0_21, %c0_22] : memref<1x128xbf16, #tpu.memory_space<vmem>>, vector<1x128xbf16>
    %23 = arith.truncf %21 : vector<128x128xf32> to vector<128x128xbf16>
    %cst_23 = arith.constant dense<0.000000e+00> : vector<1x128xf32>
    %24 = tpu.matmul %22, %23, %cst_23 {dimension_numbers = #tpu.dot_dimension_numbers<[1], [1], [0], [0], [0, 0, 1, 0], [], []>} : vector<1x128xbf16>, vector<128x128xbf16>, vector<1x128xf32> -> vector<1x128xf32>
    %c0_24 = arith.constant 0 : index
    %c0_25 = arith.constant 0 : index
    %25 = vector.load %arg9[%c0_24, %c0_25] : memref<1x1xf32, #tpu.memory_space<vmem>>, vector<1x1xf32>
    %26 = vector.broadcast %25 : vector<1x1xf32> to vector<1x128xf32>
    %27 = arith.addf %24, %26 : vector<1x128xf32>
    %cst_26 = arith.constant 0.000000e+00 : f32
    %28 = vector.broadcast %cst_26 : f32 to vector<1x128xf32>
    %29 = arith.subf %28, %27 : vector<1x128xf32>
    %30 = math.exp %29 : vector<1x128xf32>
    %cst_27 = arith.constant 1.000000e+00 : f32
    %31 = vector.broadcast %cst_27 : f32 to vector<1x128xf32>
    %32 = arith.addf %31, %30 : vector<1x128xf32>
    %33 = tpu.reciprocal %32 {approx = true} : vector<1x128xf32> -> vector<1x128xf32>
    %c0_28 = arith.constant 0 : index
    %c0_29 = arith.constant 0 : index
    %34 = vector.load %arg10[%c0_28, %c0_29] : memref<1x128xf32, #tpu.memory_space<vmem>>, vector<1x128xf32>
    tpu.vector_store %arg10[%c0_28, %c0_29], %33 {strides = array<i32>} : memref<1x128xf32, #tpu.memory_space<vmem>>, vector<1x128xf32>,
    return
  }
  func.func @transform_0(%arg0: i32) -> (i32, i32, i32) {
    %c0_i32 = arith.constant 0 : i32
    %c0_i32_0 = arith.constant 0 : i32
    %c0_i32_1 = arith.constant 0 : i32
    return %arg0, %c0_i32, %c0_i32_0 : i32, i32, i32
  }
  func.func @transform_1(%arg0: i32) -> (i32, i32, i32) {
    %c0_i32 = arith.constant 0 : i32
    %c0_i32_0 = arith.constant 0 : i32
    %c0_i32_1 = arith.constant 0 : i32
    return %arg0, %c0_i32, %c0_i32_0 : i32, i32, i32
  }
  func.func @transform_2(%arg0: i32) -> (i32, i32) {
    %c0_i32 = arith.constant 0 : i32
    %c0_i32_0 = arith.constant 0 : i32
    %c0_i32_1 = arith.constant 0 : i32
    return %c0_i32, %c0_i32_0 : i32, i32
  }
  func.func @transform_3(%arg0: i32) -> (i32, i32) {
    %c0_i32 = arith.constant 0 : i32
    %c0_i32_0 = arith.constant 0 : i32
    %c0_i32_1 = arith.constant 0 : i32
    return %c0_i32, %c0_i32_0 : i32, i32
  }
  func.func @transform_4(%arg0: i32) -> (i32, i32) {
    %c0_i32 = arith.constant 0 : i32
    %c0_i32_0 = arith.constant 0 : i32
    %c0_i32_1 = arith.constant 0 : i32
    return %c0_i32, %c0_i32_0 : i32, i32
  }
  func.func @transform_5(%arg0: i32) -> (i32, i32) {
    %c0_i32 = arith.constant 0 : i32
    %c0_i32_0 = arith.constant 0 : i32
    %c0_i32_1 = arith.constant 0 : i32
    return %c0_i32, %c0_i32_0 : i32, i32
  }
  func.func @transform_6(%arg0: i32) -> (i32, i32) {
    %c0_i32 = arith.constant 0 : i32
    %c0_i32_0 = arith.constant 0 : i32
    %c0_i32_1 = arith.constant 0 : i32
    return %c0_i32, %c0_i32_0 : i32, i32
  }
  func.func @transform_7(%arg0: i32) -> (i32, i32) {
    %c0_i32 = arith.constant 0 : i32
    %c0_i32_0 = arith.constant 0 : i32
    %c0_i32_1 = arith.constant 0 : i32
    return %c0_i32, %c0_i32_0 : i32, i32
  }
  func.func @transform_8(%arg0: i32) -> (i32, i32) {
    %c0_i32 = arith.constant 0 : i32
    %c0_i32_0 = arith.constant 0 : i32
    %c0_i32_1 = arith.constant 0 : i32
    return %c0_i32, %c0_i32_0 : i32, i32
  }
  func.func @transform_9(%arg0: i32) -> (i32, i32) {
    %c0_i32 = arith.constant 0 : i32
    %c0_i32_0 = arith.constant 0 : i32
    return %c0_i32, %arg0 : i32, i32
  }
}

</mosaic_0001>

<llo_original>
// kernel: deep_network_forward.1
$region0: #{deep_network_forward.1}
  #allocation0 [shape = 'u32[]', space=smem, size = 0x4, offset = 0x4, fixed_abs, tag = 'smem constant byte address 0x4 - core index']
  #allocation1 [shape = 'u32[144,128]{1,0:T(1,128)}', space=vmem, size = 0x12000, scoped, tag = 'internal scratch']
  #allocation2 [shape = 'f32[1,1]{1,0:T(1,128)S(1)}', space=vmem, size = 0x200, scoped, tag = 'scoped memory for deep_network_forward.1']
  %s0 = inlined_call_operand.vmem [shape: bf16[128,8,32], index: 0, kind: input, shape index: {}]
  %s1 = inlined_call_operand.vmem [shape: bf16[128,8,32], index: 1, kind: input, shape index: {}]
  %s2 = inlined_call_operand.vmem [shape: bf16[32,128], index: 2, kind: input, shape index: {}]
  %s3 = inlined_call_operand.vmem [shape: bf16[32,128], index: 3, kind: input, shape index: {}]
  %s4 = inlined_call_operand.vmem [shape: f32[1,128], index: 4, kind: input, shape index: {}]
  %s5 = inlined_call_operand.vmem [shape: bf16[128,128], index: 5, kind: input, shape index: {}]
  %s6 = inlined_call_operand.vmem [shape: f32[1,128], index: 6, kind: input, shape index: {}]
  %s7 = inlined_call_operand.vmem [shape: bf16[1,128], index: 7, kind: input, shape index: {}]
  %s8 = inlined_call_operand.<no memory space> [shape: f32[1,1], index: 8, kind: input, shape index: {}]
  %s9 = inlined_call_operand.vmem [shape: f32[1,128], index: 9, kind: output, shape index: {}]
  %s10 = sld [smem:[#allocation0]]
  $region46: #{deep_network_forward.1} parent=0
    _
  %s12 = ssub.s32 1, %s10
  %s13 = scalar_select 0, %s12, %s10
  %v14 = vstv %s8
  %15 = vst [vmem:[#allocation2] sm:$0x1] %v14
  // Predicated region
  $region2: #{deep_network_forward.1} parent=0 // pred_check
    _
  $region3: #{deep_network_forward.1} parent=0 // pred_check_branch
    %17 = sbr.rel (0) target = $region5
  $region4: #{deep_network_forward.1} parent=0 // pred_region
    _
  $region5: #{deep_network_forward.1} parent=0 // pred_fallthru
    _
  // Predicated region
  $region6: #{deep_network_forward.1} parent=0 // pred_check
    _
  $region7: #{deep_network_forward.1} parent=0 // pred_check_branch
    %19 = sbr.rel (0) target = $region9
  $region8: #{deep_network_forward.1} parent=0 // pred_region
    _
  $region9: #{deep_network_forward.1} parent=0 // pred_fallthru
    _
  // Predicated region
  $region10: #{deep_network_forward.1} parent=0 // pred_check
    _
  $region11: #{deep_network_forward.1} parent=0 // pred_check_branch
    %21 = sbr.rel (0) target = $region13
  $region12: #{deep_network_forward.1} parent=0 // pred_region
    _
  $region13: #{deep_network_forward.1} parent=0 // pred_fallthru
    _
  // Predicated region
  $region14: #{deep_network_forward.1} parent=0 // pred_check
    _
  $region15: #{deep_network_forward.1} parent=0 // pred_check_branch
    %23 = sbr.rel (0) target = $region17
  $region16: #{deep_network_forward.1} parent=0 // pred_region
    _
  $region17: #{deep_network_forward.1} parent=0 // pred_fallthru
    _
  // Predicated region
  $region18: #{deep_network_forward.1} parent=0 // pred_check
    _
  $region19: #{deep_network_forward.1} parent=0 // pred_check_branch
    %25 = sbr.rel (0) target = $region21
  $region20: #{deep_network_forward.1} parent=0 // pred_region
    _
  $region21: #{deep_network_forward.1} parent=0 // pred_fallthru
    _
  // Predicated region
  $region22: #{deep_network_forward.1} parent=0 // pred_check
    _
  $region23: #{deep_network_forward.1} parent=0 // pred_check_branch
    %27 = sbr.rel (0) target = $region25
  $region24: #{deep_network_forward.1} parent=0 // pred_region
    _
  $region25: #{deep_network_forward.1} parent=0 // pred_fallthru
    _
  // Predicated region
  $region26: #{deep_network_forward.1} parent=0 // pred_check
    _
  $region27: #{deep_network_forward.1} parent=0 // pred_check_branch
    %29 = sbr.rel (0) target = $region29
  $region28: #{deep_network_forward.1} parent=0 // pred_region
    _
  $region29: #{deep_network_forward.1} parent=0 // pred_fallthru
    _
  // Predicated region
  $region30: #{deep_network_forward.1} parent=0 // pred_check
    _
  $region31: #{deep_network_forward.1} parent=0 // pred_check_branch
    %31 = sbr.rel (0) target = $region33
  $region32: #{deep_network_forward.1} parent=0 // pred_region
    _
  $region33: #{deep_network_forward.1} parent=0 // pred_fallthru
    _
  // Predicated region
  $region34: #{deep_network_forward.1} parent=0 // pred_check
    _
  $region35: #{deep_network_forward.1} parent=0 // pred_check_branch
    %33 = sbr.rel (0) target = $region37
  $region36: #{deep_network_forward.1} parent=0 // pred_region
    _
  $region37: #{deep_network_forward.1} parent=0 // pred_fallthru
    _
  %v36 = vld [vmem:[%s0] sm:$0xf]
  %v37 = vld [vmem:[%s0 + $0x4] sm:$0xf]
  %v38 = vld [vmem:[%s0 + $0x8] sm:$0xf]
  %v39 = vld [vmem:[%s0 + $0xc] sm:$0xf]
  %v40 = vld [vmem:[%s0 + $0x10] sm:$0xf]
  %v41 = vld [vmem:[%s0 + $0x14] sm:$0xf]
  %v42 = vld [vmem:[%s0 + $0x18] sm:$0xf]
  %v43 = vld [vmem:[%s0 + $0x1c] sm:$0xf]
  %v44 = vld [vmem:[%s0 + $0x20] sm:$0xf]
  %v45 = vld [vmem:[%s0 + $0x24] sm:$0xf]
  %v46 = vld [vmem:[%s0 + $0x28] sm:$0xf]
  %v47 = vld [vmem:[%s0 + $0x2c] sm:$0xf]
  %v48 = vld [vmem:[%s0 + $0x30] sm:$0xf]
  %v49 = vld [vmem:[%s0 + $0x34] sm:$0xf]
  %v50 = vld [vmem:[%s0 + $0x38] sm:$0xf]
  %v51 = vld [vmem:[%s0 + $0x3c] sm:$0xf]
  %v52 = vld [vmem:[%s0 + $0x40] sm:$0xf]
  %v53 = vld [vmem:[%s0 + $0x44] sm:$0xf]
  %v54 = vld [vmem:[%s0 + $0x48] sm:$0xf]
  %v55 = vld [vmem:[%s0 + $0x4c] sm:$0xf]
  %v56 = vld [vmem:[%s0 + $0x50] sm:$0xf]
  %v57 = vld [vmem:[%s0 + $0x54] sm:$0xf]
  %v58 = vld [vmem:[%s0 + $0x58] sm:$0xf]
  %v59 = vld [vmem:[%s0 + $0x5c] sm:$0xf]
  %v60 = vld [vmem:[%s0 + $0x60] sm:$0xf]
  %v61 = vld [vmem:[%s0 + $0x64] sm:$0xf]
  %v62 = vld [vmem:[%s0 + $0x68] sm:$0xf]
  %v63 = vld [vmem:[%s0 + $0x6c] sm:$0xf]
  %v64 = vld [vmem:[%s0 + $0x70] sm:$0xf]
  %v65 = vld [vmem:[%s0 + $0x74] sm:$0xf]
  %v66 = vld [vmem:[%s0 + $0x78] sm:$0xf]
  %v67 = vld [vmem:[%s0 + $0x7c] sm:$0xf]
  %v68 = vld [vmem:[%s0 + $0x80] sm:$0xf]
  %v69 = vld [vmem:[%s0 + $0x84] sm:$0xf]
  %v70 = vld [vmem:[%s0 + $0x88] sm:$0xf]
  %v71 = vld [vmem:[%s0 + $0x8c] sm:$0xf]
  %v72 = vld [vmem:[%s0 + $0x90] sm:$0xf]
  %v73 = vld [vmem:[%s0 + $0x94] sm:$0xf]
  %v74 = vld [vmem:[%s0 + $0x98] sm:$0xf]
  %v75 = vld [vmem:[%s0 + $0x9c] sm:$0xf]
  %v76 = vld [vmem:[%s0 + $0xa0] sm:$0xf]
  %v77 = vld [vmem:[%s0 + $0xa4] sm:$0xf]
  %v78 = vld [vmem:[%s0 + $0xa8] sm:$0xf]
  %v79 = vld [vmem:[%s0 + $0xac] sm:$0xf]
  %v80 = vld [vmem:[%s0 + $0xb0] sm:$0xf]
  %v81 = vld [vmem:[%s0 + $0xb4] sm:$0xf]
  %v82 = vld [vmem:[%s0 + $0xb8] sm:$0xf]
  %v83 = vld [vmem:[%s0 + $0xbc] sm:$0xf]
  %v84 = vld [vmem:[%s0 + $0xc0] sm:$0xf]
  %v85 = vld [vmem:[%s0 + $0xc4] sm:$0xf]
  %v86 = vld [vmem:[%s0 + $0xc8] sm:$0xf]
  %v87 = vld [vmem:[%s0 + $0xcc] sm:$0xf]
  %v88 = vld [vmem:[%s0 + $0xd0] sm:$0xf]
  %v89 = vld [vmem:[%s0 + $0xd4] sm:$0xf]
  %v90 = vld [vmem:[%s0 + $0xd8] sm:$0xf]
  %v91 = vld [vmem:[%s0 + $0xdc] sm:$0xf]
  %v92 = vld [vmem:[%s0 + $0xe0] sm:$0xf]
  %v93 = vld [vmem:[%s0 + $0xe4] sm:$0xf]
  %v94 = vld [vmem:[%s0 + $0xe8] sm:$0xf]
  %v95 = vld [vmem:[%s0 + $0xec] sm:$0xf]
  %v96 = vld [vmem:[%s0 + $0xf0] sm:$0xf]
  %v97 = vld [vmem:[%s0 + $0xf4] sm:$0xf]
  %v98 = vld [vmem:[%s0 + $0xf8] sm:$0xf]
  %v99 = vld [vmem:[%s0 + $0xfc] sm:$0xf]
  %v100 = vld [vmem:[%s0 + $0x100] sm:$0xf]
  %v101 = vld [vmem:[%s0 + $0x104] sm:$0xf]
  %v102 = vld [vmem:[%s0 + $0x108] sm:$0xf]
  %v103 = vld [vmem:[%s0 + $0x10c] sm:$0xf]
  %v104 = vld [vmem:[%s0 + $0x110] sm:$0xf]
  %v105 = vld [vmem:[%s0 + $0x114] sm:$0xf]
  %v106 = vld [vmem:[%s0 + $0x118] sm:$0xf]
  %v107 = vld [vmem:[%s0 + $0x11c] sm:$0xf]
  %v108 = vld [vmem:[%s0 + $0x120] sm:$0xf]
  %v109 = vld [vmem:[%s0 + $0x124] sm:$0xf]
  %v110 = vld [vmem:[%s0 + $0x128] sm:$0xf]
  %v111 = vld [vmem:[%s0 + $0x12c] sm:$0xf]
  %v112 = vld [vmem:[%s0 + $0x130] sm:$0xf]
  %v113 = vld [vmem:[%s0 + $0x134] sm:$0xf]
  %v114 = vld [vmem:[%s0 + $0x138] sm:$0xf]
  %v115 = vld [vmem:[%s0 + $0x13c] sm:$0xf]
  %v116 = vld [vmem:[%s0 + $0x140] sm:$0xf]
  %v117 = vld [vmem:[%s0 + $0x144] sm:$0xf]
  %v118 = vld [vmem:[%s0 + $0x148] sm:$0xf]
  %v119 = vld [vmem:[%s0 + $0x14c] sm:$0xf]
  %v120 = vld [vmem:[%s0 + $0x150] sm:$0xf]
  %v121 = vld [vmem:[%s0 + $0x154] sm:$0xf]
  %v122 = vld [vmem:[%s0 + $0x158] sm:$0xf]
  %v123 = vld [vmem:[%s0 + $0x15c] sm:$0xf]
  %v124 = vld [vmem:[%s0 + $0x160] sm:$0xf]
  %v125 = vld [vmem:[%s0 + $0x164] sm:$0xf]
  %v126 = vld [vmem:[%s0 + $0x168] sm:$0xf]
  %v127 = vld [vmem:[%s0 + $0x16c] sm:$0xf]
  %v128 = vld [vmem:[%s0 + $0x170] sm:$0xf]
  %v129 = vld [vmem:[%s0 + $0x174] sm:$0xf]
  %v130 = vld [vmem:[%s0 + $0x178] sm:$0xf]
  %v131 = vld [vmem:[%s0 + $0x17c] sm:$0xf]
  %v132 = vld [vmem:[%s0 + $0x180] sm:$0xf]
  %v133 = vld [vmem:[%s0 + $0x184] sm:$0xf]
  %v134 = vld [vmem:[%s0 + $0x188] sm:$0xf]
  %v135 = vld [vmem:[%s0 + $0x18c] sm:$0xf]
  %v136 = vld [vmem:[%s0 + $0x190] sm:$0xf]
  %v137 = vld [vmem:[%s0 + $0x194] sm:$0xf]
  %v138 = vld [vmem:[%s0 + $0x198] sm:$0xf]
  %v139 = vld [vmem:[%s0 + $0x19c] sm:$0xf]
  %v140 = vld [vmem:[%s0 + $0x1a0] sm:$0xf]
  %v141 = vld [vmem:[%s0 + $0x1a4] sm:$0xf]
  %v142 = vld [vmem:[%s0 + $0x1a8] sm:$0xf]
  %v143 = vld [vmem:[%s0 + $0x1ac] sm:$0xf]
  %v144 = vld [vmem:[%s0 + $0x1b0] sm:$0xf]
  %v145 = vld [vmem:[%s0 + $0x1b4] sm:$0xf]
  %v146 = vld [vmem:[%s0 + $0x1b8] sm:$0xf]
  %v147 = vld [vmem:[%s0 + $0x1bc] sm:$0xf]
  %v148 = vld [vmem:[%s0 + $0x1c0] sm:$0xf]
  %v149 = vld [vmem:[%s0 + $0x1c4] sm:$0xf]
  %v150 = vld [vmem:[%s0 + $0x1c8] sm:$0xf]
  %v151 = vld [vmem:[%s0 + $0x1cc] sm:$0xf]
  %v152 = vld [vmem:[%s0 + $0x1d0] sm:$0xf]
  %v153 = vld [vmem:[%s0 + $0x1d4] sm:$0xf]
  %v154 = vld [vmem:[%s0 + $0x1d8] sm:$0xf]
  %v155 = vld [vmem:[%s0 + $0x1dc] sm:$0xf]
  %v156 = vld [vmem:[%s0 + $0x1e0] sm:$0xf]
  %v157 = vld [vmem:[%s0 + $0x1e4] sm:$0xf]
  %v158 = vld [vmem:[%s0 + $0x1e8] sm:$0xf]
  %v159 = vld [vmem:[%s0 + $0x1ec] sm:$0xf]
  %v160 = vld [vmem:[%s0 + $0x1f0] sm:$0xf]
  %v161 = vld [vmem:[%s0 + $0x1f4] sm:$0xf]
  %v162 = vld [vmem:[%s0 + $0x1f8] sm:$0xf]
  %v163 = vld [vmem:[%s0 + $0x1fc] sm:$0xf]
  %vm164 = vcmask 257024
  %v167 = vsel %vm164, %v36, 4286644096
  %v169 = vunpack.i.l.bf16 %v167
  %v170 = vunpack.i.h.bf16 %v167
  %v171 = vmax.f32 %v169, %v170
  %v172 = vrot.slane %v171, 4
  %v173 = vmax.f32 %v171, %v172
  %v174 = vrot.slane %v173, 2
  %v175 = vmax.f32 %v173, %v174
  %v176 = vrot.slane %v175, 1
  %v177 = vmax.f32 %v175, %v176
  %v178 = vpack.i.bf16 %v177, %v177
  %v180 = vsel %vm164, %v37, 4286644096
  %v182 = vunpack.i.l.bf16 %v180
  %v183 = vunpack.i.h.bf16 %v180
  %v184 = vmax.f32 %v182, %v183
  %v185 = vrot.slane %v184, 4
  %v186 = vmax.f32 %v184, %v185
  %v187 = vrot.slane %v186, 2
  %v188 = vmax.f32 %v186, %v187
  %v189 = vrot.slane %v188, 1
  %v190 = vmax.f32 %v188, %v189
  %v191 = vpack.i.bf16 %v190, %v190
  %v193 = vsel %vm164, %v38, 4286644096
  %v195 = vunpack.i.l.bf16 %v193
  %v196 = vunpack.i.h.bf16 %v193
  %v197 = vmax.f32 %v195, %v196
  %v198 = vrot.slane %v197, 4
  %v199 = vmax.f32 %v197, %v198
  %v200 = vrot.slane %v199, 2
  %v201 = vmax.f32 %v199, %v200
  %v202 = vrot.slane %v201, 1
  %v203 = vmax.f32 %v201, %v202
  %v204 = vpack.i.bf16 %v203, %v203
  %v206 = vsel %vm164, %v39, 4286644096
  %v208 = vunpack.i.l.bf16 %v206
  %v209 = vunpack.i.h.bf16 %v206
  %v210 = vmax.f32 %v208, %v209
  %v211 = vrot.slane %v210, 4
  %v212 = vmax.f32 %v210, %v211
  %v213 = vrot.slane %v212, 2
  %v214 = vmax.f32 %v212, %v213
  %v215 = vrot.slane %v214, 1
  %v216 = vmax.f32 %v214, %v215
  %v217 = vpack.i.bf16 %v216, %v216
  %v219 = vsel %vm164, %v40, 4286644096
  %v221 = vunpack.i.l.bf16 %v219
  %v222 = vunpack.i.h.bf16 %v219
  %v223 = vmax.f32 %v221, %v222
  %v224 = vrot.slane %v223, 4
  %v225 = vmax.f32 %v223, %v224
  %v226 = vrot.slane %v225, 2
  %v227 = vmax.f32 %v225, %v226
  %v228 = vrot.slane %v227, 1
  %v229 = vmax.f32 %v227, %v228
  %v230 = vpack.i.bf16 %v229, %v229
  %v232 = vsel %vm164, %v41, 4286644096
  %v234 = vunpack.i.l.bf16 %v232
  %v235 = vunpack.i.h.bf16 %v232
  %v236 = vmax.f32 %v234, %v235
  %v237 = vrot.slane %v236, 4
  %v238 = vmax.f32 %v236, %v237
  %v239 = vrot.slane %v238, 2
  %v240 = vmax.f32 %v238, %v239
  %v241 = vrot.slane %v240, 1
  %v242 = vmax.f32 %v240, %v241
  %v243 = vpack.i.bf16 %v242, %v242
  %v245 = vsel %vm164, %v42, 4286644096
  %v247 = vunpack.i.l.bf16 %v245
  %v248 = vunpack.i.h.bf16 %v245
  %v249 = vmax.f32 %v247, %v248
  %v250 = vrot.slane %v249, 4
  %v251 = vmax.f32 %v249, %v250
  %v252 = vrot.slane %v251, 2
  %v253 = vmax.f32 %v251, %v252
  %v254 = vrot.slane %v253, 1
  %v255 = vmax.f32 %v253, %v254
  %v256 = vpack.i.bf16 %v255, %v255
  %v258 = vsel %vm164, %v43, 4286644096
  %v260 = vunpack.i.l.bf16 %v258
  %v261 = vunpack.i.h.bf16 %v258
  %v262 = vmax.f32 %v260, %v261
  %v263 = vrot.slane %v262, 4
  %v264 = vmax.f32 %v262, %v263
  %v265 = vrot.slane %v264, 2
  %v266 = vmax.f32 %v264, %v265
  %v267 = vrot.slane %v266, 1
  %v268 = vmax.f32 %v266, %v267
  %v269 = vpack.i.bf16 %v268, %v268
  %v271 = vsel %vm164, %v44, 4286644096
  %v273 = vunpack.i.l.bf16 %v271
  %v274 = vunpack.i.h.bf16 %v271
  %v275 = vmax.f32 %v273, %v274
  %v276 = vrot.slane %v275, 4
  %v277 = vmax.f32 %v275, %v276
  %v278 = vrot.slane %v277, 2
  %v279 = vmax.f32 %v277, %v278
  %v280 = vrot.slane %v279, 1
  %v281 = vmax.f32 %v279, %v280
  %v282 = vpack.i.bf16 %v281, %v281
  %v284 = vsel %vm164, %v45, 4286644096
  %v286 = vunpack.i.l.bf16 %v284
  %v287 = vunpack.i.h.bf16 %v284
  %v288 = vmax.f32 %v286, %v287
  %v289 = vrot.slane %v288, 4
  %v290 = vmax.f32 %v288, %v289
  %v291 = vrot.slane %v290, 2
  %v292 = vmax.f32 %v290, %v291
  %v293 = vrot.slane %v292, 1
  %v294 = vmax.f32 %v292, %v293
  %v295 = vpack.i.bf16 %v294, %v294
  %v297 = vsel %vm164, %v46, 4286644096
  %v299 = vunpack.i.l.bf16 %v297
  %v300 = vunpack.i.h.bf16 %v297
  %v301 = vmax.f32 %v299, %v300
  %v302 = vrot.slane %v301, 4
  %v303 = vmax.f32 %v301, %v302
  %v304 = vrot.slane %v303, 2
  %v305 = vmax.f32 %v303, %v304
  %v306 = vrot.slane %v305, 1
  %v307 = vmax.f32 %v305, %v306
  %v308 = vpack.i.bf16 %v307, %v307
  %v310 = vsel %vm164, %v47, 4286644096
  %v312 = vunpack.i.l.bf16 %v310
  %v313 = vunpack.i.h.bf16 %v310
  %v314 = vmax.f32 %v312, %v313
  %v315 = vrot.slane %v314, 4
  %v316 = vmax.f32 %v314, %v315
  %v317 = vrot.slane %v316, 2
  %v318 = vmax.f32 %v316, %v317
  %v319 = vrot.slane %v318, 1
  %v320 = vmax.f32 %v318, %v319
  %v321 = vpack.i.bf16 %v320, %v320
  %v323 = vsel %vm164, %v48, 4286644096
  %v325 = vunpack.i.l.bf16 %v323
  %v326 = vunpack.i.h.bf16 %v323
  %v327 = vmax.f32 %v325, %v326
  %v328 = vrot.slane %v327, 4
  %v329 = vmax.f32 %v327, %v328
  %v330 = vrot.slane %v329, 2
  %v331 = vmax.f32 %v329, %v330
  %v332 = vrot.slane %v331, 1
  %v333 = vmax.f32 %v331, %v332
  %v334 = vpack.i.bf16 %v333, %v333
  %v336 = vsel %vm164, %v49, 4286644096
  %v338 = vunpack.i.l.bf16 %v336
  %v339 = vunpack.i.h.bf16 %v336
  %v340 = vmax.f32 %v338, %v339
  %v341 = vrot.slane %v340, 4
  %v342 = vmax.f32 %v340, %v341
  %v343 = vrot.slane %v342, 2
  %v344 = vmax.f32 %v342, %v343
  %v345 = vrot.slane %v344, 1
  %v346 = vmax.f32 %v344, %v345
  %v347 = vpack.i.bf16 %v346, %v346
  %v349 = vsel %vm164, %v50, 4286644096
  %v351 = vunpack.i.l.bf16 %v349
  %v352 = vunpack.i.h.bf16 %v349
  %v353 = vmax.f32 %v351, %v352
  %v354 = vrot.slane %v353, 4
  %v355 = vmax.f32 %v353, %v354
  %v356 = vrot.slane %v355, 2
  %v357 = vmax.f32 %v355, %v356
  %v358 = vrot.slane %v357, 1
  %v359 = vmax.f32 %v357, %v358
  %v360 = vpack.i.bf16 %v359, %v359
  %v362 = vsel %vm164, %v51, 4286644096
  %v364 = vunpack.i.l.bf16 %v362
  %v365 = vunpack.i.h.bf16 %v362
  %v366 = vmax.f32 %v364, %v365
  %v367 = vrot.slane %v366, 4
  %v368 = vmax.f32 %v366, %v367
  %v369 = vrot.slane %v368, 2
  %v370 = vmax.f32 %v368, %v369
  %v371 = vrot.slane %v370, 1
  %v372 = vmax.f32 %v370, %v371
  %v373 = vpack.i.bf16 %v372, %v372
  %v375 = vsel %vm164, %v52, 4286644096
  %v377 = vunpack.i.l.bf16 %v375
  %v378 = vunpack.i.h.bf16 %v375
  %v379 = vmax.f32 %v377, %v378
  %v380 = vrot.slane %v379, 4
  %v381 = vmax.f32 %v379, %v380
  %v382 = vrot.slane %v381, 2
  %v383 = vmax.f32 %v381, %v382
  %v384 = vrot.slane %v383, 1
  %v385 = vmax.f32 %v383, %v384
  %v386 = vpack.i.bf16 %v385, %v385
  %v388 = vsel %vm164, %v53, 4286644096
  %v390 = vunpack.i.l.bf16 %v388
  %v391 = vunpack.i.h.bf16 %v388
  %v392 = vmax.f32 %v390, %v391
  %v393 = vrot.slane %v392, 4
  %v394 = vmax.f32 %v392, %v393
  %v395 = vrot.slane %v394, 2
  %v396 = vmax.f32 %v394, %v395
  %v397 = vrot.slane %v396, 1
  %v398 = vmax.f32 %v396, %v397
  %v399 = vpack.i.bf16 %v398, %v398
  %v401 = vsel %vm164, %v54, 4286644096
  %v403 = vunpack.i.l.bf16 %v401
  %v404 = vunpack.i.h.bf16 %v401
  %v405 = vmax.f32 %v403, %v404
  %v406 = vrot.slane %v405, 4
  %v407 = vmax.f32 %v405, %v406
  %v408 = vrot.slane %v407, 2
  %v409 = vmax.f32 %v407, %v408
  %v410 = vrot.slane %v409, 1
  %v411 = vmax.f32 %v409, %v410
  %v412 = vpack.i.bf16 %v411, %v411
  %v414 = vsel %vm164, %v55, 4286644096
  %v416 = vunpack.i.l.bf16 %v414
  %v417 = vunpack.i.h.bf16 %v414
  %v418 = vmax.f32 %v416, %v417
  %v419 = vrot.slane %v418, 4
  %v420 = vmax.f32 %v418, %v419
  %v421 = vrot.slane %v420, 2
  %v422 = vmax.f32 %v420, %v421
  %v423 = vrot.slane %v422, 1
  %v424 = vmax.f32 %v422, %v423
  %v425 = vpack.i.bf16 %v424, %v424
  %v427 = vsel %vm164, %v56, 4286644096
  %v429 = vunpack.i.l.bf16 %v427
  %v430 = vunpack.i.h.bf16 %v427
  %v431 = vmax.f32 %v429, %v430
  %v432 = vrot.slane %v431, 4
  %v433 = vmax.f32 %v431, %v432
  %v434 = vrot.slane %v433, 2
  %v435 = vmax.f32 %v433, %v434
  %v436 = vrot.slane %v435, 1
  %v437 = vmax.f32 %v435, %v436
  %v438 = vpack.i.bf16 %v437, %v437
  %v440 = vsel %vm164, %v57, 4286644096
  %v442 = vunpack.i.l.bf16 %v440
  %v443 = vunpack.i.h.bf16 %v440
  %v444 = vmax.f32 %v442, %v443
  %v445 = vrot.slane %v444, 4
  %v446 = vmax.f32 %v444, %v445
  %v447 = vrot.slane %v446, 2
  %v448 = vmax.f32 %v446, %v447
  %v449 = vrot.slane %v448, 1
  %v450 = vmax.f32 %v448, %v449
  %v451 = vpack.i.bf16 %v450, %v450
  %v453 = vsel %vm164, %v58, 4286644096
  %v455 = vunpack.i.l.bf16 %v453
  %v456 = vunpack.i.h.bf16 %v453
  %v457 = vmax.f32 %v455, %v456
  %v458 = vrot.slane %v457, 4
  %v459 = vmax.f32 %v457, %v458
  %v460 = vrot.slane %v459, 2
  %v461 = vmax.f32 %v459, %v460
  %v462 = vrot.slane %v461, 1
  %v463 = vmax.f32 %v461, %v462
  %v464 = vpack.i.bf16 %v463, %v463
  %v466 = vsel %vm164, %v59, 4286644096
  %v468 = vunpack.i.l.bf16 %v466
  %v469 = vunpack.i.h.bf16 %v466
  %v470 = vmax.f32 %v468, %v469
  %v471 = vrot.slane %v470, 4
  %v472 = vmax.f32 %v470, %v471
  %v473 = vrot.slane %v472, 2
  %v474 = vmax.f32 %v472, %v473
  %v475 = vrot.slane %v474, 1
  %v476 = vmax.f32 %v474, %v475
  %v477 = vpack.i.bf16 %v476, %v476
  %v479 = vsel %vm164, %v60, 4286644096
  %v481 = vunpack.i.l.bf16 %v479
  %v482 = vunpack.i.h.bf16 %v479
  %v483 = vmax.f32 %v481, %v482
  %v484 = vrot.slane %v483, 4
  %v485 = vmax.f32 %v483, %v484
  %v486 = vrot.slane %v485, 2
  %v487 = vmax.f32 %v485, %v486
  %v488 = vrot.slane %v487, 1
  %v489 = vmax.f32 %v487, %v488
  %v490 = vpack.i.bf16 %v489, %v489
  %v492 = vsel %vm164, %v61, 4286644096
  %v494 = vunpack.i.l.bf16 %v492
  %v495 = vunpack.i.h.bf16 %v492
  %v496 = vmax.f32 %v494, %v495
  %v497 = vrot.slane %v496, 4
  %v498 = vmax.f32 %v496, %v497
  %v499 = vrot.slane %v498, 2
  %v500 = vmax.f32 %v498, %v499
  %v501 = vrot.slane %v500, 1
  %v502 = vmax.f32 %v500, %v501
  %v503 = vpack.i.bf16 %v502, %v502
  %v505 = vsel %vm164, %v62, 4286644096
  %v507 = vunpack.i.l.bf16 %v505
  %v508 = vunpack.i.h.bf16 %v505
  %v509 = vmax.f32 %v507, %v508
  %v510 = vrot.slane %v509, 4
  %v511 = vmax.f32 %v509, %v510
  %v512 = vrot.slane %v511, 2
  %v513 = vmax.f32 %v511, %v512
  %v514 = vrot.slane %v513, 1
  %v515 = vmax.f32 %v513, %v514
  %v516 = vpack.i.bf16 %v515, %v515
  %v518 = vsel %vm164, %v63, 4286644096
  %v520 = vunpack.i.l.bf16 %v518
  %v521 = vunpack.i.h.bf16 %v518
  %v522 = vmax.f32 %v520, %v521
  %v523 = vrot.slane %v522, 4
  %v524 = vmax.f32 %v522, %v523
  %v525 = vrot.slane %v524, 2
  %v526 = vmax.f32 %v524, %v525
  %v527 = vrot.slane %v526, 1
  %v528 = vmax.f32 %v526, %v527
  %v529 = vpack.i.bf16 %v528, %v528
  %v531 = vsel %vm164, %v64, 4286644096
  %v533 = vunpack.i.l.bf16 %v531
  %v534 = vunpack.i.h.bf16 %v531
  %v535 = vmax.f32 %v533, %v534
  %v536 = vrot.slane %v535, 4
  %v537 = vmax.f32 %v535, %v536
  %v538 = vrot.slane %v537, 2
  %v539 = vmax.f32 %v537, %v538
  %v540 = vrot.slane %v539, 1
  %v541 = vmax.f32 %v539, %v540
  %v542 = vpack.i.bf16 %v541, %v541
  %v544 = vsel %vm164, %v65, 4286644096
  %v546 = vunpack.i.l.bf16 %v544
  %v547 = vunpack.i.h.bf16 %v544
  %v548 = vmax.f32 %v546, %v547
  %v549 = vrot.slane %v548, 4
  %v550 = vmax.f32 %v548, %v549
  %v551 = vrot.slane %v550, 2
  %v552 = vmax.f32 %v550, %v551
  %v553 = vrot.slane %v552, 1
  %v554 = vmax.f32 %v552, %v553
  %v555 = vpack.i.bf16 %v554, %v554
  %v557 = vsel %vm164, %v66, 4286644096
  %v559 = vunpack.i.l.bf16 %v557
  %v560 = vunpack.i.h.bf16 %v557
  %v561 = vmax.f32 %v559, %v560
  %v562 = vrot.slane %v561, 4
  %v563 = vmax.f32 %v561, %v562
  %v564 = vrot.slane %v563, 2
  %v565 = vmax.f32 %v563, %v564
  %v566 = vrot.slane %v565, 1
  %v567 = vmax.f32 %v565, %v566
  %v568 = vpack.i.bf16 %v567, %v567
  %v570 = vsel %vm164, %v67, 4286644096
  %v572 = vunpack.i.l.bf16 %v570
  %v573 = vunpack.i.h.bf16 %v570
  %v574 = vmax.f32 %v572, %v573
  %v575 = vrot.slane %v574, 4
  %v576 = vmax.f32 %v574, %v575
  %v577 = vrot.slane %v576, 2
  %v578 = vmax.f32 %v576, %v577
  %v579 = vrot.slane %v578, 1
  %v580 = vmax.f32 %v578, %v579
  %v581 = vpack.i.bf16 %v580, %v580
  %v583 = vsel %vm164, %v68, 4286644096
  %v585 = vunpack.i.l.bf16 %v583
  %v586 = vunpack.i.h.bf16 %v583
  %v587 = vmax.f32 %v585, %v586
  %v588 = vrot.slane %v587, 4
  %v589 = vmax.f32 %v587, %v588
  %v590 = vrot.slane %v589, 2
  %v591 = vmax.f32 %v589, %v590
  %v592 = vrot.slane %v591, 1
  %v593 = vmax.f32 %v591, %v592
  %v594 = vpack.i.bf16 %v593, %v593
  %v596 = vsel %vm164, %v69, 4286644096
  %v598 = vunpack.i.l.bf16 %v596
  %v599 = vunpack.i.h.bf16 %v596
  %v600 = vmax.f32 %v598, %v599
  %v601 = vrot.slane %v600, 4
  %v602 = vmax.f32 %v600, %v601
  %v603 = vrot.slane %v602, 2
  %v604 = vmax.f32 %v602, %v603
  %v605 = vrot.slane %v604, 1
  %v606 = vmax.f32 %v604, %v605
  %v607 = vpack.i.bf16 %v606, %v606
  %v609 = vsel %vm164, %v70, 4286644096
  %v611 = vunpack.i.l.bf16 %v609
  %v612 = vunpack.i.h.bf16 %v609
  %v613 = vmax.f32 %v611, %v612
  %v614 = vrot.slane %v613, 4
  %v615 = vmax.f32 %v613, %v614
  %v616 = vrot.slane %v615, 2
  %v617 = vmax.f32 %v615, %v616
  %v618 = vrot.slane %v617, 1
  %v619 = vmax.f32 %v617, %v618
  %v620 = vpack.i.bf16 %v619, %v619
  %v622 = vsel %vm164, %v71, 4286644096
  %v624 = vunpack.i.l.bf16 %v622
  %v625 = vunpack.i.h.bf16 %v622
  %v626 = vmax.f32 %v624, %v625
  %v627 = vrot.slane %v626, 4
  %v628 = vmax.f32 %v626, %v627
  %v629 = vrot.slane %v628, 2
  %v630 = vmax.f32 %v628, %v629
  %v631 = vrot.slane %v630, 1
  %v632 = vmax.f32 %v630, %v631
  %v633 = vpack.i.bf16 %v632, %v632
  %v635 = vsel %vm164, %v72, 4286644096
  %v637 = vunpack.i.l.bf16 %v635
  %v638 = vunpack.i.h.bf16 %v635
  %v639 = vmax.f32 %v637, %v638
  %v640 = vrot.slane %v639, 4
  %v641 = vmax.f32 %v639, %v640
  %v642 = vrot.slane %v641, 2
  %v643 = vmax.f32 %v641, %v642
  %v644 = vrot.slane %v643, 1
  %v645 = vmax.f32 %v643, %v644
  %v646 = vpack.i.bf16 %v645, %v645
  %v648 = vsel %vm164, %v73, 4286644096
  %v650 = vunpack.i.l.bf16 %v648
  %v651 = vunpack.i.h.bf16 %v648
  %v652 = vmax.f32 %v650, %v651
  %v653 = vrot.slane %v652, 4
  %v654 = vmax.f32 %v652, %v653
  %v655 = vrot.slane %v654, 2
  %v656 = vmax.f32 %v654, %v655
  %v657 = vrot.slane %v656, 1
  %v658 = vmax.f32 %v656, %v657
  %v659 = vpack.i.bf16 %v658, %v658
  %v661 = vsel %vm164, %v74, 4286644096
  %v663 = vunpack.i.l.bf16 %v661
  %v664 = vunpack.i.h.bf16 %v661
  %v665 = vmax.f32 %v663, %v664
  %v666 = vrot.slane %v665, 4
  %v667 = vmax.f32 %v665, %v666
  %v668 = vrot.slane %v667, 2
  %v669 = vmax.f32 %v667, %v668
  %v670 = vrot.slane %v669, 1
  %v671 = vmax.f32 %v669, %v670
  %v672 = vpack.i.bf16 %v671, %v671
  %v674 = vsel %vm164, %v75, 4286644096
  %v676 = vunpack.i.l.bf16 %v674
  %v677 = vunpack.i.h.bf16 %v674
  %v678 = vmax.f32 %v676, %v677
  %v679 = vrot.slane %v678, 4
  %v680 = vmax.f32 %v678, %v679
  %v681 = vrot.slane %v680, 2
  %v682 = vmax.f32 %v680, %v681
  %v683 = vrot.slane %v682, 1
  %v684 = vmax.f32 %v682, %v683
  %v685 = vpack.i.bf16 %v684, %v684
  %v687 = vsel %vm164, %v76, 4286644096
  %v689 = vunpack.i.l.bf16 %v687
  %v690 = vunpack.i.h.bf16 %v687
  %v691 = vmax.f32 %v689, %v690
  %v692 = vrot.slane %v691, 4
  %v693 = vmax.f32 %v691, %v692
  %v694 = vrot.slane %v693, 2
  %v695 = vmax.f32 %v693, %v694
  %v696 = vrot.slane %v695, 1
  %v697 = vmax.f32 %v695, %v696
  %v698 = vpack.i.bf16 %v697, %v697
  %v700 = vsel %vm164, %v77, 4286644096
  %v702 = vunpack.i.l.bf16 %v700
  %v703 = vunpack.i.h.bf16 %v700
  %v704 = vmax.f32 %v702, %v703
  %v705 = vrot.slane %v704, 4
  %v706 = vmax.f32 %v704, %v705
  %v707 = vrot.slane %v706, 2
  %v708 = vmax.f32 %v706, %v707
  %v709 = vrot.slane %v708, 1
  %v710 = vmax.f32 %v708, %v709
  %v711 = vpack.i.bf16 %v710, %v710
  %v713 = vsel %vm164, %v78, 4286644096
  %v715 = vunpack.i.l.bf16 %v713
  %v716 = vunpack.i.h.bf16 %v713
  %v717 = vmax.f32 %v715, %v716
  %v718 = vrot.slane %v717, 4
  %v719 = vmax.f32 %v717, %v718
  %v720 = vrot.slane %v719, 2
  %v721 = vmax.f32 %v719, %v720
  %v722 = vrot.slane %v721, 1
  %v723 = vmax.f32 %v721, %v722
  %v724 = vpack.i.bf16 %v723, %v723
  %v726 = vsel %vm164, %v79, 4286644096
  %v728 = vunpack.i.l.bf16 %v726
  %v729 = vunpack.i.h.bf16 %v726
  %v730 = vmax.f32 %v728, %v729
  %v731 = vrot.slane %v730, 4
  %v732 = vmax.f32 %v730, %v731
  %v733 = vrot.slane %v732, 2
  %v734 = vmax.f32 %v732, %v733
  %v735 = vrot.slane %v734, 1
  %v736 = vmax.f32 %v734, %v735
  %v737 = vpack.i.bf16 %v736, %v736
  %v739 = vsel %vm164, %v80, 4286644096
  %v741 = vunpack.i.l.bf16 %v739
  %v742 = vunpack.i.h.bf16 %v739
  %v743 = vmax.f32 %v741, %v742
  %v744 = vrot.slane %v743, 4
  %v745 = vmax.f32 %v743, %v744
  %v746 = vrot.slane %v745, 2
  %v747 = vmax.f32 %v745, %v746
  %v748 = vrot.slane %v747, 1
  %v749 = vmax.f32 %v747, %v748
  %v750 = vpack.i.bf16 %v749, %v749
  %v752 = vsel %vm164, %v81, 4286644096
  %v754 = vunpack.i.l.bf16 %v752
  %v755 = vunpack.i.h.bf16 %v752
  %v756 = vmax.f32 %v754, %v755
  %v757 = vrot.slane %v756, 4
  %v758 = vmax.f32 %v756, %v757
  %v759 = vrot.slane %v758, 2
  %v760 = vmax.f32 %v758, %v759
  %v761 = vrot.slane %v760, 1
  %v762 = vmax.f32 %v760, %v761
  %v763 = vpack.i.bf16 %v762, %v762
  %v765 = vsel %vm164, %v82, 4286644096
  %v767 = vunpack.i.l.bf16 %v765
  %v768 = vunpack.i.h.bf16 %v765
  %v769 = vmax.f32 %v767, %v768
  %v770 = vrot.slane %v769, 4
  %v771 = vmax.f32 %v769, %v770
  %v772 = vrot.slane %v771, 2
  %v773 = vmax.f32 %v771, %v772
  %v774 = vrot.slane %v773, 1
  %v775 = vmax.f32 %v773, %v774
  %v776 = vpack.i.bf16 %v775, %v775
  %v778 = vsel %vm164, %v83, 4286644096
  %v780 = vunpack.i.l.bf16 %v778
  %v781 = vunpack.i.h.bf16 %v778
  %v782 = vmax.f32 %v780, %v781
  %v783 = vrot.slane %v782, 4
  %v784 = vmax.f32 %v782, %v783
  %v785 = vrot.slane %v784, 2
  %v786 = vmax.f32 %v784, %v785
  %v787 = vrot.slane %v786, 1
  %v788 = vmax.f32 %v786, %v787
  %v789 = vpack.i.bf16 %v788, %v788
  %v791 = vsel %vm164, %v84, 4286644096
  %v793 = vunpack.i.l.bf16 %v791
  %v794 = vunpack.i.h.bf16 %v791
  %v795 = vmax.f32 %v793, %v794
  %v796 = vrot.slane %v795, 4
  %v797 = vmax.f32 %v795, %v796
  %v798 = vrot.slane %v797, 2
  %v799 = vmax.f32 %v797, %v798
  %v800 = vrot.slane %v799, 1
  %v801 = vmax.f32 %v799, %v800
  %v802 = vpack.i.bf16 %v801, %v801
  %v804 = vsel %vm164, %v85, 4286644096
  %v806 = vunpack.i.l.bf16 %v804
  %v807 = vunpack.i.h.bf16 %v804
  %v808 = vmax.f32 %v806, %v807
  %v809 = vrot.slane %v808, 4
  %v810 = vmax.f32 %v808, %v809
  %v811 = vrot.slane %v810, 2
  %v812 = vmax.f32 %v810, %v811
  %v813 = vrot.slane %v812, 1
  %v814 = vmax.f32 %v812, %v813
  %v815 = vpack.i.bf16 %v814, %v814
  %v817 = vsel %vm164, %v86, 4286644096
  %v819 = vunpack.i.l.bf16 %v817
  %v820 = vunpack.i.h.bf16 %v817
  %v821 = vmax.f32 %v819, %v820
  %v822 = vrot.slane %v821, 4
  %v823 = vmax.f32 %v821, %v822
  %v824 = vrot.slane %v823, 2
  %v825 = vmax.f32 %v823, %v824
  %v826 = vrot.slane %v825, 1
  %v827 = vmax.f32 %v825, %v826
  %v828 = vpack.i.bf16 %v827, %v827
  %v830 = vsel %vm164, %v87, 4286644096
  %v832 = vunpack.i.l.bf16 %v830
  %v833 = vunpack.i.h.bf16 %v830
  %v834 = vmax.f32 %v832, %v833
  %v835 = vrot.slane %v834, 4
  %v836 = vmax.f32 %v834, %v835
  %v837 = vrot.slane %v836, 2
  %v838 = vmax.f32 %v836, %v837
  %v839 = vrot.slane %v838, 1
  %v840 = vmax.f32 %v838, %v839
  %v841 = vpack.i.bf16 %v840, %v840
  %v843 = vsel %vm164, %v88, 4286644096
  %v845 = vunpack.i.l.bf16 %v843
  %v846 = vunpack.i.h.bf16 %v843
  %v847 = vmax.f32 %v845, %v846
  %v848 = vrot.slane %v847, 4
  %v849 = vmax.f32 %v847, %v848
  %v850 = vrot.slane %v849, 2
  %v851 = vmax.f32 %v849, %v850
  %v852 = vrot.slane %v851, 1
  %v853 = vmax.f32 %v851, %v852
  %v854 = vpack.i.bf16 %v853, %v853
  %v856 = vsel %vm164, %v89, 4286644096
  %v858 = vunpack.i.l.bf16 %v856
  %v859 = vunpack.i.h.bf16 %v856
  %v860 = vmax.f32 %v858, %v859
  %v861 = vrot.slane %v860, 4
  %v862 = vmax.f32 %v860, %v861
  %v863 = vrot.slane %v862, 2
  %v864 = vmax.f32 %v862, %v863
  %v865 = vrot.slane %v864, 1
  %v866 = vmax.f32 %v864, %v865
  %v867 = vpack.i.bf16 %v866, %v866
  %v869 = vsel %vm164, %v90, 4286644096
  %v871 = vunpack.i.l.bf16 %v869
  %v872 = vunpack.i.h.bf16 %v869
  %v873 = vmax.f32 %v871, %v872
  %v874 = vrot.slane %v873, 4
  %v875 = vmax.f32 %v873, %v874
  %v876 = vrot.slane %v875, 2
  %v877 = vmax.f32 %v875, %v876
  %v878 = vrot.slane %v877, 1
  %v879 = vmax.f32 %v877, %v878
  %v880 = vpack.i.bf16 %v879, %v879
  %v882 = vsel %vm164, %v91, 4286644096
  %v884 = vunpack.i.l.bf16 %v882
  %v885 = vunpack.i.h.bf16 %v882
  %v886 = vmax.f32 %v884, %v885
  %v887 = vrot.slane %v886, 4
  %v888 = vmax.f32 %v886, %v887
  %v889 = vrot.slane %v888, 2
  %v890 = vmax.f32 %v888, %v889
  %v891 = vrot.slane %v890, 1
  %v892 = vmax.f32 %v890, %v891
  %v893 = vpack.i.bf16 %v892, %v892
  %v895 = vsel %vm164, %v92, 4286644096
  %v897 = vunpack.i.l.bf16 %v895
  %v898 = vunpack.i.h.bf16 %v895
  %v899 = vmax.f32 %v897, %v898
  %v900 = vrot.slane %v899, 4
  %v901 = vmax.f32 %v899, %v900
  %v902 = vrot.slane %v901, 2
  %v903 = vmax.f32 %v901, %v902
  %v904 = vrot.slane %v903, 1
  %v905 = vmax.f32 %v903, %v904
  %v906 = vpack.i.bf16 %v905, %v905
  %v908 = vsel %vm164, %v93, 4286644096
  %v910 = vunpack.i.l.bf16 %v908
  %v911 = vunpack.i.h.bf16 %v908
  %v912 = vmax.f32 %v910, %v911
  %v913 = vrot.slane %v912, 4
  %v914 = vmax.f32 %v912, %v913
  %v915 = vrot.slane %v914, 2
  %v916 = vmax.f32 %v914, %v915
  %v917 = vrot.slane %v916, 1
  %v918 = vmax.f32 %v916, %v917
  %v919 = vpack.i.bf16 %v918, %v918
  %v921 = vsel %vm164, %v94, 4286644096
  %v923 = vunpack.i.l.bf16 %v921
  %v924 = vunpack.i.h.bf16 %v921
  %v925 = vmax.f32 %v923, %v924
  %v926 = vrot.slane %v925, 4
  %v927 = vmax.f32 %v925, %v926
  %v928 = vrot.slane %v927, 2
  %v929 = vmax.f32 %v927, %v928
  %v930 = vrot.slane %v929, 1
  %v931 = vmax.f32 %v929, %v930
  %v932 = vpack.i.bf16 %v931, %v931
  %v934 = vsel %vm164, %v95, 4286644096
  %v936 = vunpack.i.l.bf16 %v934
  %v937 = vunpack.i.h.bf16 %v934
  %v938 = vmax.f32 %v936, %v937
  %v939 = vrot.slane %v938, 4
  %v940 = vmax.f32 %v938, %v939
  %v941 = vrot.slane %v940, 2
  %v942 = vmax.f32 %v940, %v941
  %v943 = vrot.slane %v942, 1
  %v944 = vmax.f32 %v942, %v943
  %v945 = vpack.i.bf16 %v944, %v944
  %v947 = vsel %vm164, %v96, 4286644096
  %v949 = vunpack.i.l.bf16 %v947
  %v950 = vunpack.i.h.bf16 %v947
  %v951 = vmax.f32 %v949, %v950
  %v952 = vrot.slane %v951, 4
  %v953 = vmax.f32 %v951, %v952
  %v954 = vrot.slane %v953, 2
  %v955 = vmax.f32 %v953, %v954
  %v956 = vrot.slane %v955, 1
  %v957 = vmax.f32 %v955, %v956
  %v958 = vpack.i.bf16 %v957, %v957
  %v960 = vsel %vm164, %v97, 4286644096
  %v962 = vunpack.i.l.bf16 %v960
  %v963 = vunpack.i.h.bf16 %v960
  %v964 = vmax.f32 %v962, %v963
  %v965 = vrot.slane %v964, 4
  %v966 = vmax.f32 %v964, %v965
  %v967 = vrot.slane %v966, 2
  %v968 = vmax.f32 %v966, %v967
  %v969 = vrot.slane %v968, 1
  %v970 = vmax.f32 %v968, %v969
  %v971 = vpack.i.bf16 %v970, %v970
  %v973 = vsel %vm164, %v98, 4286644096
  %v975 = vunpack.i.l.bf16 %v973
  %v976 = vunpack.i.h.bf16 %v973
  %v977 = vmax.f32 %v975, %v976
  %v978 = vrot.slane %v977, 4
  %v979 = vmax.f32 %v977, %v978
  %v980 = vrot.slane %v979, 2
  %v981 = vmax.f32 %v979, %v980
  %v982 = vrot.slane %v981, 1
  %v983 = vmax.f32 %v981, %v982
  %v984 = vpack.i.bf16 %v983, %v983
  %v986 = vsel %vm164, %v99, 4286644096
  %v988 = vunpack.i.l.bf16 %v986
  %v989 = vunpack.i.h.bf16 %v986
  %v990 = vmax.f32 %v988, %v989
  %v991 = vrot.slane %v990, 4
  %v992 = vmax.f32 %v990, %v991
  %v993 = vrot.slane %v992, 2
  %v994 = vmax.f32 %v992, %v993
  %v995 = vrot.slane %v994, 1
  %v996 = vmax.f32 %v994, %v995
  %v997 = vpack.i.bf16 %v996, %v996
  %v999 = vsel %vm164, %v100, 4286644096
  %v1001 = vunpack.i.l.bf16 %v999
  %v1002 = vunpack.i.h.bf16 %v999
  %v1003 = vmax.f32 %v1001, %v1002
  %v1004 = vrot.slane %v1003, 4
  %v1005 = vmax.f32 %v1003, %v1004
  %v1006 = vrot.slane %v1005, 2
  %v1007 = vmax.f32 %v1005, %v1006
  %v1008 = vrot.slane %v1007, 1
  %v1009 = vmax.f32 %v1007, %v1008
  %v1010 = vpack.i.bf16 %v1009, %v1009
  %v1012 = vsel %vm164, %v101, 4286644096
  %v1014 = vunpack.i.l.bf16 %v1012
  %v1015 = vunpack.i.h.bf16 %v1012
  %v1016 = vmax.f32 %v1014, %v1015
  %v1017 = vrot.slane %v1016, 4
  %v1018 = vmax.f32 %v1016, %v1017
  %v1019 = vrot.slane %v1018, 2
  %v1020 = vmax.f32 %v1018, %v1019
  %v1021 = vrot.slane %v1020, 1
  %v1022 = vmax.f32 %v1020, %v1021
  %v1023 = vpack.i.bf16 %v1022, %v1022
  %v1025 = vsel %vm164, %v102, 4286644096
  %v1027 = vunpack.i.l.bf16 %v1025
  %v1028 = vunpack.i.h.bf16 %v1025
  %v1029 = vmax.f32 %v1027, %v1028
  %v1030 = vrot.slane %v1029, 4
  %v1031 = vmax.f32 %v1029, %v1030
  %v1032 = vrot.slane %v1031, 2
  %v1033 = vmax.f32 %v1031, %v1032
  %v1034 = vrot.slane %v1033, 1
  %v1035 = vmax.f32 %v1033, %v1034
  %v1036 = vpack.i.bf16 %v1035, %v1035
  %v1038 = vsel %vm164, %v103, 4286644096
  %v1040 = vunpack.i.l.bf16 %v1038
  %v1041 = vunpack.i.h.bf16 %v1038
  %v1042 = vmax.f32 %v1040, %v1041
  %v1043 = vrot.slane %v1042, 4
  %v1044 = vmax.f32 %v1042, %v1043
  %v1045 = vrot.slane %v1044, 2
  %v1046 = vmax.f32 %v1044, %v1045
  %v1047 = vrot.slane %v1046, 1
  %v1048 = vmax.f32 %v1046, %v1047
  %v1049 = vpack.i.bf16 %v1048, %v1048
  %v1051 = vsel %vm164, %v104, 4286644096
  %v1053 = vunpack.i.l.bf16 %v1051
  %v1054 = vunpack.i.h.bf16 %v1051
  %v1055 = vmax.f32 %v1053, %v1054
  %v1056 = vrot.slane %v1055, 4
  %v1057 = vmax.f32 %v1055, %v1056
  %v1058 = vrot.slane %v1057, 2
  %v1059 = vmax.f32 %v1057, %v1058
  %v1060 = vrot.slane %v1059, 1
  %v1061 = vmax.f32 %v1059, %v1060
  %v1062 = vpack.i.bf16 %v1061, %v1061
  %v1064 = vsel %vm164, %v105, 4286644096
  %v1066 = vunpack.i.l.bf16 %v1064
  %v1067 = vunpack.i.h.bf16 %v1064
  %v1068 = vmax.f32 %v1066, %v1067
  %v1069 = vrot.slane %v1068, 4
  %v1070 = vmax.f32 %v1068, %v1069
  %v1071 = vrot.slane %v1070, 2
  %v1072 = vmax.f32 %v1070, %v1071
  %v1073 = vrot.slane %v1072, 1
  %v1074 = vmax.f32 %v1072, %v1073
  %v1075 = vpack.i.bf16 %v1074, %v1074
  %v1077 = vsel %vm164, %v106, 4286644096
  %v1079 = vunpack.i.l.bf16 %v1077
  %v1080 = vunpack.i.h.bf16 %v1077
  %v1081 = vmax.f32 %v1079, %v1080
  %v1082 = vrot.slane %v1081, 4
  %v1083 = vmax.f32 %v1081, %v1082
  %v1084 = vrot.slane %v1083, 2
  %v1085 = vmax.f32 %v1083, %v1084
  %v1086 = vrot.slane %v1085, 1
  %v1087 = vmax.f32 %v1085, %v1086
  %v1088 = vpack.i.bf16 %v1087, %v1087
  %v1090 = vsel %vm164, %v107, 4286644096
  %v1092 = vunpack.i.l.bf16 %v1090
  %v1093 = vunpack.i.h.bf16 %v1090
  %v1094 = vmax.f32 %v1092, %v1093
  %v1095 = vrot.slane %v1094, 4
  %v1096 = vmax.f32 %v1094, %v1095
  %v1097 = vrot.slane %v1096, 2
  %v1098 = vmax.f32 %v1096, %v1097
  %v1099 = vrot.slane %v1098, 1
  %v1100 = vmax.f32 %v1098, %v1099
  %v1101 = vpack.i.bf16 %v1100, %v1100
  %v1103 = vsel %vm164, %v108, 4286644096
  %v1105 = vunpack.i.l.bf16 %v1103
  %v1106 = vunpack.i.h.bf16 %v1103
  %v1107 = vmax.f32 %v1105, %v1106
  %v1108 = vrot.slane %v1107, 4
  %v1109 = vmax.f32 %v1107, %v1108
  %v1110 = vrot.slane %v1109, 2
  %v1111 = vmax.f32 %v1109, %v1110
  %v1112 = vrot.slane %v1111, 1
  %v1113 = vmax.f32 %v1111, %v1112
  %v1114 = vpack.i.bf16 %v1113, %v1113
  %v1116 = vsel %vm164, %v109, 4286644096
  %v1118 = vunpack.i.l.bf16 %v1116
  %v1119 = vunpack.i.h.bf16 %v1116
  %v1120 = vmax.f32 %v1118, %v1119
  %v1121 = vrot.slane %v1120, 4
  %v1122 = vmax.f32 %v1120, %v1121
  %v1123 = vrot.slane %v1122, 2
  %v1124 = vmax.f32 %v1122, %v1123
  %v1125 = vrot.slane %v1124, 1
  %v1126 = vmax.f32 %v1124, %v1125
  %v1127 = vpack.i.bf16 %v1126, %v1126
  %v1129 = vsel %vm164, %v110, 4286644096
  %v1131 = vunpack.i.l.bf16 %v1129
  %v1132 = vunpack.i.h.bf16 %v1129
  %v1133 = vmax.f32 %v1131, %v1132
  %v1134 = vrot.slane %v1133, 4
  %v1135 = vmax.f32 %v1133, %v1134
  %v1136 = vrot.slane %v1135, 2
  %v1137 = vmax.f32 %v1135, %v1136
  %v1138 = vrot.slane %v1137, 1
  %v1139 = vmax.f32 %v1137, %v1138
  %v1140 = vpack.i.bf16 %v1139, %v1139
  %v1142 = vsel %vm164, %v111, 4286644096
  %v1144 = vunpack.i.l.bf16 %v1142
  %v1145 = vunpack.i.h.bf16 %v1142
  %v1146 = vmax.f32 %v1144, %v1145
  %v1147 = vrot.slane %v1146, 4
  %v1148 = vmax.f32 %v1146, %v1147
  %v1149 = vrot.slane %v1148, 2
  %v1150 = vmax.f32 %v1148, %v1149
  %v1151 = vrot.slane %v1150, 1
  %v1152 = vmax.f32 %v1150, %v1151
  %v1153 = vpack.i.bf16 %v1152, %v1152
  %v1155 = vsel %vm164, %v112, 4286644096
  %v1157 = vunpack.i.l.bf16 %v1155
  %v1158 = vunpack.i.h.bf16 %v1155
  %v1159 = vmax.f32 %v1157, %v1158
  %v1160 = vrot.slane %v1159, 4
  %v1161 = vmax.f32 %v1159, %v1160
  %v1162 = vrot.slane %v1161, 2
  %v1163 = vmax.f32 %v1161, %v1162
  %v1164 = vrot.slane %v1163, 1
  %v1165 = vmax.f32 %v1163, %v1164
  %v1166 = vpack.i.bf16 %v1165, %v1165
  %v1168 = vsel %vm164, %v113, 4286644096
  %v1170 = vunpack.i.l.bf16 %v1168
  %v1171 = vunpack.i.h.bf16 %v1168
  %v1172 = vmax.f32 %v1170, %v1171
  %v1173 = vrot.slane %v1172, 4
  %v1174 = vmax.f32 %v1172, %v1173
  %v1175 = vrot.slane %v1174, 2
  %v1176 = vmax.f32 %v1174, %v1175
  %v1177 = vrot.slane %v1176, 1
  %v1178 = vmax.f32 %v1176, %v1177
  %v1179 = vpack.i.bf16 %v1178, %v1178
  %v1181 = vsel %vm164, %v114, 4286644096
  %v1183 = vunpack.i.l.bf16 %v1181
  %v1184 = vunpack.i.h.bf16 %v1181
  %v1185 = vmax.f32 %v1183, %v1184
  %v1186 = vrot.slane %v1185, 4
  %v1187 = vmax.f32 %v1185, %v1186
  %v1188 = vrot.slane %v1187, 2
  %v1189 = vmax.f32 %v1187, %v1188
  %v1190 = vrot.slane %v1189, 1
  %v1191 = vmax.f32 %v1189, %v1190
  %v1192 = vpack.i.bf16 %v1191, %v1191
  %v1194 = vsel %vm164, %v115, 4286644096
  %v1196 = vunpack.i.l.bf16 %v1194
  %v1197 = vunpack.i.h.bf16 %v1194
  %v1198 = vmax.f32 %v1196, %v1197
  %v1199 = vrot.slane %v1198, 4
  %v1200 = vmax.f32 %v1198, %v1199
  %v1201 = vrot.slane %v1200, 2
  %v1202 = vmax.f32 %v1200, %v1201
  %v1203 = vrot.slane %v1202, 1
  %v1204 = vmax.f32 %v1202, %v1203
  %v1205 = vpack.i.bf16 %v1204, %v1204
  %v1207 = vsel %vm164, %v116, 4286644096
  %v1209 = vunpack.i.l.bf16 %v1207
  %v1210 = vunpack.i.h.bf16 %v1207
  %v1211 = vmax.f32 %v1209, %v1210
  %v1212 = vrot.slane %v1211, 4
  %v1213 = vmax.f32 %v1211, %v1212
  %v1214 = vrot.slane %v1213, 2
  %v1215 = vmax.f32 %v1213, %v1214
  %v1216 = vrot.slane %v1215, 1
  %v1217 = vmax.f32 %v1215, %v1216
  %v1218 = vpack.i.bf16 %v1217, %v1217
  %v1220 = vsel %vm164, %v117, 4286644096
  %v1222 = vunpack.i.l.bf16 %v1220
  %v1223 = vunpack.i.h.bf16 %v1220
  %v1224 = vmax.f32 %v1222, %v1223
  %v1225 = vrot.slane %v1224, 4
  %v1226 = vmax.f32 %v1224, %v1225
  %v1227 = vrot.slane %v1226, 2
  %v1228 = vmax.f32 %v1226, %v1227
  %v1229 = vrot.slane %v1228, 1
  %v1230 = vmax.f32 %v1228, %v1229
  %v1231 = vpack.i.bf16 %v1230, %v1230
  %v1233 = vsel %vm164, %v118, 4286644096
  %v1235 = vunpack.i.l.bf16 %v1233
  %v1236 = vunpack.i.h.bf16 %v1233
  %v1237 = vmax.f32 %v1235, %v1236
  %v1238 = vrot.slane %v1237, 4
  %v1239 = vmax.f32 %v1237, %v1238
  %v1240 = vrot.slane %v1239, 2
  %v1241 = vmax.f32 %v1239, %v1240
  %v1242 = vrot.slane %v1241, 1
  %v1243 = vmax.f32 %v1241, %v1242
  %v1244 = vpack.i.bf16 %v1243, %v1243
  %v1246 = vsel %vm164, %v119, 4286644096
  %v1248 = vunpack.i.l.bf16 %v1246
  %v1249 = vunpack.i.h.bf16 %v1246
  %v1250 = vmax.f32 %v1248, %v1249
  %v1251 = vrot.slane %v1250, 4
  %v1252 = vmax.f32 %v1250, %v1251
  %v1253 = vrot.slane %v1252, 2
  %v1254 = vmax.f32 %v1252, %v1253
  %v1255 = vrot.slane %v1254, 1
  %v1256 = vmax.f32 %v1254, %v1255
  %v1257 = vpack.i.bf16 %v1256, %v1256
  %v1259 = vsel %vm164, %v120, 4286644096
  %v1261 = vunpack.i.l.bf16 %v1259
  %v1262 = vunpack.i.h.bf16 %v1259
  %v1263 = vmax.f32 %v1261, %v1262
  %v1264 = vrot.slane %v1263, 4
  %v1265 = vmax.f32 %v1263, %v1264
  %v1266 = vrot.slane %v1265, 2
  %v1267 = vmax.f32 %v1265, %v1266
  %v1268 = vrot.slane %v1267, 1
  %v1269 = vmax.f32 %v1267, %v1268
  %v1270 = vpack.i.bf16 %v1269, %v1269
  %v1272 = vsel %vm164, %v121, 4286644096
  %v1274 = vunpack.i.l.bf16 %v1272
  %v1275 = vunpack.i.h.bf16 %v1272
  %v1276 = vmax.f32 %v1274, %v1275
  %v1277 = vrot.slane %v1276, 4
  %v1278 = vmax.f32 %v1276, %v1277
  %v1279 = vrot.slane %v1278, 2
  %v1280 = vmax.f32 %v1278, %v1279
  %v1281 = vrot.slane %v1280, 1
  %v1282 = vmax.f32 %v1280, %v1281
  %v1283 = vpack.i.bf16 %v1282, %v1282
  %v1285 = vsel %vm164, %v122, 4286644096
  %v1287 = vunpack.i.l.bf16 %v1285
  %v1288 = vunpack.i.h.bf16 %v1285
  %v1289 = vmax.f32 %v1287, %v1288
  %v1290 = vrot.slane %v1289, 4
  %v1291 = vmax.f32 %v1289, %v1290
  %v1292 = vrot.slane %v1291, 2
  %v1293 = vmax.f32 %v1291, %v1292
  %v1294 = vrot.slane %v1293, 1
  %v1295 = vmax.f32 %v1293, %v1294
  %v1296 = vpack.i.bf16 %v1295, %v1295
  %v1298 = vsel %vm164, %v123, 4286644096
  %v1300 = vunpack.i.l.bf16 %v1298
  %v1301 = vunpack.i.h.bf16 %v1298
  %v1302 = vmax.f32 %v1300, %v1301
  %v1303 = vrot.slane %v1302, 4
  %v1304 = vmax.f32 %v1302, %v1303
  %v1305 = vrot.slane %v1304, 2
  %v1306 = vmax.f32 %v1304, %v1305
  %v1307 = vrot.slane %v1306, 1
  %v1308 = vmax.f32 %v1306, %v1307
  %v1309 = vpack.i.bf16 %v1308, %v1308
  %v1311 = vsel %vm164, %v124, 4286644096
  %v1313 = vunpack.i.l.bf16 %v1311
  %v1314 = vunpack.i.h.bf16 %v1311
  %v1315 = vmax.f32 %v1313, %v1314
  %v1316 = vrot.slane %v1315, 4
  %v1317 = vmax.f32 %v1315, %v1316
  %v1318 = vrot.slane %v1317, 2
  %v1319 = vmax.f32 %v1317, %v1318
  %v1320 = vrot.slane %v1319, 1
  %v1321 = vmax.f32 %v1319, %v1320
  %v1322 = vpack.i.bf16 %v1321, %v1321
  %v1324 = vsel %vm164, %v125, 4286644096
  %v1326 = vunpack.i.l.bf16 %v1324
  %v1327 = vunpack.i.h.bf16 %v1324
  %v1328 = vmax.f32 %v1326, %v1327
  %v1329 = vrot.slane %v1328, 4
  %v1330 = vmax.f32 %v1328, %v1329
  %v1331 = vrot.slane %v1330, 2
  %v1332 = vmax.f32 %v1330, %v1331
  %v1333 = vrot.slane %v1332, 1
  %v1334 = vmax.f32 %v1332, %v1333
  %v1335 = vpack.i.bf16 %v1334, %v1334
  %v1337 = vsel %vm164, %v126, 4286644096
  %v1339 = vunpack.i.l.bf16 %v1337
  %v1340 = vunpack.i.h.bf16 %v1337
  %v1341 = vmax.f32 %v1339, %v1340
  %v1342 = vrot.slane %v1341, 4
  %v1343 = vmax.f32 %v1341, %v1342
  %v1344 = vrot.slane %v1343, 2
  %v1345 = vmax.f32 %v1343, %v1344
  %v1346 = vrot.slane %v1345, 1
  %v1347 = vmax.f32 %v1345, %v1346
  %v1348 = vpack.i.bf16 %v1347, %v1347
  %v1350 = vsel %vm164, %v127, 4286644096
  %v1352 = vunpack.i.l.bf16 %v1350
  %v1353 = vunpack.i.h.bf16 %v1350
  %v1354 = vmax.f32 %v1352, %v1353
  %v1355 = vrot.slane %v1354, 4
  %v1356 = vmax.f32 %v1354, %v1355
  %v1357 = vrot.slane %v1356, 2
  %v1358 = vmax.f32 %v1356, %v1357
  %v1359 = vrot.slane %v1358, 1
  %v1360 = vmax.f32 %v1358, %v1359
  %v1361 = vpack.i.bf16 %v1360, %v1360
  %v1363 = vsel %vm164, %v128, 4286644096
  %v1365 = vunpack.i.l.bf16 %v1363
  %v1366 = vunpack.i.h.bf16 %v1363
  %v1367 = vmax.f32 %v1365, %v1366
  %v1368 = vrot.slane %v1367, 4
  %v1369 = vmax.f32 %v1367, %v1368
  %v1370 = vrot.slane %v1369, 2
  %v1371 = vmax.f32 %v1369, %v1370
  %v1372 = vrot.slane %v1371, 1
  %v1373 = vmax.f32 %v1371, %v1372
  %v1374 = vpack.i.bf16 %v1373, %v1373
  %v1376 = vsel %vm164, %v129, 4286644096
  %v1378 = vunpack.i.l.bf16 %v1376
  %v1379 = vunpack.i.h.bf16 %v1376
  %v1380 = vmax.f32 %v1378, %v1379
  %v1381 = vrot.slane %v1380, 4
  %v1382 = vmax.f32 %v1380, %v1381
  %v1383 = vrot.slane %v1382, 2
  %v1384 = vmax.f32 %v1382, %v1383
  %v1385 = vrot.slane %v1384, 1
  %v1386 = vmax.f32 %v1384, %v1385
  %v1387 = vpack.i.bf16 %v1386, %v1386
  %v1389 = vsel %vm164, %v130, 4286644096
  %v1391 = vunpack.i.l.bf16 %v1389
  %v1392 = vunpack.i.h.bf16 %v1389
  %v1393 = vmax.f32 %v1391, %v1392
  %v1394 = vrot.slane %v1393, 4
  %v1395 = vmax.f32 %v1393, %v1394
  %v1396 = vrot.slane %v1395, 2
  %v1397 = vmax.f32 %v1395, %v1396
  %v1398 = vrot.slane %v1397, 1
  %v1399 = vmax.f32 %v1397, %v1398
  %v1400 = vpack.i.bf16 %v1399, %v1399
  %v1402 = vsel %vm164, %v131, 4286644096
  %v1404 = vunpack.i.l.bf16 %v1402
  %v1405 = vunpack.i.h.bf16 %v1402
  %v1406 = vmax.f32 %v1404, %v1405
  %v1407 = vrot.slane %v1406, 4
  %v1408 = vmax.f32 %v1406, %v1407
  %v1409 = vrot.slane %v1408, 2
  %v1410 = vmax.f32 %v1408, %v1409
  %v1411 = vrot.slane %v1410, 1
  %v1412 = vmax.f32 %v1410, %v1411
  %v1413 = vpack.i.bf16 %v1412, %v1412
  %v1415 = vsel %vm164, %v132, 4286644096
  %v1417 = vunpack.i.l.bf16 %v1415
  %v1418 = vunpack.i.h.bf16 %v1415
  %v1419 = vmax.f32 %v1417, %v1418
  %v1420 = vrot.slane %v1419, 4
  %v1421 = vmax.f32 %v1419, %v1420
  %v1422 = vrot.slane %v1421, 2
  %v1423 = vmax.f32 %v1421, %v1422
  %v1424 = vrot.slane %v1423, 1
  %v1425 = vmax.f32 %v1423, %v1424
  %v1426 = vpack.i.bf16 %v1425, %v1425
  %v1428 = vsel %vm164, %v133, 4286644096
  %v1430 = vunpack.i.l.bf16 %v1428
  %v1431 = vunpack.i.h.bf16 %v1428
  %v1432 = vmax.f32 %v1430, %v1431
  %v1433 = vrot.slane %v1432, 4
  %v1434 = vmax.f32 %v1432, %v1433
  %v1435 = vrot.slane %v1434, 2
  %v1436 = vmax.f32 %v1434, %v1435
  %v1437 = vrot.slane %v1436, 1
  %v1438 = vmax.f32 %v1436, %v1437
  %v1439 = vpack.i.bf16 %v1438, %v1438
  %v1441 = vsel %vm164, %v134, 4286644096
  %v1443 = vunpack.i.l.bf16 %v1441
  %v1444 = vunpack.i.h.bf16 %v1441
  %v1445 = vmax.f32 %v1443, %v1444
  %v1446 = vrot.slane %v1445, 4
  %v1447 = vmax.f32 %v1445, %v1446
  %v1448 = vrot.slane %v1447, 2
  %v1449 = vmax.f32 %v1447, %v1448
  %v1450 = vrot.slane %v1449, 1
  %v1451 = vmax.f32 %v1449, %v1450
  %v1452 = vpack.i.bf16 %v1451, %v1451
  %v1454 = vsel %vm164, %v135, 4286644096
  %v1456 = vunpack.i.l.bf16 %v1454
  %v1457 = vunpack.i.h.bf16 %v1454
  %v1458 = vmax.f32 %v1456, %v1457
  %v1459 = vrot.slane %v1458, 4
  %v1460 = vmax.f32 %v1458, %v1459
  %v1461 = vrot.slane %v1460, 2
  %v1462 = vmax.f32 %v1460, %v1461
  %v1463 = vrot.slane %v1462, 1
  %v1464 = vmax.f32 %v1462, %v1463
  %v1465 = vpack.i.bf16 %v1464, %v1464
  %v1467 = vsel %vm164, %v136, 4286644096
  %v1469 = vunpack.i.l.bf16 %v1467
  %v1470 = vunpack.i.h.bf16 %v1467
  %v1471 = vmax.f32 %v1469, %v1470
  %v1472 = vrot.slane %v1471, 4
  %v1473 = vmax.f32 %v1471, %v1472
  %v1474 = vrot.slane %v1473, 2
  %v1475 = vmax.f32 %v1473, %v1474
  %v1476 = vrot.slane %v1475, 1
  %v1477 = vmax.f32 %v1475, %v1476
  %v1478 = vpack.i.bf16 %v1477, %v1477
  %v1480 = vsel %vm164, %v137, 4286644096
  %v1482 = vunpack.i.l.bf16 %v1480
  %v1483 = vunpack.i.h.bf16 %v1480
  %v1484 = vmax.f32 %v1482, %v1483
  %v1485 = vrot.slane %v1484, 4
  %v1486 = vmax.f32 %v1484, %v1485
  %v1487 = vrot.slane %v1486, 2
  %v1488 = vmax.f32 %v1486, %v1487
  %v1489 = vrot.slane %v1488, 1
  %v1490 = vmax.f32 %v1488, %v1489
  %v1491 = vpack.i.bf16 %v1490, %v1490
  %v1493 = vsel %vm164, %v138, 4286644096
  %v1495 = vunpack.i.l.bf16 %v1493
  %v1496 = vunpack.i.h.bf16 %v1493
  %v1497 = vmax.f32 %v1495, %v1496
  %v1498 = vrot.slane %v1497, 4
  %v1499 = vmax.f32 %v1497, %v1498
  %v1500 = vrot.slane %v1499, 2
  %v1501 = vmax.f32 %v1499, %v1500
  %v1502 = vrot.slane %v1501, 1
  %v1503 = vmax.f32 %v1501, %v1502
  %v1504 = vpack.i.bf16 %v1503, %v1503
  %v1506 = vsel %vm164, %v139, 4286644096
  %v1508 = vunpack.i.l.bf16 %v1506
  %v1509 = vunpack.i.h.bf16 %v1506
  %v1510 = vmax.f32 %v1508, %v1509
  %v1511 = vrot.slane %v1510, 4
  %v1512 = vmax.f32 %v1510, %v1511
  %v1513 = vrot.slane %v1512, 2
  %v1514 = vmax.f32 %v1512, %v1513
  %v1515 = vrot.slane %v1514, 1
  %v1516 = vmax.f32 %v1514, %v1515
  %v1517 = vpack.i.bf16 %v1516, %v1516
  %v1519 = vsel %vm164, %v140, 4286644096
  %v1521 = vunpack.i.l.bf16 %v1519
  %v1522 = vunpack.i.h.bf16 %v1519
  %v1523 = vmax.f32 %v1521, %v1522
  %v1524 = vrot.slane %v1523, 4
  %v1525 = vmax.f32 %v1523, %v1524
  %v1526 = vrot.slane %v1525, 2
  %v1527 = vmax.f32 %v1525, %v1526
  %v1528 = vrot.slane %v1527, 1
  %v1529 = vmax.f32 %v1527, %v1528
  %v1530 = vpack.i.bf16 %v1529, %v1529
  %v1532 = vsel %vm164, %v141, 4286644096
  %v1534 = vunpack.i.l.bf16 %v1532
  %v1535 = vunpack.i.h.bf16 %v1532
  %v1536 = vmax.f32 %v1534, %v1535
  %v1537 = vrot.slane %v1536, 4
  %v1538 = vmax.f32 %v1536, %v1537
  %v1539 = vrot.slane %v1538, 2
  %v1540 = vmax.f32 %v1538, %v1539
  %v1541 = vrot.slane %v1540, 1
  %v1542 = vmax.f32 %v1540, %v1541
  %v1543 = vpack.i.bf16 %v1542, %v1542
  %v1545 = vsel %vm164, %v142, 4286644096
  %v1547 = vunpack.i.l.bf16 %v1545
  %v1548 = vunpack.i.h.bf16 %v1545
  %v1549 = vmax.f32 %v1547, %v1548
  %v1550 = vrot.slane %v1549, 4
  %v1551 = vmax.f32 %v1549, %v1550
  %v1552 = vrot.slane %v1551, 2
  %v1553 = vmax.f32 %v1551, %v1552
  %v1554 = vrot.slane %v1553, 1
  %v1555 = vmax.f32 %v1553, %v1554
  %v1556 = vpack.i.bf16 %v1555, %v1555
  %v1558 = vsel %vm164, %v143, 4286644096
  %v1560 = vunpack.i.l.bf16 %v1558
  %v1561 = vunpack.i.h.bf16 %v1558
  %v1562 = vmax.f32 %v1560, %v1561
  %v1563 = vrot.slane %v1562, 4
  %v1564 = vmax.f32 %v1562, %v1563
  %v1565 = vrot.slane %v1564, 2
  %v1566 = vmax.f32 %v1564, %v1565
  %v1567 = vrot.slane %v1566, 1
  %v1568 = vmax.f32 %v1566, %v1567
  %v1569 = vpack.i.bf16 %v1568, %v1568
  %v1571 = vsel %vm164, %v144, 4286644096
  %v1573 = vunpack.i.l.bf16 %v1571
  %v1574 = vunpack.i.h.bf16 %v1571
  %v1575 = vmax.f32 %v1573, %v1574
  %v1576 = vrot.slane %v1575, 4
  %v1577 = vmax.f32 %v1575, %v1576
  %v1578 = vrot.slane %v1577, 2
  %v1579 = vmax.f32 %v1577, %v1578
  %v1580 = vrot.slane %v1579, 1
  %v1581 = vmax.f32 %v1579, %v1580
  %v1582 = vpack.i.bf16 %v1581, %v1581
  %v1584 = vsel %vm164, %v145, 4286644096
  %v1586 = vunpack.i.l.bf16 %v1584
  %v1587 = vunpack.i.h.bf16 %v1584
  %v1588 = vmax.f32 %v1586, %v1587
  %v1589 = vrot.slane %v1588, 4
  %v1590 = vmax.f32 %v1588, %v1589
  %v1591 = vrot.slane %v1590, 2
  %v1592 = vmax.f32 %v1590, %v1591
  %v1593 = vrot.slane %v1592, 1
  %v1594 = vmax.f32 %v1592, %v1593
  %v1595 = vpack.i.bf16 %v1594, %v1594
  %v1597 = vsel %vm164, %v146, 4286644096
  %v1599 = vunpack.i.l.bf16 %v1597
  %v1600 = vunpack.i.h.bf16 %v1597
  %v1601 = vmax.f32 %v1599, %v1600
  %v1602 = vrot.slane %v1601, 4
  %v1603 = vmax.f32 %v1601, %v1602
  %v1604 = vrot.slane %v1603, 2
  %v1605 = vmax.f32 %v1603, %v1604
  %v1606 = vrot.slane %v1605, 1
  %v1607 = vmax.f32 %v1605, %v1606
  %v1608 = vpack.i.bf16 %v1607, %v1607
  %v1610 = vsel %vm164, %v147, 4286644096
  %v1612 = vunpack.i.l.bf16 %v1610
  %v1613 = vunpack.i.h.bf16 %v1610
  %v1614 = vmax.f32 %v1612, %v1613
  %v1615 = vrot.slane %v1614, 4
  %v1616 = vmax.f32 %v1614, %v1615
  %v1617 = vrot.slane %v1616, 2
  %v1618 = vmax.f32 %v1616, %v1617
  %v1619 = vrot.slane %v1618, 1
  %v1620 = vmax.f32 %v1618, %v1619
  %v1621 = vpack.i.bf16 %v1620, %v1620
  %v1623 = vsel %vm164, %v148, 4286644096
  %v1625 = vunpack.i.l.bf16 %v1623
  %v1626 = vunpack.i.h.bf16 %v1623
  %v1627 = vmax.f32 %v1625, %v1626
  %v1628 = vrot.slane %v1627, 4
  %v1629 = vmax.f32 %v1627, %v1628
  %v1630 = vrot.slane %v1629, 2
  %v1631 = vmax.f32 %v1629, %v1630
  %v1632 = vrot.slane %v1631, 1
  %v1633 = vmax.f32 %v1631, %v1632
  %v1634 = vpack.i.bf16 %v1633, %v1633
  %v1636 = vsel %vm164, %v149, 4286644096
  %v1638 = vunpack.i.l.bf16 %v1636
  %v1639 = vunpack.i.h.bf16 %v1636
  %v1640 = vmax.f32 %v1638, %v1639
  %v1641 = vrot.slane %v1640, 4
  %v1642 = vmax.f32 %v1640, %v1641
  %v1643 = vrot.slane %v1642, 2
  %v1644 = vmax.f32 %v1642, %v1643
  %v1645 = vrot.slane %v1644, 1
  %v1646 = vmax.f32 %v1644, %v1645
  %v1647 = vpack.i.bf16 %v1646, %v1646
  %v1649 = vsel %vm164, %v150, 4286644096
  %v1651 = vunpack.i.l.bf16 %v1649
  %v1652 = vunpack.i.h.bf16 %v1649
  %v1653 = vmax.f32 %v1651, %v1652
  %v1654 = vrot.slane %v1653, 4
  %v1655 = vmax.f32 %v1653, %v1654
  %v1656 = vrot.slane %v1655, 2
  %v1657 = vmax.f32 %v1655, %v1656
  %v1658 = vrot.slane %v1657, 1
  %v1659 = vmax.f32 %v1657, %v1658
  %v1660 = vpack.i.bf16 %v1659, %v1659
  %v1662 = vsel %vm164, %v151, 4286644096
  %v1664 = vunpack.i.l.bf16 %v1662
  %v1665 = vunpack.i.h.bf16 %v1662
  %v1666 = vmax.f32 %v1664, %v1665
  %v1667 = vrot.slane %v1666, 4
  %v1668 = vmax.f32 %v1666, %v1667
  %v1669 = vrot.slane %v1668, 2
  %v1670 = vmax.f32 %v1668, %v1669
  %v1671 = vrot.slane %v1670, 1
  %v1672 = vmax.f32 %v1670, %v1671
  %v1673 = vpack.i.bf16 %v1672, %v1672
  %v1675 = vsel %vm164, %v152, 4286644096
  %v1677 = vunpack.i.l.bf16 %v1675
  %v1678 = vunpack.i.h.bf16 %v1675
  %v1679 = vmax.f32 %v1677, %v1678
  %v1680 = vrot.slane %v1679, 4
  %v1681 = vmax.f32 %v1679, %v1680
  %v1682 = vrot.slane %v1681, 2
  %v1683 = vmax.f32 %v1681, %v1682
  %v1684 = vrot.slane %v1683, 1
  %v1685 = vmax.f32 %v1683, %v1684
  %v1686 = vpack.i.bf16 %v1685, %v1685
  %v1688 = vsel %vm164, %v153, 4286644096
  %v1690 = vunpack.i.l.bf16 %v1688
  %v1691 = vunpack.i.h.bf16 %v1688
  %v1692 = vmax.f32 %v1690, %v1691
  %v1693 = vrot.slane %v1692, 4
  %v1694 = vmax.f32 %v1692, %v1693
  %v1695 = vrot.slane %v1694, 2
  %v1696 = vmax.f32 %v1694, %v1695
  %v1697 = vrot.slane %v1696, 1
  %v1698 = vmax.f32 %v1696, %v1697
  %v1699 = vpack.i.bf16 %v1698, %v1698
  %v1701 = vsel %vm164, %v154, 4286644096
  %v1703 = vunpack.i.l.bf16 %v1701
  %v1704 = vunpack.i.h.bf16 %v1701
  %v1705 = vmax.f32 %v1703, %v1704
  %v1706 = vrot.slane %v1705, 4
  %v1707 = vmax.f32 %v1705, %v1706
  %v1708 = vrot.slane %v1707, 2
  %v1709 = vmax.f32 %v1707, %v1708
  %v1710 = vrot.slane %v1709, 1
  %v1711 = vmax.f32 %v1709, %v1710
  %v1712 = vpack.i.bf16 %v1711, %v1711
  %v1714 = vsel %vm164, %v155, 4286644096
  %v1716 = vunpack.i.l.bf16 %v1714
  %v1717 = vunpack.i.h.bf16 %v1714
  %v1718 = vmax.f32 %v1716, %v1717
  %v1719 = vrot.slane %v1718, 4
  %v1720 = vmax.f32 %v1718, %v1719
  %v1721 = vrot.slane %v1720, 2
  %v1722 = vmax.f32 %v1720, %v1721
  %v1723 = vrot.slane %v1722, 1
  %v1724 = vmax.f32 %v1722, %v1723
  %v1725 = vpack.i.bf16 %v1724, %v1724
  %v1727 = vsel %vm164, %v156, 4286644096
  %v1729 = vunpack.i.l.bf16 %v1727
  %v1730 = vunpack.i.h.bf16 %v1727
  %v1731 = vmax.f32 %v1729, %v1730
  %v1732 = vrot.slane %v1731, 4
  %v1733 = vmax.f32 %v1731, %v1732
  %v1734 = vrot.slane %v1733, 2
  %v1735 = vmax.f32 %v1733, %v1734
  %v1736 = vrot.slane %v1735, 1
  %v1737 = vmax.f32 %v1735, %v1736
  %v1738 = vpack.i.bf16 %v1737, %v1737
  %v1740 = vsel %vm164, %v157, 4286644096
  %v1742 = vunpack.i.l.bf16 %v1740
  %v1743 = vunpack.i.h.bf16 %v1740
  %v1744 = vmax.f32 %v1742, %v1743
  %v1745 = vrot.slane %v1744, 4
  %v1746 = vmax.f32 %v1744, %v1745
  %v1747 = vrot.slane %v1746, 2
  %v1748 = vmax.f32 %v1746, %v1747
  %v1749 = vrot.slane %v1748, 1
  %v1750 = vmax.f32 %v1748, %v1749
  %v1751 = vpack.i.bf16 %v1750, %v1750
  %v1753 = vsel %vm164, %v158, 4286644096
  %v1755 = vunpack.i.l.bf16 %v1753
  %v1756 = vunpack.i.h.bf16 %v1753
  %v1757 = vmax.f32 %v1755, %v1756
  %v1758 = vrot.slane %v1757, 4
  %v1759 = vmax.f32 %v1757, %v1758
  %v1760 = vrot.slane %v1759, 2
  %v1761 = vmax.f32 %v1759, %v1760
  %v1762 = vrot.slane %v1761, 1
  %v1763 = vmax.f32 %v1761, %v1762
  %v1764 = vpack.i.bf16 %v1763, %v1763
  %v1766 = vsel %vm164, %v159, 4286644096
  %v1768 = vunpack.i.l.bf16 %v1766
  %v1769 = vunpack.i.h.bf16 %v1766
  %v1770 = vmax.f32 %v1768, %v1769
  %v1771 = vrot.slane %v1770, 4
  %v1772 = vmax.f32 %v1770, %v1771
  %v1773 = vrot.slane %v1772, 2
  %v1774 = vmax.f32 %v1772, %v1773
  %v1775 = vrot.slane %v1774, 1
  %v1776 = vmax.f32 %v1774, %v1775
  %v1777 = vpack.i.bf16 %v1776, %v1776
  %v1779 = vsel %vm164, %v160, 4286644096
  %v1781 = vunpack.i.l.bf16 %v1779
  %v1782 = vunpack.i.h.bf16 %v1779
  %v1783 = vmax.f32 %v1781, %v1782
  %v1784 = vrot.slane %v1783, 4
  %v1785 = vmax.f32 %v1783, %v1784
  %v1786 = vrot.slane %v1785, 2
  %v1787 = vmax.f32 %v1785, %v1786
  %v1788 = vrot.slane %v1787, 1
  %v1789 = vmax.f32 %v1787, %v1788
  %v1790 = vpack.i.bf16 %v1789, %v1789
  %v1792 = vsel %vm164, %v161, 4286644096
  %v1794 = vunpack.i.l.bf16 %v1792
  %v1795 = vunpack.i.h.bf16 %v1792
  %v1796 = vmax.f32 %v1794, %v1795
  %v1797 = vrot.slane %v1796, 4
  %v1798 = vmax.f32 %v1796, %v1797
  %v1799 = vrot.slane %v1798, 2
  %v1800 = vmax.f32 %v1798, %v1799
  %v1801 = vrot.slane %v1800, 1
  %v1802 = vmax.f32 %v1800, %v1801
  %v1803 = vpack.i.bf16 %v1802, %v1802
  %v1805 = vsel %vm164, %v162, 4286644096
  %v1807 = vunpack.i.l.bf16 %v1805
  %v1808 = vunpack.i.h.bf16 %v1805
  %v1809 = vmax.f32 %v1807, %v1808
  %v1810 = vrot.slane %v1809, 4
  %v1811 = vmax.f32 %v1809, %v1810
  %v1812 = vrot.slane %v1811, 2
  %v1813 = vmax.f32 %v1811, %v1812
  %v1814 = vrot.slane %v1813, 1
  %v1815 = vmax.f32 %v1813, %v1814
  %v1816 = vpack.i.bf16 %v1815, %v1815
  %v1818 = vsel %vm164, %v163, 4286644096
  %v1820 = vunpack.i.l.bf16 %v1818
  %v1821 = vunpack.i.h.bf16 %v1818
  %v1822 = vmax.f32 %v1820, %v1821
  %v1823 = vrot.slane %v1822, 4
  %v1824 = vmax.f32 %v1822, %v1823
  %v1825 = vrot.slane %v1824, 2
  %v1826 = vmax.f32 %v1824, %v1825
  %v1827 = vrot.slane %v1826, 1
  %v1828 = vmax.f32 %v1826, %v1827
  %v1829 = vpack.i.bf16 %v1828, %v1828
  %v1830 = vld [vmem:[%s1] sm:$0xf]
  %v1831 = vld [vmem:[%s1 + $0x4] sm:$0xf]
  %v1832 = vld [vmem:[%s1 + $0x8] sm:$0xf]
  %v1833 = vld [vmem:[%s1 + $0xc] sm:$0xf]
  %v1834 = vld [vmem:[%s1 + $0x10] sm:$0xf]
  %v1835 = vld [vmem:[%s1 + $0x14] sm:$0xf]
  %v1836 = vld [vmem:[%s1 + $0x18] sm:$0xf]
  %v1837 = vld [vmem:[%s1 + $0x1c] sm:$0xf]
  %v1838 = vld [vmem:[%s1 + $0x20] sm:$0xf]
  %v1839 = vld [vmem:[%s1 + $0x24] sm:$0xf]
  %v1840 = vld [vmem:[%s1 + $0x28] sm:$0xf]
  %v1841 = vld [vmem:[%s1 + $0x2c] sm:$0xf]
  %v1842 = vld [vmem:[%s1 + $0x30] sm:$0xf]
  %v1843 = vld [vmem:[%s1 + $0x34] sm:$0xf]
  %v1844 = vld [vmem:[%s1 + $0x38] sm:$0xf]
  %v1845 = vld [vmem:[%s1 + $0x3c] sm:$0xf]
  %v1846 = vld [vmem:[%s1 + $0x40] sm:$0xf]
  %v1847 = vld [vmem:[%s1 + $0x44] sm:$0xf]
  %v1848 = vld [vmem:[%s1 + $0x48] sm:$0xf]
  %v1849 = vld [vmem:[%s1 + $0x4c] sm:$0xf]
  %v1850 = vld [vmem:[%s1 + $0x50] sm:$0xf]
  %v1851 = vld [vmem:[%s1 + $0x54] sm:$0xf]
  %v1852 = vld [vmem:[%s1 + $0x58] sm:$0xf]
  %v1853 = vld [vmem:[%s1 + $0x5c] sm:$0xf]
  %v1854 = vld [vmem:[%s1 + $0x60] sm:$0xf]
  %v1855 = vld [vmem:[%s1 + $0x64] sm:$0xf]
  %v1856 = vld [vmem:[%s1 + $0x68] sm:$0xf]
  %v1857 = vld [vmem:[%s1 + $0x6c] sm:$0xf]
  %v1858 = vld [vmem:[%s1 + $0x70] sm:$0xf]
  %v1859 = vld [vmem:[%s1 + $0x74] sm:$0xf]
  %v1860 = vld [vmem:[%s1 + $0x78] sm:$0xf]
  %v1861 = vld [vmem:[%s1 + $0x7c] sm:$0xf]
  %v1862 = vld [vmem:[%s1 + $0x80] sm:$0xf]
  %v1863 = vld [vmem:[%s1 + $0x84] sm:$0xf]
  %v1864 = vld [vmem:[%s1 + $0x88] sm:$0xf]
  %v1865 = vld [vmem:[%s1 + $0x8c] sm:$0xf]
  %v1866 = vld [vmem:[%s1 + $0x90] sm:$0xf]
  %v1867 = vld [vmem:[%s1 + $0x94] sm:$0xf]
  %v1868 = vld [vmem:[%s1 + $0x98] sm:$0xf]
  %v1869 = vld [vmem:[%s1 + $0x9c] sm:$0xf]
  %v1870 = vld [vmem:[%s1 + $0xa0] sm:$0xf]
  %v1871 = vld [vmem:[%s1 + $0xa4] sm:$0xf]
  %v1872 = vld [vmem:[%s1 + $0xa8] sm:$0xf]
  %v1873 = vld [vmem:[%s1 + $0xac] sm:$0xf]
  %v1874 = vld [vmem:[%s1 + $0xb0] sm:$0xf]
  %v1875 = vld [vmem:[%s1 + $0xb4] sm:$0xf]
  %v1876 = vld [vmem:[%s1 + $0xb8] sm:$0xf]
  %v1877 = vld [vmem:[%s1 + $0xbc] sm:$0xf]
  %v1878 = vld [vmem:[%s1 + $0xc0] sm:$0xf]
  %v1879 = vld [vmem:[%s1 + $0xc4] sm:$0xf]
  %v1880 = vld [vmem:[%s1 + $0xc8] sm:$0xf]
  %v1881 = vld [vmem:[%s1 + $0xcc] sm:$0xf]
  %v1882 = vld [vmem:[%s1 + $0xd0] sm:$0xf]
  %v1883 = vld [vmem:[%s1 + $0xd4] sm:$0xf]
  %v1884 = vld [vmem:[%s1 + $0xd8] sm:$0xf]
  %v1885 = vld [vmem:[%s1 + $0xdc] sm:$0xf]
  %v1886 = vld [vmem:[%s1 + $0xe0] sm:$0xf]
  %v1887 = vld [vmem:[%s1 + $0xe4] sm:$0xf]
  %v1888 = vld [vmem:[%s1 + $0xe8] sm:$0xf]
  %v1889 = vld [vmem:[%s1 + $0xec] sm:$0xf]
  %v1890 = vld [vmem:[%s1 + $0xf0] sm:$0xf]
  %v1891 = vld [vmem:[%s1 + $0xf4] sm:$0xf]
  %v1892 = vld [vmem:[%s1 + $0xf8] sm:$0xf]
  %v1893 = vld [vmem:[%s1 + $0xfc] sm:$0xf]
  %v1894 = vld [vmem:[%s1 + $0x100] sm:$0xf]
  %v1895 = vld [vmem:[%s1 + $0x104] sm:$0xf]
  %v1896 = vld [vmem:[%s1 + $0x108] sm:$0xf]
  %v1897 = vld [vmem:[%s1 + $0x10c] sm:$0xf]
  %v1898 = vld [vmem:[%s1 + $0x110] sm:$0xf]
  %v1899 = vld [vmem:[%s1 + $0x114] sm:$0xf]
  %v1900 = vld [vmem:[%s1 + $0x118] sm:$0xf]
  %v1901 = vld [vmem:[%s1 + $0x11c] sm:$0xf]
  %v1902 = vld [vmem:[%s1 + $0x120] sm:$0xf]
  %v1903 = vld [vmem:[%s1 + $0x124] sm:$0xf]
  %v1904 = vld [vmem:[%s1 + $0x128] sm:$0xf]
  %v1905 = vld [vmem:[%s1 + $0x12c] sm:$0xf]
  %v1906 = vld [vmem:[%s1 + $0x130] sm:$0xf]
  %v1907 = vld [vmem:[%s1 + $0x134] sm:$0xf]
  %v1908 = vld [vmem:[%s1 + $0x138] sm:$0xf]
  %v1909 = vld [vmem:[%s1 + $0x13c] sm:$0xf]
  %v1910 = vld [vmem:[%s1 + $0x140] sm:$0xf]
  %v1911 = vld [vmem:[%s1 + $0x144] sm:$0xf]
  %v1912 = vld [vmem:[%s1 + $0x148] sm:$0xf]
  %v1913 = vld [vmem:[%s1 + $0x14c] sm:$0xf]
  %v1914 = vld [vmem:[%s1 + $0x150] sm:$0xf]
  %v1915 = vld [vmem:[%s1 + $0x154] sm:$0xf]
  %v1916 = vld [vmem:[%s1 + $0x158] sm:$0xf]
  %v1917 = vld [vmem:[%s1 + $0x15c] sm:$0xf]
  %v1918 = vld [vmem:[%s1 + $0x160] sm:$0xf]
  %v1919 = vld [vmem:[%s1 + $0x164] sm:$0xf]
  %v1920 = vld [vmem:[%s1 + $0x168] sm:$0xf]
  %v1921 = vld [vmem:[%s1 + $0x16c] sm:$0xf]
  %v1922 = vld [vmem:[%s1 + $0x170] sm:$0xf]
  %v1923 = vld [vmem:[%s1 + $0x174] sm:$0xf]
  %v1924 = vld [vmem:[%s1 + $0x178] sm:$0xf]
  %v1925 = vld [vmem:[%s1 + $0x17c] sm:$0xf]
  %v1926 = vld [vmem:[%s1 + $0x180] sm:$0xf]
  %v1927 = vld [vmem:[%s1 + $0x184] sm:$0xf]
  %v1928 = vld [vmem:[%s1 + $0x188] sm:$0xf]
  %v1929 = vld [vmem:[%s1 + $0x18c] sm:$0xf]
  %v1930 = vld [vmem:[%s1 + $0x190] sm:$0xf]
  %v1931 = vld [vmem:[%s1 + $0x194] sm:$0xf]
  %v1932 = vld [vmem:[%s1 + $0x198] sm:$0xf]
  %v1933 = vld [vmem:[%s1 + $0x19c] sm:$0xf]
  %v1934 = vld [vmem:[%s1 + $0x1a0] sm:$0xf]
  %v1935 = vld [vmem:[%s1 + $0x1a4] sm:$0xf]
  %v1936 = vld [vmem:[%s1 + $0x1a8] sm:$0xf]
  %v1937 = vld [vmem:[%s1 + $0x1ac] sm:$0xf]
  %v1938 = vld [vmem:[%s1 + $0x1b0] sm:$0xf]
  %v1939 = vld [vmem:[%s1 + $0x1b4] sm:$0xf]
  %v1940 = vld [vmem:[%s1 + $0x1b8] sm:$0xf]
  %v1941 = vld [vmem:[%s1 + $0x1bc] sm:$0xf]
  %v1942 = vld [vmem:[%s1 + $0x1c0] sm:$0xf]
  %v1943 = vld [vmem:[%s1 + $0x1c4] sm:$0xf]
  %v1944 = vld [vmem:[%s1 + $0x1c8] sm:$0xf]
  %v1945 = vld [vmem:[%s1 + $0x1cc] sm:$0xf]
  %v1946 = vld [vmem:[%s1 + $0x1d0] sm:$0xf]
  %v1947 = vld [vmem:[%s1 + $0x1d4] sm:$0xf]
  %v1948 = vld [vmem:[%s1 + $0x1d8] sm:$0xf]
  %v1949 = vld [vmem:[%s1 + $0x1dc] sm:$0xf]
  %v1950 = vld [vmem:[%s1 + $0x1e0] sm:$0xf]
  %v1951 = vld [vmem:[%s1 + $0x1e4] sm:$0xf]
  %v1952 = vld [vmem:[%s1 + $0x1e8] sm:$0xf]
  %v1953 = vld [vmem:[%s1 + $0x1ec] sm:$0xf]
  %v1954 = vld [vmem:[%s1 + $0x1f0] sm:$0xf]
  %v1955 = vld [vmem:[%s1 + $0x1f4] sm:$0xf]
  %v1956 = vld [vmem:[%s1 + $0x1f8] sm:$0xf]
  %v1957 = vld [vmem:[%s1 + $0x1fc] sm:$0xf]
  %v1959 = vsel %vm164, %v1830, 4286644096
  %v1961 = vunpack.i.l.bf16 %v1959
  %v1962 = vunpack.i.h.bf16 %v1959
  %v1963 = vmax.f32 %v1961, %v1962
  %v1964 = vrot.slane %v1963, 4
  %v1965 = vmax.f32 %v1963, %v1964
  %v1966 = vrot.slane %v1965, 2
  %v1967 = vmax.f32 %v1965, %v1966
  %v1968 = vrot.slane %v1967, 1
  %v1969 = vmax.f32 %v1967, %v1968
  %v1970 = vpack.i.bf16 %v1969, %v1969
  %v1972 = vsel %vm164, %v1831, 4286644096
  %v1974 = vunpack.i.l.bf16 %v1972
  %v1975 = vunpack.i.h.bf16 %v1972
  %v1976 = vmax.f32 %v1974, %v1975
  %v1977 = vrot.slane %v1976, 4
  %v1978 = vmax.f32 %v1976, %v1977
  %v1979 = vrot.slane %v1978, 2
  %v1980 = vmax.f32 %v1978, %v1979
  %v1981 = vrot.slane %v1980, 1
  %v1982 = vmax.f32 %v1980, %v1981
  %v1983 = vpack.i.bf16 %v1982, %v1982
  %v1985 = vsel %vm164, %v1832, 4286644096
  %v1987 = vunpack.i.l.bf16 %v1985
  %v1988 = vunpack.i.h.bf16 %v1985
  %v1989 = vmax.f32 %v1987, %v1988
  %v1990 = vrot.slane %v1989, 4
  %v1991 = vmax.f32 %v1989, %v1990
  %v1992 = vrot.slane %v1991, 2
  %v1993 = vmax.f32 %v1991, %v1992
  %v1994 = vrot.slane %v1993, 1
  %v1995 = vmax.f32 %v1993, %v1994
  %v1996 = vpack.i.bf16 %v1995, %v1995
  %v1998 = vsel %vm164, %v1833, 4286644096
  %v2000 = vunpack.i.l.bf16 %v1998
  %v2001 = vunpack.i.h.bf16 %v1998
  %v2002 = vmax.f32 %v2000, %v2001
  %v2003 = vrot.slane %v2002, 4
  %v2004 = vmax.f32 %v2002, %v2003
  %v2005 = vrot.slane %v2004, 2
  %v2006 = vmax.f32 %v2004, %v2005
  %v2007 = vrot.slane %v2006, 1
  %v2008 = vmax.f32 %v2006, %v2007
  %v2009 = vpack.i.bf16 %v2008, %v2008
  %v2011 = vsel %vm164, %v1834, 4286644096
  %v2013 = vunpack.i.l.bf16 %v2011
  %v2014 = vunpack.i.h.bf16 %v2011
  %v2015 = vmax.f32 %v2013, %v2014
  %v2016 = vrot.slane %v2015, 4
  %v2017 = vmax.f32 %v2015, %v2016
  %v2018 = vrot.slane %v2017, 2
  %v2019 = vmax.f32 %v2017, %v2018
  %v2020 = vrot.slane %v2019, 1
  %v2021 = vmax.f32 %v2019, %v2020
  %v2022 = vpack.i.bf16 %v2021, %v2021
  %v2024 = vsel %vm164, %v1835, 4286644096
  %v2026 = vunpack.i.l.bf16 %v2024
  %v2027 = vunpack.i.h.bf16 %v2024
  %v2028 = vmax.f32 %v2026, %v2027
  %v2029 = vrot.slane %v2028, 4
  %v2030 = vmax.f32 %v2028, %v2029
  %v2031 = vrot.slane %v2030, 2
  %v2032 = vmax.f32 %v2030, %v2031
  %v2033 = vrot.slane %v2032, 1
  %v2034 = vmax.f32 %v2032, %v2033
  %v2035 = vpack.i.bf16 %v2034, %v2034
  %v2037 = vsel %vm164, %v1836, 4286644096
  %v2039 = vunpack.i.l.bf16 %v2037
  %v2040 = vunpack.i.h.bf16 %v2037
  %v2041 = vmax.f32 %v2039, %v2040
  %v2042 = vrot.slane %v2041, 4
  %v2043 = vmax.f32 %v2041, %v2042
  %v2044 = vrot.slane %v2043, 2
  %v2045 = vmax.f32 %v2043, %v2044
  %v2046 = vrot.slane %v2045, 1
  %v2047 = vmax.f32 %v2045, %v2046
  %v2048 = vpack.i.bf16 %v2047, %v2047
  %v2050 = vsel %vm164, %v1837, 4286644096
  %v2052 = vunpack.i.l.bf16 %v2050
  %v2053 = vunpack.i.h.bf16 %v2050
  %v2054 = vmax.f32 %v2052, %v2053
  %v2055 = vrot.slane %v2054, 4
  %v2056 = vmax.f32 %v2054, %v2055
  %v2057 = vrot.slane %v2056, 2
  %v2058 = vmax.f32 %v2056, %v2057
  %v2059 = vrot.slane %v2058, 1
  %v2060 = vmax.f32 %v2058, %v2059
  %v2061 = vpack.i.bf16 %v2060, %v2060
  %v2063 = vsel %vm164, %v1838, 4286644096
  %v2065 = vunpack.i.l.bf16 %v2063
  %v2066 = vunpack.i.h.bf16 %v2063
  %v2067 = vmax.f32 %v2065, %v2066
  %v2068 = vrot.slane %v2067, 4
  %v2069 = vmax.f32 %v2067, %v2068
  %v2070 = vrot.slane %v2069, 2
  %v2071 = vmax.f32 %v2069, %v2070
  %v2072 = vrot.slane %v2071, 1
  %v2073 = vmax.f32 %v2071, %v2072
  %v2074 = vpack.i.bf16 %v2073, %v2073
  %v2076 = vsel %vm164, %v1839, 4286644096
  %v2078 = vunpack.i.l.bf16 %v2076
  %v2079 = vunpack.i.h.bf16 %v2076
  %v2080 = vmax.f32 %v2078, %v2079
  %v2081 = vrot.slane %v2080, 4
  %v2082 = vmax.f32 %v2080, %v2081
  %v2083 = vrot.slane %v2082, 2
  %v2084 = vmax.f32 %v2082, %v2083
  %v2085 = vrot.slane %v2084, 1
  %v2086 = vmax.f32 %v2084, %v2085
  %v2087 = vpack.i.bf16 %v2086, %v2086
  %v2089 = vsel %vm164, %v1840, 4286644096
  %v2091 = vunpack.i.l.bf16 %v2089
  %v2092 = vunpack.i.h.bf16 %v2089
  %v2093 = vmax.f32 %v2091, %v2092
  %v2094 = vrot.slane %v2093, 4
  %v2095 = vmax.f32 %v2093, %v2094
  %v2096 = vrot.slane %v2095, 2
  %v2097 = vmax.f32 %v2095, %v2096
  %v2098 = vrot.slane %v2097, 1
  %v2099 = vmax.f32 %v2097, %v2098
  %v2100 = vpack.i.bf16 %v2099, %v2099
  %v2102 = vsel %vm164, %v1841, 4286644096
  %v2104 = vunpack.i.l.bf16 %v2102
  %v2105 = vunpack.i.h.bf16 %v2102
  %v2106 = vmax.f32 %v2104, %v2105
  %v2107 = vrot.slane %v2106, 4
  %v2108 = vmax.f32 %v2106, %v2107
  %v2109 = vrot.slane %v2108, 2
  %v2110 = vmax.f32 %v2108, %v2109
  %v2111 = vrot.slane %v2110, 1
  %v2112 = vmax.f32 %v2110, %v2111
  %v2113 = vpack.i.bf16 %v2112, %v2112
  %v2115 = vsel %vm164, %v1842, 4286644096
  %v2117 = vunpack.i.l.bf16 %v2115
  %v2118 = vunpack.i.h.bf16 %v2115
  %v2119 = vmax.f32 %v2117, %v2118
  %v2120 = vrot.slane %v2119, 4
  %v2121 = vmax.f32 %v2119, %v2120
  %v2122 = vrot.slane %v2121, 2
  %v2123 = vmax.f32 %v2121, %v2122
  %v2124 = vrot.slane %v2123, 1
  %v2125 = vmax.f32 %v2123, %v2124
  %v2126 = vpack.i.bf16 %v2125, %v2125
  %v2128 = vsel %vm164, %v1843, 4286644096
  %v2130 = vunpack.i.l.bf16 %v2128
  %v2131 = vunpack.i.h.bf16 %v2128
  %v2132 = vmax.f32 %v2130, %v2131
  %v2133 = vrot.slane %v2132, 4
  %v2134 = vmax.f32 %v2132, %v2133
  %v2135 = vrot.slane %v2134, 2
  %v2136 = vmax.f32 %v2134, %v2135
  %v2137 = vrot.slane %v2136, 1
  %v2138 = vmax.f32 %v2136, %v2137
  %v2139 = vpack.i.bf16 %v2138, %v2138
  %v2141 = vsel %vm164, %v1844, 4286644096
  %v2143 = vunpack.i.l.bf16 %v2141
  %v2144 = vunpack.i.h.bf16 %v2141
  %v2145 = vmax.f32 %v2143, %v2144
  %v2146 = vrot.slane %v2145, 4
  %v2147 = vmax.f32 %v2145, %v2146
  %v2148 = vrot.slane %v2147, 2
  %v2149 = vmax.f32 %v2147, %v2148
  %v2150 = vrot.slane %v2149, 1
  %v2151 = vmax.f32 %v2149, %v2150
  %v2152 = vpack.i.bf16 %v2151, %v2151
  %v2154 = vsel %vm164, %v1845, 4286644096
  %v2156 = vunpack.i.l.bf16 %v2154
  %v2157 = vunpack.i.h.bf16 %v2154
  %v2158 = vmax.f32 %v2156, %v2157
  %v2159 = vrot.slane %v2158, 4
  %v2160 = vmax.f32 %v2158, %v2159
  %v2161 = vrot.slane %v2160, 2
  %v2162 = vmax.f32 %v2160, %v2161
  %v2163 = vrot.slane %v2162, 1
  %v2164 = vmax.f32 %v2162, %v2163
  %v2165 = vpack.i.bf16 %v2164, %v2164
  %v2167 = vsel %vm164, %v1846, 4286644096
  %v2169 = vunpack.i.l.bf16 %v2167
  %v2170 = vunpack.i.h.bf16 %v2167
  %v2171 = vmax.f32 %v2169, %v2170
  %v2172 = vrot.slane %v2171, 4
  %v2173 = vmax.f32 %v2171, %v2172
  %v2174 = vrot.slane %v2173, 2
  %v2175 = vmax.f32 %v2173, %v2174
  %v2176 = vrot.slane %v2175, 1
  %v2177 = vmax.f32 %v2175, %v2176
  %v2178 = vpack.i.bf16 %v2177, %v2177
  %v2180 = vsel %vm164, %v1847, 4286644096
  %v2182 = vunpack.i.l.bf16 %v2180
  %v2183 = vunpack.i.h.bf16 %v2180
  %v2184 = vmax.f32 %v2182, %v2183
  %v2185 = vrot.slane %v2184, 4
  %v2186 = vmax.f32 %v2184, %v2185
  %v2187 = vrot.slane %v2186, 2
  %v2188 = vmax.f32 %v2186, %v2187
  %v2189 = vrot.slane %v2188, 1
  %v2190 = vmax.f32 %v2188, %v2189
  %v2191 = vpack.i.bf16 %v2190, %v2190
  %v2193 = vsel %vm164, %v1848, 4286644096
  %v2195 = vunpack.i.l.bf16 %v2193
  %v2196 = vunpack.i.h.bf16 %v2193
  %v2197 = vmax.f32 %v2195, %v2196
  %v2198 = vrot.slane %v2197, 4
  %v2199 = vmax.f32 %v2197, %v2198
  %v2200 = vrot.slane %v2199, 2
  %v2201 = vmax.f32 %v2199, %v2200
  %v2202 = vrot.slane %v2201, 1
  %v2203 = vmax.f32 %v2201, %v2202
  %v2204 = vpack.i.bf16 %v2203, %v2203
  %v2206 = vsel %vm164, %v1849, 4286644096
  %v2208 = vunpack.i.l.bf16 %v2206
  %v2209 = vunpack.i.h.bf16 %v2206
  %v2210 = vmax.f32 %v2208, %v2209
  %v2211 = vrot.slane %v2210, 4
  %v2212 = vmax.f32 %v2210, %v2211
  %v2213 = vrot.slane %v2212, 2
  %v2214 = vmax.f32 %v2212, %v2213
  %v2215 = vrot.slane %v2214, 1
  %v2216 = vmax.f32 %v2214, %v2215
  %v2217 = vpack.i.bf16 %v2216, %v2216
  %v2219 = vsel %vm164, %v1850, 4286644096
  %v2221 = vunpack.i.l.bf16 %v2219
  %v2222 = vunpack.i.h.bf16 %v2219
  %v2223 = vmax.f32 %v2221, %v2222
  %v2224 = vrot.slane %v2223, 4
  %v2225 = vmax.f32 %v2223, %v2224
  %v2226 = vrot.slane %v2225, 2
  %v2227 = vmax.f32 %v2225, %v2226
  %v2228 = vrot.slane %v2227, 1
  %v2229 = vmax.f32 %v2227, %v2228
  %v2230 = vpack.i.bf16 %v2229, %v2229
  %v2232 = vsel %vm164, %v1851, 4286644096
  %v2234 = vunpack.i.l.bf16 %v2232
  %v2235 = vunpack.i.h.bf16 %v2232
  %v2236 = vmax.f32 %v2234, %v2235
  %v2237 = vrot.slane %v2236, 4
  %v2238 = vmax.f32 %v2236, %v2237
  %v2239 = vrot.slane %v2238, 2
  %v2240 = vmax.f32 %v2238, %v2239
  %v2241 = vrot.slane %v2240, 1
  %v2242 = vmax.f32 %v2240, %v2241
  %v2243 = vpack.i.bf16 %v2242, %v2242
  %v2245 = vsel %vm164, %v1852, 4286644096
  %v2247 = vunpack.i.l.bf16 %v2245
  %v2248 = vunpack.i.h.bf16 %v2245
  %v2249 = vmax.f32 %v2247, %v2248
  %v2250 = vrot.slane %v2249, 4
  %v2251 = vmax.f32 %v2249, %v2250
  %v2252 = vrot.slane %v2251, 2
  %v2253 = vmax.f32 %v2251, %v2252
  %v2254 = vrot.slane %v2253, 1
  %v2255 = vmax.f32 %v2253, %v2254
  %v2256 = vpack.i.bf16 %v2255, %v2255
  %v2258 = vsel %vm164, %v1853, 4286644096
  %v2260 = vunpack.i.l.bf16 %v2258
  %v2261 = vunpack.i.h.bf16 %v2258
  %v2262 = vmax.f32 %v2260, %v2261
  %v2263 = vrot.slane %v2262, 4
  %v2264 = vmax.f32 %v2262, %v2263
  %v2265 = vrot.slane %v2264, 2
  %v2266 = vmax.f32 %v2264, %v2265
  %v2267 = vrot.slane %v2266, 1
  %v2268 = vmax.f32 %v2266, %v2267
  %v2269 = vpack.i.bf16 %v2268, %v2268
  %v2271 = vsel %vm164, %v1854, 4286644096
  %v2273 = vunpack.i.l.bf16 %v2271
  %v2274 = vunpack.i.h.bf16 %v2271
  %v2275 = vmax.f32 %v2273, %v2274
  %v2276 = vrot.slane %v2275, 4
  %v2277 = vmax.f32 %v2275, %v2276
  %v2278 = vrot.slane %v2277, 2
  %v2279 = vmax.f32 %v2277, %v2278
  %v2280 = vrot.slane %v2279, 1
  %v2281 = vmax.f32 %v2279, %v2280
  %v2282 = vpack.i.bf16 %v2281, %v2281
  %v2284 = vsel %vm164, %v1855, 4286644096
  %v2286 = vunpack.i.l.bf16 %v2284
  %v2287 = vunpack.i.h.bf16 %v2284
  %v2288 = vmax.f32 %v2286, %v2287
  %v2289 = vrot.slane %v2288, 4
  %v2290 = vmax.f32 %v2288, %v2289
  %v2291 = vrot.slane %v2290, 2
  %v2292 = vmax.f32 %v2290, %v2291
  %v2293 = vrot.slane %v2292, 1
  %v2294 = vmax.f32 %v2292, %v2293
  %v2295 = vpack.i.bf16 %v2294, %v2294
  %v2297 = vsel %vm164, %v1856, 4286644096
  %v2299 = vunpack.i.l.bf16 %v2297
  %v2300 = vunpack.i.h.bf16 %v2297
  %v2301 = vmax.f32 %v2299, %v2300
  %v2302 = vrot.slane %v2301, 4
  %v2303 = vmax.f32 %v2301, %v2302
  %v2304 = vrot.slane %v2303, 2
  %v2305 = vmax.f32 %v2303, %v2304
  %v2306 = vrot.slane %v2305, 1
  %v2307 = vmax.f32 %v2305, %v2306
  %v2308 = vpack.i.bf16 %v2307, %v2307
  %v2310 = vsel %vm164, %v1857, 4286644096
  %v2312 = vunpack.i.l.bf16 %v2310
  %v2313 = vunpack.i.h.bf16 %v2310
  %v2314 = vmax.f32 %v2312, %v2313
  %v2315 = vrot.slane %v2314, 4
  %v2316 = vmax.f32 %v2314, %v2315
  %v2317 = vrot.slane %v2316, 2
  %v2318 = vmax.f32 %v2316, %v2317
  %v2319 = vrot.slane %v2318, 1
  %v2320 = vmax.f32 %v2318, %v2319
  %v2321 = vpack.i.bf16 %v2320, %v2320
  %v2323 = vsel %vm164, %v1858, 4286644096
  %v2325 = vunpack.i.l.bf16 %v2323
  %v2326 = vunpack.i.h.bf16 %v2323
  %v2327 = vmax.f32 %v2325, %v2326
  %v2328 = vrot.slane %v2327, 4
  %v2329 = vmax.f32 %v2327, %v2328
  %v2330 = vrot.slane %v2329, 2
  %v2331 = vmax.f32 %v2329, %v2330
  %v2332 = vrot.slane %v2331, 1
  %v2333 = vmax.f32 %v2331, %v2332
  %v2334 = vpack.i.bf16 %v2333, %v2333
  %v2336 = vsel %vm164, %v1859, 4286644096
  %v2338 = vunpack.i.l.bf16 %v2336
  %v2339 = vunpack.i.h.bf16 %v2336
  %v2340 = vmax.f32 %v2338, %v2339
  %v2341 = vrot.slane %v2340, 4
  %v2342 = vmax.f32 %v2340, %v2341
  %v2343 = vrot.slane %v2342, 2
  %v2344 = vmax.f32 %v2342, %v2343
  %v2345 = vrot.slane %v2344, 1
  %v2346 = vmax.f32 %v2344, %v2345
  %v2347 = vpack.i.bf16 %v2346, %v2346
  %v2349 = vsel %vm164, %v1860, 4286644096
  %v2351 = vunpack.i.l.bf16 %v2349
  %v2352 = vunpack.i.h.bf16 %v2349
  %v2353 = vmax.f32 %v2351, %v2352
  %v2354 = vrot.slane %v2353, 4
  %v2355 = vmax.f32 %v2353, %v2354
  %v2356 = vrot.slane %v2355, 2
  %v2357 = vmax.f32 %v2355, %v2356
  %v2358 = vrot.slane %v2357, 1
  %v2359 = vmax.f32 %v2357, %v2358
  %v2360 = vpack.i.bf16 %v2359, %v2359
  %v2362 = vsel %vm164, %v1861, 4286644096
  %v2364 = vunpack.i.l.bf16 %v2362
  %v2365 = vunpack.i.h.bf16 %v2362
  %v2366 = vmax.f32 %v2364, %v2365
  %v2367 = vrot.slane %v2366, 4
  %v2368 = vmax.f32 %v2366, %v2367
  %v2369 = vrot.slane %v2368, 2
  %v2370 = vmax.f32 %v2368, %v2369
  %v2371 = vrot.slane %v2370, 1
  %v2372 = vmax.f32 %v2370, %v2371
  %v2373 = vpack.i.bf16 %v2372, %v2372
  %v2375 = vsel %vm164, %v1862, 4286644096
  %v2377 = vunpack.i.l.bf16 %v2375
  %v2378 = vunpack.i.h.bf16 %v2375
  %v2379 = vmax.f32 %v2377, %v2378
  %v2380 = vrot.slane %v2379, 4
  %v2381 = vmax.f32 %v2379, %v2380
  %v2382 = vrot.slane %v2381, 2
  %v2383 = vmax.f32 %v2381, %v2382
  %v2384 = vrot.slane %v2383, 1
  %v2385 = vmax.f32 %v2383, %v2384
  %v2386 = vpack.i.bf16 %v2385, %v2385
  %v2388 = vsel %vm164, %v1863, 4286644096
  %v2390 = vunpack.i.l.bf16 %v2388
  %v2391 = vunpack.i.h.bf16 %v2388
  %v2392 = vmax.f32 %v2390, %v2391
  %v2393 = vrot.slane %v2392, 4
  %v2394 = vmax.f32 %v2392, %v2393
  %v2395 = vrot.slane %v2394, 2
  %v2396 = vmax.f32 %v2394, %v2395
  %v2397 = vrot.slane %v2396, 1
  %v2398 = vmax.f32 %v2396, %v2397
  %v2399 = vpack.i.bf16 %v2398, %v2398
  %v2401 = vsel %vm164, %v1864, 4286644096
  %v2403 = vunpack.i.l.bf16 %v2401
  %v2404 = vunpack.i.h.bf16 %v2401
  %v2405 = vmax.f32 %v2403, %v2404
  %v2406 = vrot.slane %v2405, 4
  %v2407 = vmax.f32 %v2405, %v2406
  %v2408 = vrot.slane %v2407, 2
  %v2409 = vmax.f32 %v2407, %v2408
  %v2410 = vrot.slane %v2409, 1
  %v2411 = vmax.f32 %v2409, %v2410
  %v2412 = vpack.i.bf16 %v2411, %v2411
  %v2414 = vsel %vm164, %v1865, 4286644096
  %v2416 = vunpack.i.l.bf16 %v2414
  %v2417 = vunpack.i.h.bf16 %v2414
  %v2418 = vmax.f32 %v2416, %v2417
  %v2419 = vrot.slane %v2418, 4
  %v2420 = vmax.f32 %v2418, %v2419
  %v2421 = vrot.slane %v2420, 2
  %v2422 = vmax.f32 %v2420, %v2421
  %v2423 = vrot.slane %v2422, 1
  %v2424 = vmax.f32 %v2422, %v2423
  %v2425 = vpack.i.bf16 %v2424, %v2424
  %v2427 = vsel %vm164, %v1866, 4286644096
  %v2429 = vunpack.i.l.bf16 %v2427
  %v2430 = vunpack.i.h.bf16 %v2427
  %v2431 = vmax.f32 %v2429, %v2430
  %v2432 = vrot.slane %v2431, 4
  %v2433 = vmax.f32 %v2431, %v2432
  %v2434 = vrot.slane %v2433, 2
  %v2435 = vmax.f32 %v2433, %v2434
  %v2436 = vrot.slane %v2435, 1
  %v2437 = vmax.f32 %v2435, %v2436
  %v2438 = vpack.i.bf16 %v2437, %v2437
  %v2440 = vsel %vm164, %v1867, 4286644096
  %v2442 = vunpack.i.l.bf16 %v2440
  %v2443 = vunpack.i.h.bf16 %v2440
  %v2444 = vmax.f32 %v2442, %v2443
  %v2445 = vrot.slane %v2444, 4
  %v2446 = vmax.f32 %v2444, %v2445
  %v2447 = vrot.slane %v2446, 2
  %v2448 = vmax.f32 %v2446, %v2447
  %v2449 = vrot.slane %v2448, 1
  %v2450 = vmax.f32 %v2448, %v2449
  %v2451 = vpack.i.bf16 %v2450, %v2450
  %v2453 = vsel %vm164, %v1868, 4286644096
  %v2455 = vunpack.i.l.bf16 %v2453
  %v2456 = vunpack.i.h.bf16 %v2453
  %v2457 = vmax.f32 %v2455, %v2456
  %v2458 = vrot.slane %v2457, 4
  %v2459 = vmax.f32 %v2457, %v2458
  %v2460 = vrot.slane %v2459, 2
  %v2461 = vmax.f32 %v2459, %v2460
  %v2462 = vrot.slane %v2461, 1
  %v2463 = vmax.f32 %v2461, %v2462
  %v2464 = vpack.i.bf16 %v2463, %v2463
  %v2466 = vsel %vm164, %v1869, 4286644096
  %v2468 = vunpack.i.l.bf16 %v2466
  %v2469 = vunpack.i.h.bf16 %v2466
  %v2470 = vmax.f32 %v2468, %v2469
  %v2471 = vrot.slane %v2470, 4
  %v2472 = vmax.f32 %v2470, %v2471
  %v2473 = vrot.slane %v2472, 2
  %v2474 = vmax.f32 %v2472, %v2473
  %v2475 = vrot.slane %v2474, 1
  %v2476 = vmax.f32 %v2474, %v2475
  %v2477 = vpack.i.bf16 %v2476, %v2476
  %v2479 = vsel %vm164, %v1870, 4286644096
  %v2481 = vunpack.i.l.bf16 %v2479
  %v2482 = vunpack.i.h.bf16 %v2479
  %v2483 = vmax.f32 %v2481, %v2482
  %v2484 = vrot.slane %v2483, 4
  %v2485 = vmax.f32 %v2483, %v2484
  %v2486 = vrot.slane %v2485, 2
  %v2487 = vmax.f32 %v2485, %v2486
  %v2488 = vrot.slane %v2487, 1
  %v2489 = vmax.f32 %v2487, %v2488
  %v2490 = vpack.i.bf16 %v2489, %v2489
  %v2492 = vsel %vm164, %v1871, 4286644096
  %v2494 = vunpack.i.l.bf16 %v2492
  %v2495 = vunpack.i.h.bf16 %v2492
  %v2496 = vmax.f32 %v2494, %v2495
  %v2497 = vrot.slane %v2496, 4
  %v2498 = vmax.f32 %v2496, %v2497
  %v2499 = vrot.slane %v2498, 2
  %v2500 = vmax.f32 %v2498, %v2499
  %v2501 = vrot.slane %v2500, 1
  %v2502 = vmax.f32 %v2500, %v2501
  %v2503 = vpack.i.bf16 %v2502, %v2502
  %v2505 = vsel %vm164, %v1872, 4286644096
  %v2507 = vunpack.i.l.bf16 %v2505
  %v2508 = vunpack.i.h.bf16 %v2505
  %v2509 = vmax.f32 %v2507, %v2508
  %v2510 = vrot.slane %v2509, 4
  %v2511 = vmax.f32 %v2509, %v2510
  %v2512 = vrot.slane %v2511, 2
  %v2513 = vmax.f32 %v2511, %v2512
  %v2514 = vrot.slane %v2513, 1
  %v2515 = vmax.f32 %v2513, %v2514
  %v2516 = vpack.i.bf16 %v2515, %v2515
  %v2518 = vsel %vm164, %v1873, 4286644096
  %v2520 = vunpack.i.l.bf16 %v2518
  %v2521 = vunpack.i.h.bf16 %v2518
  %v2522 = vmax.f32 %v2520, %v2521
  %v2523 = vrot.slane %v2522, 4
  %v2524 = vmax.f32 %v2522, %v2523
  %v2525 = vrot.slane %v2524, 2
  %v2526 = vmax.f32 %v2524, %v2525
  %v2527 = vrot.slane %v2526, 1
  %v2528 = vmax.f32 %v2526, %v2527
  %v2529 = vpack.i.bf16 %v2528, %v2528
  %v2531 = vsel %vm164, %v1874, 4286644096
  %v2533 = vunpack.i.l.bf16 %v2531
  %v2534 = vunpack.i.h.bf16 %v2531
  %v2535 = vmax.f32 %v2533, %v2534
  %v2536 = vrot.slane %v2535, 4
  %v2537 = vmax.f32 %v2535, %v2536
  %v2538 = vrot.slane %v2537, 2
  %v2539 = vmax.f32 %v2537, %v2538
  %v2540 = vrot.slane %v2539, 1
  %v2541 = vmax.f32 %v2539, %v2540
  %v2542 = vpack.i.bf16 %v2541, %v2541
  %v2544 = vsel %vm164, %v1875, 4286644096
  %v2546 = vunpack.i.l.bf16 %v2544
  %v2547 = vunpack.i.h.bf16 %v2544
  %v2548 = vmax.f32 %v2546, %v2547
  %v2549 = vrot.slane %v2548, 4
  %v2550 = vmax.f32 %v2548, %v2549
  %v2551 = vrot.slane %v2550, 2
  %v2552 = vmax.f32 %v2550, %v2551
  %v2553 = vrot.slane %v2552, 1
  %v2554 = vmax.f32 %v2552, %v2553
  %v2555 = vpack.i.bf16 %v2554, %v2554
  %v2557 = vsel %vm164, %v1876, 4286644096
  %v2559 = vunpack.i.l.bf16 %v2557
  %v2560 = vunpack.i.h.bf16 %v2557
  %v2561 = vmax.f32 %v2559, %v2560
  %v2562 = vrot.slane %v2561, 4
  %v2563 = vmax.f32 %v2561, %v2562
  %v2564 = vrot.slane %v2563, 2
  %v2565 = vmax.f32 %v2563, %v2564
  %v2566 = vrot.slane %v2565, 1
  %v2567 = vmax.f32 %v2565, %v2566
  %v2568 = vpack.i.bf16 %v2567, %v2567
  %v2570 = vsel %vm164, %v1877, 4286644096
  %v2572 = vunpack.i.l.bf16 %v2570
  %v2573 = vunpack.i.h.bf16 %v2570
  %v2574 = vmax.f32 %v2572, %v2573
  %v2575 = vrot.slane %v2574, 4
  %v2576 = vmax.f32 %v2574, %v2575
  %v2577 = vrot.slane %v2576, 2
  %v2578 = vmax.f32 %v2576, %v2577
  %v2579 = vrot.slane %v2578, 1
  %v2580 = vmax.f32 %v2578, %v2579
  %v2581 = vpack.i.bf16 %v2580, %v2580
  %v2583 = vsel %vm164, %v1878, 4286644096
  %v2585 = vunpack.i.l.bf16 %v2583
  %v2586 = vunpack.i.h.bf16 %v2583
  %v2587 = vmax.f32 %v2585, %v2586
  %v2588 = vrot.slane %v2587, 4
  %v2589 = vmax.f32 %v2587, %v2588
  %v2590 = vrot.slane %v2589, 2
  %v2591 = vmax.f32 %v2589, %v2590
  %v2592 = vrot.slane %v2591, 1
  %v2593 = vmax.f32 %v2591, %v2592
  %v2594 = vpack.i.bf16 %v2593, %v2593
  %v2596 = vsel %vm164, %v1879, 4286644096
  %v2598 = vunpack.i.l.bf16 %v2596
  %v2599 = vunpack.i.h.bf16 %v2596
  %v2600 = vmax.f32 %v2598, %v2599
  %v2601 = vrot.slane %v2600, 4
  %v2602 = vmax.f32 %v2600, %v2601
  %v2603 = vrot.slane %v2602, 2
  %v2604 = vmax.f32 %v2602, %v2603
  %v2605 = vrot.slane %v2604, 1
  %v2606 = vmax.f32 %v2604, %v2605
  %v2607 = vpack.i.bf16 %v2606, %v2606
  %v2609 = vsel %vm164, %v1880, 4286644096
  %v2611 = vunpack.i.l.bf16 %v2609
  %v2612 = vunpack.i.h.bf16 %v2609
  %v2613 = vmax.f32 %v2611, %v2612
  %v2614 = vrot.slane %v2613, 4
  %v2615 = vmax.f32 %v2613, %v2614
  %v2616 = vrot.slane %v2615, 2
  %v2617 = vmax.f32 %v2615, %v2616
  %v2618 = vrot.slane %v2617, 1
  %v2619 = vmax.f32 %v2617, %v2618
  %v2620 = vpack.i.bf16 %v2619, %v2619
  %v2622 = vsel %vm164, %v1881, 4286644096
  %v2624 = vunpack.i.l.bf16 %v2622
  %v2625 = vunpack.i.h.bf16 %v2622
  %v2626 = vmax.f32 %v2624, %v2625
  %v2627 = vrot.slane %v2626, 4
  %v2628 = vmax.f32 %v2626, %v2627
  %v2629 = vrot.slane %v2628, 2
  %v2630 = vmax.f32 %v2628, %v2629
  %v2631 = vrot.slane %v2630, 1
  %v2632 = vmax.f32 %v2630, %v2631
  %v2633 = vpack.i.bf16 %v2632, %v2632
  %v2635 = vsel %vm164, %v1882, 4286644096
  %v2637 = vunpack.i.l.bf16 %v2635
  %v2638 = vunpack.i.h.bf16 %v2635
  %v2639 = vmax.f32 %v2637, %v2638
  %v2640 = vrot.slane %v2639, 4
  %v2641 = vmax.f32 %v2639, %v2640
  %v2642 = vrot.slane %v2641, 2
  %v2643 = vmax.f32 %v2641, %v2642
  %v2644 = vrot.slane %v2643, 1
  %v2645 = vmax.f32 %v2643, %v2644
  %v2646 = vpack.i.bf16 %v2645, %v2645
  %v2648 = vsel %vm164, %v1883, 4286644096
  %v2650 = vunpack.i.l.bf16 %v2648
  %v2651 = vunpack.i.h.bf16 %v2648
  %v2652 = vmax.f32 %v2650, %v2651
  %v2653 = vrot.slane %v2652, 4
  %v2654 = vmax.f32 %v2652, %v2653
  %v2655 = vrot.slane %v2654, 2
  %v2656 = vmax.f32 %v2654, %v2655
  %v2657 = vrot.slane %v2656, 1
  %v2658 = vmax.f32 %v2656, %v2657
  %v2659 = vpack.i.bf16 %v2658, %v2658
  %v2661 = vsel %vm164, %v1884, 4286644096
  %v2663 = vunpack.i.l.bf16 %v2661
  %v2664 = vunpack.i.h.bf16 %v2661
  %v2665 = vmax.f32 %v2663, %v2664
  %v2666 = vrot.slane %v2665, 4
  %v2667 = vmax.f32 %v2665, %v2666
  %v2668 = vrot.slane %v2667, 2
  %v2669 = vmax.f32 %v2667, %v2668
  %v2670 = vrot.slane %v2669, 1
  %v2671 = vmax.f32 %v2669, %v2670
  %v2672 = vpack.i.bf16 %v2671, %v2671
  %v2674 = vsel %vm164, %v1885, 4286644096
  %v2676 = vunpack.i.l.bf16 %v2674
  %v2677 = vunpack.i.h.bf16 %v2674
  %v2678 = vmax.f32 %v2676, %v2677
  %v2679 = vrot.slane %v2678, 4
  %v2680 = vmax.f32 %v2678, %v2679
  %v2681 = vrot.slane %v2680, 2
  %v2682 = vmax.f32 %v2680, %v2681
  %v2683 = vrot.slane %v2682, 1
  %v2684 = vmax.f32 %v2682, %v2683
  %v2685 = vpack.i.bf16 %v2684, %v2684
  %v2687 = vsel %vm164, %v1886, 4286644096
  %v2689 = vunpack.i.l.bf16 %v2687
  %v2690 = vunpack.i.h.bf16 %v2687
  %v2691 = vmax.f32 %v2689, %v2690
  %v2692 = vrot.slane %v2691, 4
  %v2693 = vmax.f32 %v2691, %v2692
  %v2694 = vrot.slane %v2693, 2
  %v2695 = vmax.f32 %v2693, %v2694
  %v2696 = vrot.slane %v2695, 1
  %v2697 = vmax.f32 %v2695, %v2696
  %v2698 = vpack.i.bf16 %v2697, %v2697
  %v2700 = vsel %vm164, %v1887, 4286644096
  %v2702 = vunpack.i.l.bf16 %v2700
  %v2703 = vunpack.i.h.bf16 %v2700
  %v2704 = vmax.f32 %v2702, %v2703
  %v2705 = vrot.slane %v2704, 4
  %v2706 = vmax.f32 %v2704, %v2705
  %v2707 = vrot.slane %v2706, 2
  %v2708 = vmax.f32 %v2706, %v2707
  %v2709 = vrot.slane %v2708, 1
  %v2710 = vmax.f32 %v2708, %v2709
  %v2711 = vpack.i.bf16 %v2710, %v2710
  %v2713 = vsel %vm164, %v1888, 4286644096
  %v2715 = vunpack.i.l.bf16 %v2713
  %v2716 = vunpack.i.h.bf16 %v2713
  %v2717 = vmax.f32 %v2715, %v2716
  %v2718 = vrot.slane %v2717, 4
  %v2719 = vmax.f32 %v2717, %v2718
  %v2720 = vrot.slane %v2719, 2
  %v2721 = vmax.f32 %v2719, %v2720
  %v2722 = vrot.slane %v2721, 1
  %v2723 = vmax.f32 %v2721, %v2722
  %v2724 = vpack.i.bf16 %v2723, %v2723
  %v2726 = vsel %vm164, %v1889, 4286644096
  %v2728 = vunpack.i.l.bf16 %v2726
  %v2729 = vunpack.i.h.bf16 %v2726
  %v2730 = vmax.f32 %v2728, %v2729
  %v2731 = vrot.slane %v2730, 4
  %v2732 = vmax.f32 %v2730, %v2731
  %v2733 = vrot.slane %v2732, 2
  %v2734 = vmax.f32 %v2732, %v2733
  %v2735 = vrot.slane %v2734, 1
  %v2736 = vmax.f32 %v2734, %v2735
  %v2737 = vpack.i.bf16 %v2736, %v2736
  %v2739 = vsel %vm164, %v1890, 4286644096
  %v2741 = vunpack.i.l.bf16 %v2739
  %v2742 = vunpack.i.h.bf16 %v2739
  %v2743 = vmax.f32 %v2741, %v2742
  %v2744 = vrot.slane %v2743, 4
  %v2745 = vmax.f32 %v2743, %v2744
  %v2746 = vrot.slane %v2745, 2
  %v2747 = vmax.f32 %v2745, %v2746
  %v2748 = vrot.slane %v2747, 1
  %v2749 = vmax.f32 %v2747, %v2748
  %v2750 = vpack.i.bf16 %v2749, %v2749
  %v2752 = vsel %vm164, %v1891, 4286644096
  %v2754 = vunpack.i.l.bf16 %v2752
  %v2755 = vunpack.i.h.bf16 %v2752
  %v2756 = vmax.f32 %v2754, %v2755
  %v2757 = vrot.slane %v2756, 4
  %v2758 = vmax.f32 %v2756, %v2757
  %v2759 = vrot.slane %v2758, 2
  %v2760 = vmax.f32 %v2758, %v2759
  %v2761 = vrot.slane %v2760, 1
  %v2762 = vmax.f32 %v2760, %v2761
  %v2763 = vpack.i.bf16 %v2762, %v2762
  %v2765 = vsel %vm164, %v1892, 4286644096
  %v2767 = vunpack.i.l.bf16 %v2765
  %v2768 = vunpack.i.h.bf16 %v2765
  %v2769 = vmax.f32 %v2767, %v2768
  %v2770 = vrot.slane %v2769, 4
  %v2771 = vmax.f32 %v2769, %v2770
  %v2772 = vrot.slane %v2771, 2
  %v2773 = vmax.f32 %v2771, %v2772
  %v2774 = vrot.slane %v2773, 1
  %v2775 = vmax.f32 %v2773, %v2774
  %v2776 = vpack.i.bf16 %v2775, %v2775
  %v2778 = vsel %vm164, %v1893, 4286644096
  %v2780 = vunpack.i.l.bf16 %v2778
  %v2781 = vunpack.i.h.bf16 %v2778
  %v2782 = vmax.f32 %v2780, %v2781
  %v2783 = vrot.slane %v2782, 4
  %v2784 = vmax.f32 %v2782, %v2783
  %v2785 = vrot.slane %v2784, 2
  %v2786 = vmax.f32 %v2784, %v2785
  %v2787 = vrot.slane %v2786, 1
  %v2788 = vmax.f32 %v2786, %v2787
  %v2789 = vpack.i.bf16 %v2788, %v2788
  %v2791 = vsel %vm164, %v1894, 4286644096
  %v2793 = vunpack.i.l.bf16 %v2791
  %v2794 = vunpack.i.h.bf16 %v2791
  %v2795 = vmax.f32 %v2793, %v2794
  %v2796 = vrot.slane %v2795, 4
  %v2797 = vmax.f32 %v2795, %v2796
  %v2798 = vrot.slane %v2797, 2
  %v2799 = vmax.f32 %v2797, %v2798
  %v2800 = vrot.slane %v2799, 1
  %v2801 = vmax.f32 %v2799, %v2800
  %v2802 = vpack.i.bf16 %v2801, %v2801
  %v2804 = vsel %vm164, %v1895, 4286644096
  %v2806 = vunpack.i.l.bf16 %v2804
  %v2807 = vunpack.i.h.bf16 %v2804
  %v2808 = vmax.f32 %v2806, %v2807
  %v2809 = vrot.slane %v2808, 4
  %v2810 = vmax.f32 %v2808, %v2809
  %v2811 = vrot.slane %v2810, 2
  %v2812 = vmax.f32 %v2810, %v2811
  %v2813 = vrot.slane %v2812, 1
  %v2814 = vmax.f32 %v2812, %v2813
  %v2815 = vpack.i.bf16 %v2814, %v2814
  %v2817 = vsel %vm164, %v1896, 4286644096
  %v2819 = vunpack.i.l.bf16 %v2817
  %v2820 = vunpack.i.h.bf16 %v2817
  %v2821 = vmax.f32 %v2819, %v2820
  %v2822 = vrot.slane %v2821, 4
  %v2823 = vmax.f32 %v2821, %v2822
  %v2824 = vrot.slane %v2823, 2
  %v2825 = vmax.f32 %v2823, %v2824
  %v2826 = vrot.slane %v2825, 1
  %v2827 = vmax.f32 %v2825, %v2826
  %v2828 = vpack.i.bf16 %v2827, %v2827
  %v2830 = vsel %vm164, %v1897, 4286644096
  %v2832 = vunpack.i.l.bf16 %v2830
  %v2833 = vunpack.i.h.bf16 %v2830
  %v2834 = vmax.f32 %v2832, %v2833
  %v2835 = vrot.slane %v2834, 4
  %v2836 = vmax.f32 %v2834, %v2835
  %v2837 = vrot.slane %v2836, 2
  %v2838 = vmax.f32 %v2836, %v2837
  %v2839 = vrot.slane %v2838, 1
  %v2840 = vmax.f32 %v2838, %v2839
  %v2841 = vpack.i.bf16 %v2840, %v2840
  %v2843 = vsel %vm164, %v1898, 4286644096
  %v2845 = vunpack.i.l.bf16 %v2843
  %v2846 = vunpack.i.h.bf16 %v2843
  %v2847 = vmax.f32 %v2845, %v2846
  %v2848 = vrot.slane %v2847, 4
  %v2849 = vmax.f32 %v2847, %v2848
  %v2850 = vrot.slane %v2849, 2
  %v2851 = vmax.f32 %v2849, %v2850
  %v2852 = vrot.slane %v2851, 1
  %v2853 = vmax.f32 %v2851, %v2852
  %v2854 = vpack.i.bf16 %v2853, %v2853
  %v2856 = vsel %vm164, %v1899, 4286644096
  %v2858 = vunpack.i.l.bf16 %v2856
  %v2859 = vunpack.i.h.bf16 %v2856
  %v2860 = vmax.f32 %v2858, %v2859
  %v2861 = vrot.slane %v2860, 4
  %v2862 = vmax.f32 %v2860, %v2861
  %v2863 = vrot.slane %v2862, 2
  %v2864 = vmax.f32 %v2862, %v2863
  %v2865 = vrot.slane %v2864, 1
  %v2866 = vmax.f32 %v2864, %v2865
  %v2867 = vpack.i.bf16 %v2866, %v2866
  %v2869 = vsel %vm164, %v1900, 4286644096
  %v2871 = vunpack.i.l.bf16 %v2869
  %v2872 = vunpack.i.h.bf16 %v2869
  %v2873 = vmax.f32 %v2871, %v2872
  %v2874 = vrot.slane %v2873, 4
  %v2875 = vmax.f32 %v2873, %v2874
  %v2876 = vrot.slane %v2875, 2
  %v2877 = vmax.f32 %v2875, %v2876
  %v2878 = vrot.slane %v2877, 1
  %v2879 = vmax.f32 %v2877, %v2878
  %v2880 = vpack.i.bf16 %v2879, %v2879
  %v2882 = vsel %vm164, %v1901, 4286644096
  %v2884 = vunpack.i.l.bf16 %v2882
  %v2885 = vunpack.i.h.bf16 %v2882
  %v2886 = vmax.f32 %v2884, %v2885
  %v2887 = vrot.slane %v2886, 4
  %v2888 = vmax.f32 %v2886, %v2887
  %v2889 = vrot.slane %v2888, 2
  %v2890 = vmax.f32 %v2888, %v2889
  %v2891 = vrot.slane %v2890, 1
  %v2892 = vmax.f32 %v2890, %v2891
  %v2893 = vpack.i.bf16 %v2892, %v2892
  %v2895 = vsel %vm164, %v1902, 4286644096
  %v2897 = vunpack.i.l.bf16 %v2895
  %v2898 = vunpack.i.h.bf16 %v2895
  %v2899 = vmax.f32 %v2897, %v2898
  %v2900 = vrot.slane %v2899, 4
  %v2901 = vmax.f32 %v2899, %v2900
  %v2902 = vrot.slane %v2901, 2
  %v2903 = vmax.f32 %v2901, %v2902
  %v2904 = vrot.slane %v2903, 1
  %v2905 = vmax.f32 %v2903, %v2904
  %v2906 = vpack.i.bf16 %v2905, %v2905
  %v2908 = vsel %vm164, %v1903, 4286644096
  %v2910 = vunpack.i.l.bf16 %v2908
  %v2911 = vunpack.i.h.bf16 %v2908
  %v2912 = vmax.f32 %v2910, %v2911
  %v2913 = vrot.slane %v2912, 4
  %v2914 = vmax.f32 %v2912, %v2913
  %v2915 = vrot.slane %v2914, 2
  %v2916 = vmax.f32 %v2914, %v2915
  %v2917 = vrot.slane %v2916, 1
  %v2918 = vmax.f32 %v2916, %v2917
  %v2919 = vpack.i.bf16 %v2918, %v2918
  %v2921 = vsel %vm164, %v1904, 4286644096
  %v2923 = vunpack.i.l.bf16 %v2921
  %v2924 = vunpack.i.h.bf16 %v2921
  %v2925 = vmax.f32 %v2923, %v2924
  %v2926 = vrot.slane %v2925, 4
  %v2927 = vmax.f32 %v2925, %v2926
  %v2928 = vrot.slane %v2927, 2
  %v2929 = vmax.f32 %v2927, %v2928
  %v2930 = vrot.slane %v2929, 1
  %v2931 = vmax.f32 %v2929, %v2930
  %v2932 = vpack.i.bf16 %v2931, %v2931
  %v2934 = vsel %vm164, %v1905, 4286644096
  %v2936 = vunpack.i.l.bf16 %v2934
  %v2937 = vunpack.i.h.bf16 %v2934
  %v2938 = vmax.f32 %v2936, %v2937
  %v2939 = vrot.slane %v2938, 4
  %v2940 = vmax.f32 %v2938, %v2939
  %v2941 = vrot.slane %v2940, 2
  %v2942 = vmax.f32 %v2940, %v2941
  %v2943 = vrot.slane %v2942, 1
  %v2944 = vmax.f32 %v2942, %v2943
  %v2945 = vpack.i.bf16 %v2944, %v2944
  %v2947 = vsel %vm164, %v1906, 4286644096
  %v2949 = vunpack.i.l.bf16 %v2947
  %v2950 = vunpack.i.h.bf16 %v2947
  %v2951 = vmax.f32 %v2949, %v2950
  %v2952 = vrot.slane %v2951, 4
  %v2953 = vmax.f32 %v2951, %v2952
  %v2954 = vrot.slane %v2953, 2
  %v2955 = vmax.f32 %v2953, %v2954
  %v2956 = vrot.slane %v2955, 1
  %v2957 = vmax.f32 %v2955, %v2956
  %v2958 = vpack.i.bf16 %v2957, %v2957
  %v2960 = vsel %vm164, %v1907, 4286644096
  %v2962 = vunpack.i.l.bf16 %v2960
  %v2963 = vunpack.i.h.bf16 %v2960
  %v2964 = vmax.f32 %v2962, %v2963
  %v2965 = vrot.slane %v2964, 4
  %v2966 = vmax.f32 %v2964, %v2965
  %v2967 = vrot.slane %v2966, 2
  %v2968 = vmax.f32 %v2966, %v2967
  %v2969 = vrot.slane %v2968, 1
  %v2970 = vmax.f32 %v2968, %v2969
  %v2971 = vpack.i.bf16 %v2970, %v2970
  %v2973 = vsel %vm164, %v1908, 4286644096
  %v2975 = vunpack.i.l.bf16 %v2973
  %v2976 = vunpack.i.h.bf16 %v2973
  %v2977 = vmax.f32 %v2975, %v2976
  %v2978 = vrot.slane %v2977, 4
  %v2979 = vmax.f32 %v2977, %v2978
  %v2980 = vrot.slane %v2979, 2
  %v2981 = vmax.f32 %v2979, %v2980
  %v2982 = vrot.slane %v2981, 1
  %v2983 = vmax.f32 %v2981, %v2982
  %v2984 = vpack.i.bf16 %v2983, %v2983
  %v2986 = vsel %vm164, %v1909, 4286644096
  %v2988 = vunpack.i.l.bf16 %v2986
  %v2989 = vunpack.i.h.bf16 %v2986
  %v2990 = vmax.f32 %v2988, %v2989
  %v2991 = vrot.slane %v2990, 4
  %v2992 = vmax.f32 %v2990, %v2991
  %v2993 = vrot.slane %v2992, 2
  %v2994 = vmax.f32 %v2992, %v2993
  %v2995 = vrot.slane %v2994, 1
  %v2996 = vmax.f32 %v2994, %v2995
  %v2997 = vpack.i.bf16 %v2996, %v2996
  %v2999 = vsel %vm164, %v1910, 4286644096
  %v3001 = vunpack.i.l.bf16 %v2999
  %v3002 = vunpack.i.h.bf16 %v2999
  %v3003 = vmax.f32 %v3001, %v3002
  %v3004 = vrot.slane %v3003, 4
  %v3005 = vmax.f32 %v3003, %v3004
  %v3006 = vrot.slane %v3005, 2
  %v3007 = vmax.f32 %v3005, %v3006
  %v3008 = vrot.slane %v3007, 1
  %v3009 = vmax.f32 %v3007, %v3008
  %v3010 = vpack.i.bf16 %v3009, %v3009
  %v3012 = vsel %vm164, %v1911, 4286644096
  %v3014 = vunpack.i.l.bf16 %v3012
  %v3015 = vunpack.i.h.bf16 %v3012
  %v3016 = vmax.f32 %v3014, %v3015
  %v3017 = vrot.slane %v3016, 4
  %v3018 = vmax.f32 %v3016, %v3017
  %v3019 = vrot.slane %v3018, 2
  %v3020 = vmax.f32 %v3018, %v3019
  %v3021 = vrot.slane %v3020, 1
  %v3022 = vmax.f32 %v3020, %v3021
  %v3023 = vpack.i.bf16 %v3022, %v3022
  %v3025 = vsel %vm164, %v1912, 4286644096
  %v3027 = vunpack.i.l.bf16 %v3025
  %v3028 = vunpack.i.h.bf16 %v3025
  %v3029 = vmax.f32 %v3027, %v3028
  %v3030 = vrot.slane %v3029, 4
  %v3031 = vmax.f32 %v3029, %v3030
  %v3032 = vrot.slane %v3031, 2
  %v3033 = vmax.f32 %v3031, %v3032
  %v3034 = vrot.slane %v3033, 1
  %v3035 = vmax.f32 %v3033, %v3034
  %v3036 = vpack.i.bf16 %v3035, %v3035
  %v3038 = vsel %vm164, %v1913, 4286644096
  %v3040 = vunpack.i.l.bf16 %v3038
  %v3041 = vunpack.i.h.bf16 %v3038
  %v3042 = vmax.f32 %v3040, %v3041
  %v3043 = vrot.slane %v3042, 4
  %v3044 = vmax.f32 %v3042, %v3043
  %v3045 = vrot.slane %v3044, 2
  %v3046 = vmax.f32 %v3044, %v3045
  %v3047 = vrot.slane %v3046, 1
  %v3048 = vmax.f32 %v3046, %v3047
  %v3049 = vpack.i.bf16 %v3048, %v3048
  %v3051 = vsel %vm164, %v1914, 4286644096
  %v3053 = vunpack.i.l.bf16 %v3051
  %v3054 = vunpack.i.h.bf16 %v3051
  %v3055 = vmax.f32 %v3053, %v3054
  %v3056 = vrot.slane %v3055, 4
  %v3057 = vmax.f32 %v3055, %v3056
  %v3058 = vrot.slane %v3057, 2
  %v3059 = vmax.f32 %v3057, %v3058
  %v3060 = vrot.slane %v3059, 1
  %v3061 = vmax.f32 %v3059, %v3060
  %v3062 = vpack.i.bf16 %v3061, %v3061
  %v3064 = vsel %vm164, %v1915, 4286644096
  %v3066 = vunpack.i.l.bf16 %v3064
  %v3067 = vunpack.i.h.bf16 %v3064
  %v3068 = vmax.f32 %v3066, %v3067
  %v3069 = vrot.slane %v3068, 4
  %v3070 = vmax.f32 %v3068, %v3069
  %v3071 = vrot.slane %v3070, 2
  %v3072 = vmax.f32 %v3070, %v3071
  %v3073 = vrot.slane %v3072, 1
  %v3074 = vmax.f32 %v3072, %v3073
  %v3075 = vpack.i.bf16 %v3074, %v3074
  %v3077 = vsel %vm164, %v1916, 4286644096
  %v3079 = vunpack.i.l.bf16 %v3077
  %v3080 = vunpack.i.h.bf16 %v3077
  %v3081 = vmax.f32 %v3079, %v3080
  %v3082 = vrot.slane %v3081, 4
  %v3083 = vmax.f32 %v3081, %v3082
  %v3084 = vrot.slane %v3083, 2
  %v3085 = vmax.f32 %v3083, %v3084
  %v3086 = vrot.slane %v3085, 1
  %v3087 = vmax.f32 %v3085, %v3086
  %v3088 = vpack.i.bf16 %v3087, %v3087
  %v3090 = vsel %vm164, %v1917, 4286644096
  %v3092 = vunpack.i.l.bf16 %v3090
  %v3093 = vunpack.i.h.bf16 %v3090
  %v3094 = vmax.f32 %v3092, %v3093
  %v3095 = vrot.slane %v3094, 4
  %v3096 = vmax.f32 %v3094, %v3095
  %v3097 = vrot.slane %v3096, 2
  %v3098 = vmax.f32 %v3096, %v3097
  %v3099 = vrot.slane %v3098, 1
  %v3100 = vmax.f32 %v3098, %v3099
  %v3101 = vpack.i.bf16 %v3100, %v3100
  %v3103 = vsel %vm164, %v1918, 4286644096
  %v3105 = vunpack.i.l.bf16 %v3103
  %v3106 = vunpack.i.h.bf16 %v3103
  %v3107 = vmax.f32 %v3105, %v3106
  %v3108 = vrot.slane %v3107, 4
  %v3109 = vmax.f32 %v3107, %v3108
  %v3110 = vrot.slane %v3109, 2
  %v3111 = vmax.f32 %v3109, %v3110
  %v3112 = vrot.slane %v3111, 1
  %v3113 = vmax.f32 %v3111, %v3112
  %v3114 = vpack.i.bf16 %v3113, %v3113
  %v3116 = vsel %vm164, %v1919, 4286644096
  %v3118 = vunpack.i.l.bf16 %v3116
  %v3119 = vunpack.i.h.bf16 %v3116
  %v3120 = vmax.f32 %v3118, %v3119
  %v3121 = vrot.slane %v3120, 4
  %v3122 = vmax.f32 %v3120, %v3121
  %v3123 = vrot.slane %v3122, 2
  %v3124 = vmax.f32 %v3122, %v3123
  %v3125 = vrot.slane %v3124, 1
  %v3126 = vmax.f32 %v3124, %v3125
  %v3127 = vpack.i.bf16 %v3126, %v3126
  %v3129 = vsel %vm164, %v1920, 4286644096
  %v3131 = vunpack.i.l.bf16 %v3129
  %v3132 = vunpack.i.h.bf16 %v3129
  %v3133 = vmax.f32 %v3131, %v3132
  %v3134 = vrot.slane %v3133, 4
  %v3135 = vmax.f32 %v3133, %v3134
  %v3136 = vrot.slane %v3135, 2
  %v3137 = vmax.f32 %v3135, %v3136
  %v3138 = vrot.slane %v3137, 1
  %v3139 = vmax.f32 %v3137, %v3138
  %v3140 = vpack.i.bf16 %v3139, %v3139
  %v3142 = vsel %vm164, %v1921, 4286644096
  %v3144 = vunpack.i.l.bf16 %v3142
  %v3145 = vunpack.i.h.bf16 %v3142
  %v3146 = vmax.f32 %v3144, %v3145
  %v3147 = vrot.slane %v3146, 4
  %v3148 = vmax.f32 %v3146, %v3147
  %v3149 = vrot.slane %v3148, 2
  %v3150 = vmax.f32 %v3148, %v3149
  %v3151 = vrot.slane %v3150, 1
  %v3152 = vmax.f32 %v3150, %v3151
  %v3153 = vpack.i.bf16 %v3152, %v3152
  %v3155 = vsel %vm164, %v1922, 4286644096
  %v3157 = vunpack.i.l.bf16 %v3155
  %v3158 = vunpack.i.h.bf16 %v3155
  %v3159 = vmax.f32 %v3157, %v3158
  %v3160 = vrot.slane %v3159, 4
  %v3161 = vmax.f32 %v3159, %v3160
  %v3162 = vrot.slane %v3161, 2
  %v3163 = vmax.f32 %v3161, %v3162
  %v3164 = vrot.slane %v3163, 1
  %v3165 = vmax.f32 %v3163, %v3164
  %v3166 = vpack.i.bf16 %v3165, %v3165
  %v3168 = vsel %vm164, %v1923, 4286644096
  %v3170 = vunpack.i.l.bf16 %v3168
  %v3171 = vunpack.i.h.bf16 %v3168
  %v3172 = vmax.f32 %v3170, %v3171
  %v3173 = vrot.slane %v3172, 4
  %v3174 = vmax.f32 %v3172, %v3173
  %v3175 = vrot.slane %v3174, 2
  %v3176 = vmax.f32 %v3174, %v3175
  %v3177 = vrot.slane %v3176, 1
  %v3178 = vmax.f32 %v3176, %v3177
  %v3179 = vpack.i.bf16 %v3178, %v3178
  %v3181 = vsel %vm164, %v1924, 4286644096
  %v3183 = vunpack.i.l.bf16 %v3181
  %v3184 = vunpack.i.h.bf16 %v3181
  %v3185 = vmax.f32 %v3183, %v3184
  %v3186 = vrot.slane %v3185, 4
  %v3187 = vmax.f32 %v3185, %v3186
  %v3188 = vrot.slane %v3187, 2
  %v3189 = vmax.f32 %v3187, %v3188
  %v3190 = vrot.slane %v3189, 1
  %v3191 = vmax.f32 %v3189, %v3190
  %v3192 = vpack.i.bf16 %v3191, %v3191
  %v3194 = vsel %vm164, %v1925, 4286644096
  %v3196 = vunpack.i.l.bf16 %v3194
  %v3197 = vunpack.i.h.bf16 %v3194
  %v3198 = vmax.f32 %v3196, %v3197
  %v3199 = vrot.slane %v3198, 4
  %v3200 = vmax.f32 %v3198, %v3199
  %v3201 = vrot.slane %v3200, 2
  %v3202 = vmax.f32 %v3200, %v3201
  %v3203 = vrot.slane %v3202, 1
  %v3204 = vmax.f32 %v3202, %v3203
  %v3205 = vpack.i.bf16 %v3204, %v3204
  %v3207 = vsel %vm164, %v1926, 4286644096
  %v3209 = vunpack.i.l.bf16 %v3207
  %v3210 = vunpack.i.h.bf16 %v3207
  %v3211 = vmax.f32 %v3209, %v3210
  %v3212 = vrot.slane %v3211, 4
  %v3213 = vmax.f32 %v3211, %v3212
  %v3214 = vrot.slane %v3213, 2
  %v3215 = vmax.f32 %v3213, %v3214
  %v3216 = vrot.slane %v3215, 1
  %v3217 = vmax.f32 %v3215, %v3216
  %v3218 = vpack.i.bf16 %v3217, %v3217
  %v3220 = vsel %vm164, %v1927, 4286644096
  %v3222 = vunpack.i.l.bf16 %v3220
  %v3223 = vunpack.i.h.bf16 %v3220
  %v3224 = vmax.f32 %v3222, %v3223
  %v3225 = vrot.slane %v3224, 4
  %v3226 = vmax.f32 %v3224, %v3225
  %v3227 = vrot.slane %v3226, 2
  %v3228 = vmax.f32 %v3226, %v3227
  %v3229 = vrot.slane %v3228, 1
  %v3230 = vmax.f32 %v3228, %v3229
  %v3231 = vpack.i.bf16 %v3230, %v3230
  %v3233 = vsel %vm164, %v1928, 4286644096
  %v3235 = vunpack.i.l.bf16 %v3233
  %v3236 = vunpack.i.h.bf16 %v3233
  %v3237 = vmax.f32 %v3235, %v3236
  %v3238 = vrot.slane %v3237, 4
  %v3239 = vmax.f32 %v3237, %v3238
  %v3240 = vrot.slane %v3239, 2
  %v3241 = vmax.f32 %v3239, %v3240
  %v3242 = vrot.slane %v3241, 1
  %v3243 = vmax.f32 %v3241, %v3242
  %v3244 = vpack.i.bf16 %v3243, %v3243
  %v3246 = vsel %vm164, %v1929, 4286644096
  %v3248 = vunpack.i.l.bf16 %v3246
  %v3249 = vunpack.i.h.bf16 %v3246
  %v3250 = vmax.f32 %v3248, %v3249
  %v3251 = vrot.slane %v3250, 4
  %v3252 = vmax.f32 %v3250, %v3251
  %v3253 = vrot.slane %v3252, 2
  %v3254 = vmax.f32 %v3252, %v3253
  %v3255 = vrot.slane %v3254, 1
  %v3256 = vmax.f32 %v3254, %v3255
  %v3257 = vpack.i.bf16 %v3256, %v3256
  %v3259 = vsel %vm164, %v1930, 4286644096
  %v3261 = vunpack.i.l.bf16 %v3259
  %v3262 = vunpack.i.h.bf16 %v3259
  %v3263 = vmax.f32 %v3261, %v3262
  %v3264 = vrot.slane %v3263, 4
  %v3265 = vmax.f32 %v3263, %v3264
  %v3266 = vrot.slane %v3265, 2
  %v3267 = vmax.f32 %v3265, %v3266
  %v3268 = vrot.slane %v3267, 1
  %v3269 = vmax.f32 %v3267, %v3268
  %v3270 = vpack.i.bf16 %v3269, %v3269
  %v3272 = vsel %vm164, %v1931, 4286644096
  %v3274 = vunpack.i.l.bf16 %v3272
  %v3275 = vunpack.i.h.bf16 %v3272
  %v3276 = vmax.f32 %v3274, %v3275
  %v3277 = vrot.slane %v3276, 4
  %v3278 = vmax.f32 %v3276, %v3277
  %v3279 = vrot.slane %v3278, 2
  %v3280 = vmax.f32 %v3278, %v3279
  %v3281 = vrot.slane %v3280, 1
  %v3282 = vmax.f32 %v3280, %v3281
  %v3283 = vpack.i.bf16 %v3282, %v3282
  %v3285 = vsel %vm164, %v1932, 4286644096
  %v3287 = vunpack.i.l.bf16 %v3285
  %v3288 = vunpack.i.h.bf16 %v3285
  %v3289 = vmax.f32 %v3287, %v3288
  %v3290 = vrot.slane %v3289, 4
  %v3291 = vmax.f32 %v3289, %v3290
  %v3292 = vrot.slane %v3291, 2
  %v3293 = vmax.f32 %v3291, %v3292
  %v3294 = vrot.slane %v3293, 1
  %v3295 = vmax.f32 %v3293, %v3294
  %v3296 = vpack.i.bf16 %v3295, %v3295
  %v3298 = vsel %vm164, %v1933, 4286644096
  %v3300 = vunpack.i.l.bf16 %v3298
  %v3301 = vunpack.i.h.bf16 %v3298
  %v3302 = vmax.f32 %v3300, %v3301
  %v3303 = vrot.slane %v3302, 4
  %v3304 = vmax.f32 %v3302, %v3303
  %v3305 = vrot.slane %v3304, 2
  %v3306 = vmax.f32 %v3304, %v3305
  %v3307 = vrot.slane %v3306, 1
  %v3308 = vmax.f32 %v3306, %v3307
  %v3309 = vpack.i.bf16 %v3308, %v3308
  %v3311 = vsel %vm164, %v1934, 4286644096
  %v3313 = vunpack.i.l.bf16 %v3311
  %v3314 = vunpack.i.h.bf16 %v3311
  %v3315 = vmax.f32 %v3313, %v3314
  %v3316 = vrot.slane %v3315, 4
  %v3317 = vmax.f32 %v3315, %v3316
  %v3318 = vrot.slane %v3317, 2
  %v3319 = vmax.f32 %v3317, %v3318
  %v3320 = vrot.slane %v3319, 1
  %v3321 = vmax.f32 %v3319, %v3320
  %v3322 = vpack.i.bf16 %v3321, %v3321
  %v3324 = vsel %vm164, %v1935, 4286644096
  %v3326 = vunpack.i.l.bf16 %v3324
  %v3327 = vunpack.i.h.bf16 %v3324
  %v3328 = vmax.f32 %v3326, %v3327
  %v3329 = vrot.slane %v3328, 4
  %v3330 = vmax.f32 %v3328, %v3329
  %v3331 = vrot.slane %v3330, 2
  %v3332 = vmax.f32 %v3330, %v3331
  %v3333 = vrot.slane %v3332, 1
  %v3334 = vmax.f32 %v3332, %v3333
  %v3335 = vpack.i.bf16 %v3334, %v3334
  %v3337 = vsel %vm164, %v1936, 4286644096
  %v3339 = vunpack.i.l.bf16 %v3337
  %v3340 = vunpack.i.h.bf16 %v3337
  %v3341 = vmax.f32 %v3339, %v3340
  %v3342 = vrot.slane %v3341, 4
  %v3343 = vmax.f32 %v3341, %v3342
  %v3344 = vrot.slane %v3343, 2
  %v3345 = vmax.f32 %v3343, %v3344
  %v3346 = vrot.slane %v3345, 1
  %v3347 = vmax.f32 %v3345, %v3346
  %v3348 = vpack.i.bf16 %v3347, %v3347
  %v3350 = vsel %vm164, %v1937, 4286644096
  %v3352 = vunpack.i.l.bf16 %v3350
  %v3353 = vunpack.i.h.bf16 %v3350
  %v3354 = vmax.f32 %v3352, %v3353
  %v3355 = vrot.slane %v3354, 4
  %v3356 = vmax.f32 %v3354, %v3355
  %v3357 = vrot.slane %v3356, 2
  %v3358 = vmax.f32 %v3356, %v3357
  %v3359 = vrot.slane %v3358, 1
  %v3360 = vmax.f32 %v3358, %v3359
  %v3361 = vpack.i.bf16 %v3360, %v3360
  %v3363 = vsel %vm164, %v1938, 4286644096
  %v3365 = vunpack.i.l.bf16 %v3363
  %v3366 = vunpack.i.h.bf16 %v3363
  %v3367 = vmax.f32 %v3365, %v3366
  %v3368 = vrot.slane %v3367, 4
  %v3369 = vmax.f32 %v3367, %v3368
  %v3370 = vrot.slane %v3369, 2
  %v3371 = vmax.f32 %v3369, %v3370
  %v3372 = vrot.slane %v3371, 1
  %v3373 = vmax.f32 %v3371, %v3372
  %v3374 = vpack.i.bf16 %v3373, %v3373
  %v3376 = vsel %vm164, %v1939, 4286644096
  %v3378 = vunpack.i.l.bf16 %v3376
  %v3379 = vunpack.i.h.bf16 %v3376
  %v3380 = vmax.f32 %v3378, %v3379
  %v3381 = vrot.slane %v3380, 4
  %v3382 = vmax.f32 %v3380, %v3381
  %v3383 = vrot.slane %v3382, 2
  %v3384 = vmax.f32 %v3382, %v3383
  %v3385 = vrot.slane %v3384, 1
  %v3386 = vmax.f32 %v3384, %v3385
  %v3387 = vpack.i.bf16 %v3386, %v3386
  %v3389 = vsel %vm164, %v1940, 4286644096
  %v3391 = vunpack.i.l.bf16 %v3389
  %v3392 = vunpack.i.h.bf16 %v3389
  %v3393 = vmax.f32 %v3391, %v3392
  %v3394 = vrot.slane %v3393, 4
  %v3395 = vmax.f32 %v3393, %v3394
  %v3396 = vrot.slane %v3395, 2
  %v3397 = vmax.f32 %v3395, %v3396
  %v3398 = vrot.slane %v3397, 1
  %v3399 = vmax.f32 %v3397, %v3398
  %v3400 = vpack.i.bf16 %v3399, %v3399
  %v3402 = vsel %vm164, %v1941, 4286644096
  %v3404 = vunpack.i.l.bf16 %v3402
  %v3405 = vunpack.i.h.bf16 %v3402
  %v3406 = vmax.f32 %v3404, %v3405
  %v3407 = vrot.slane %v3406, 4
  %v3408 = vmax.f32 %v3406, %v3407
  %v3409 = vrot.slane %v3408, 2
  %v3410 = vmax.f32 %v3408, %v3409
  %v3411 = vrot.slane %v3410, 1
  %v3412 = vmax.f32 %v3410, %v3411
  %v3413 = vpack.i.bf16 %v3412, %v3412
  %v3415 = vsel %vm164, %v1942, 4286644096
  %v3417 = vunpack.i.l.bf16 %v3415
  %v3418 = vunpack.i.h.bf16 %v3415
  %v3419 = vmax.f32 %v3417, %v3418
  %v3420 = vrot.slane %v3419, 4
  %v3421 = vmax.f32 %v3419, %v3420
  %v3422 = vrot.slane %v3421, 2
  %v3423 = vmax.f32 %v3421, %v3422
  %v3424 = vrot.slane %v3423, 1
  %v3425 = vmax.f32 %v3423, %v3424
  %v3426 = vpack.i.bf16 %v3425, %v3425
  %v3428 = vsel %vm164, %v1943, 4286644096
  %v3430 = vunpack.i.l.bf16 %v3428
  %v3431 = vunpack.i.h.bf16 %v3428
  %v3432 = vmax.f32 %v3430, %v3431
  %v3433 = vrot.slane %v3432, 4
  %v3434 = vmax.f32 %v3432, %v3433
  %v3435 = vrot.slane %v3434, 2
  %v3436 = vmax.f32 %v3434, %v3435
  %v3437 = vrot.slane %v3436, 1
  %v3438 = vmax.f32 %v3436, %v3437
  %v3439 = vpack.i.bf16 %v3438, %v3438
  %v3441 = vsel %vm164, %v1944, 4286644096
  %v3443 = vunpack.i.l.bf16 %v3441
  %v3444 = vunpack.i.h.bf16 %v3441
  %v3445 = vmax.f32 %v3443, %v3444
  %v3446 = vrot.slane %v3445, 4
  %v3447 = vmax.f32 %v3445, %v3446
  %v3448 = vrot.slane %v3447, 2
  %v3449 = vmax.f32 %v3447, %v3448
  %v3450 = vrot.slane %v3449, 1
  %v3451 = vmax.f32 %v3449, %v3450
  %v3452 = vpack.i.bf16 %v3451, %v3451
  %v3454 = vsel %vm164, %v1945, 4286644096
  %v3456 = vunpack.i.l.bf16 %v3454
  %v3457 = vunpack.i.h.bf16 %v3454
  %v3458 = vmax.f32 %v3456, %v3457
  %v3459 = vrot.slane %v3458, 4
  %v3460 = vmax.f32 %v3458, %v3459
  %v3461 = vrot.slane %v3460, 2
  %v3462 = vmax.f32 %v3460, %v3461
  %v3463 = vrot.slane %v3462, 1
  %v3464 = vmax.f32 %v3462, %v3463
  %v3465 = vpack.i.bf16 %v3464, %v3464
  %v3467 = vsel %vm164, %v1946, 4286644096
  %v3469 = vunpack.i.l.bf16 %v3467
  %v3470 = vunpack.i.h.bf16 %v3467
  %v3471 = vmax.f32 %v3469, %v3470
  %v3472 = vrot.slane %v3471, 4
  %v3473 = vmax.f32 %v3471, %v3472
  %v3474 = vrot.slane %v3473, 2
  %v3475 = vmax.f32 %v3473, %v3474
  %v3476 = vrot.slane %v3475, 1
  %v3477 = vmax.f32 %v3475, %v3476
  %v3478 = vpack.i.bf16 %v3477, %v3477
  %v3480 = vsel %vm164, %v1947, 4286644096
  %v3482 = vunpack.i.l.bf16 %v3480
  %v3483 = vunpack.i.h.bf16 %v3480
  %v3484 = vmax.f32 %v3482, %v3483
  %v3485 = vrot.slane %v3484, 4
  %v3486 = vmax.f32 %v3484, %v3485
  %v3487 = vrot.slane %v3486, 2
  %v3488 = vmax.f32 %v3486, %v3487
  %v3489 = vrot.slane %v3488, 1
  %v3490 = vmax.f32 %v3488, %v3489
  %v3491 = vpack.i.bf16 %v3490, %v3490
  %v3493 = vsel %vm164, %v1948, 4286644096
  %v3495 = vunpack.i.l.bf16 %v3493
  %v3496 = vunpack.i.h.bf16 %v3493
  %v3497 = vmax.f32 %v3495, %v3496
  %v3498 = vrot.slane %v3497, 4
  %v3499 = vmax.f32 %v3497, %v3498
  %v3500 = vrot.slane %v3499, 2
  %v3501 = vmax.f32 %v3499, %v3500
  %v3502 = vrot.slane %v3501, 1
  %v3503 = vmax.f32 %v3501, %v3502
  %v3504 = vpack.i.bf16 %v3503, %v3503
  %v3506 = vsel %vm164, %v1949, 4286644096
  %v3508 = vunpack.i.l.bf16 %v3506
  %v3509 = vunpack.i.h.bf16 %v3506
  %v3510 = vmax.f32 %v3508, %v3509
  %v3511 = vrot.slane %v3510, 4
  %v3512 = vmax.f32 %v3510, %v3511
  %v3513 = vrot.slane %v3512, 2
  %v3514 = vmax.f32 %v3512, %v3513
  %v3515 = vrot.slane %v3514, 1
  %v3516 = vmax.f32 %v3514, %v3515
  %v3517 = vpack.i.bf16 %v3516, %v3516
  %v3519 = vsel %vm164, %v1950, 4286644096
  %v3521 = vunpack.i.l.bf16 %v3519
  %v3522 = vunpack.i.h.bf16 %v3519
  %v3523 = vmax.f32 %v3521, %v3522
  %v3524 = vrot.slane %v3523, 4
  %v3525 = vmax.f32 %v3523, %v3524
  %v3526 = vrot.slane %v3525, 2
  %v3527 = vmax.f32 %v3525, %v3526
  %v3528 = vrot.slane %v3527, 1
  %v3529 = vmax.f32 %v3527, %v3528
  %v3530 = vpack.i.bf16 %v3529, %v3529
  %v3532 = vsel %vm164, %v1951, 4286644096
  %v3534 = vunpack.i.l.bf16 %v3532
  %v3535 = vunpack.i.h.bf16 %v3532
  %v3536 = vmax.f32 %v3534, %v3535
  %v3537 = vrot.slane %v3536, 4
  %v3538 = vmax.f32 %v3536, %v3537
  %v3539 = vrot.slane %v3538, 2
  %v3540 = vmax.f32 %v3538, %v3539
  %v3541 = vrot.slane %v3540, 1
  %v3542 = vmax.f32 %v3540, %v3541
  %v3543 = vpack.i.bf16 %v3542, %v3542
  %v3545 = vsel %vm164, %v1952, 4286644096
  %v3547 = vunpack.i.l.bf16 %v3545
  %v3548 = vunpack.i.h.bf16 %v3545
  %v3549 = vmax.f32 %v3547, %v3548
  %v3550 = vrot.slane %v3549, 4
  %v3551 = vmax.f32 %v3549, %v3550
  %v3552 = vrot.slane %v3551, 2
  %v3553 = vmax.f32 %v3551, %v3552
  %v3554 = vrot.slane %v3553, 1
  %v3555 = vmax.f32 %v3553, %v3554
  %v3556 = vpack.i.bf16 %v3555, %v3555
  %v3558 = vsel %vm164, %v1953, 4286644096
  %v3560 = vunpack.i.l.bf16 %v3558
  %v3561 = vunpack.i.h.bf16 %v3558
  %v3562 = vmax.f32 %v3560, %v3561
  %v3563 = vrot.slane %v3562, 4
  %v3564 = vmax.f32 %v3562, %v3563
  %v3565 = vrot.slane %v3564, 2
  %v3566 = vmax.f32 %v3564, %v3565
  %v3567 = vrot.slane %v3566, 1
  %v3568 = vmax.f32 %v3566, %v3567
  %v3569 = vpack.i.bf16 %v3568, %v3568
  %v3571 = vsel %vm164, %v1954, 4286644096
  %v3573 = vunpack.i.l.bf16 %v3571
  %v3574 = vunpack.i.h.bf16 %v3571
  %v3575 = vmax.f32 %v3573, %v3574
  %v3576 = vrot.slane %v3575, 4
  %v3577 = vmax.f32 %v3575, %v3576
  %v3578 = vrot.slane %v3577, 2
  %v3579 = vmax.f32 %v3577, %v3578
  %v3580 = vrot.slane %v3579, 1
  %v3581 = vmax.f32 %v3579, %v3580
  %v3582 = vpack.i.bf16 %v3581, %v3581
  %v3584 = vsel %vm164, %v1955, 4286644096
  %v3586 = vunpack.i.l.bf16 %v3584
  %v3587 = vunpack.i.h.bf16 %v3584
  %v3588 = vmax.f32 %v3586, %v3587
  %v3589 = vrot.slane %v3588, 4
  %v3590 = vmax.f32 %v3588, %v3589
  %v3591 = vrot.slane %v3590, 2
  %v3592 = vmax.f32 %v3590, %v3591
  %v3593 = vrot.slane %v3592, 1
  %v3594 = vmax.f32 %v3592, %v3593
  %v3595 = vpack.i.bf16 %v3594, %v3594
  %v3597 = vsel %vm164, %v1956, 4286644096
  %v3599 = vunpack.i.l.bf16 %v3597
  %v3600 = vunpack.i.h.bf16 %v3597
  %v3601 = vmax.f32 %v3599, %v3600
  %v3602 = vrot.slane %v3601, 4
  %v3603 = vmax.f32 %v3601, %v3602
  %v3604 = vrot.slane %v3603, 2
  %v3605 = vmax.f32 %v3603, %v3604
  %v3606 = vrot.slane %v3605, 1
  %v3607 = vmax.f32 %v3605, %v3606
  %v3608 = vpack.i.bf16 %v3607, %v3607
  %v3610 = vsel %vm164, %v1957, 4286644096
  %v3612 = vunpack.i.l.bf16 %v3610
  %v3613 = vunpack.i.h.bf16 %v3610
  %v3614 = vmax.f32 %v3612, %v3613
  %v3615 = vrot.slane %v3614, 4
  %v3616 = vmax.f32 %v3614, %v3615
  %v3617 = vrot.slane %v3616, 2
  %v3618 = vmax.f32 %v3616, %v3617
  %v3619 = vrot.slane %v3618, 1
  %v3620 = vmax.f32 %v3618, %v3619
  %v3621 = vpack.i.bf16 %v3620, %v3620
  %v3622 = vld [vmem:[%s2] sm:$0xf]
  %v3623 = vld [vmem:[%s2 + $0x4] sm:$0xf]
  %v3624 = vld [vmem:[%s2 + $0x8] sm:$0xf]
  %v3625 = vld [vmem:[%s2 + $0xc] sm:$0xf]
  %v3626 = vld [vmem:[%s3] sm:$0xf]
  %v3627 = vld [vmem:[%s3 + $0x4] sm:$0xf]
  %v3628 = vld [vmem:[%s3 + $0x8] sm:$0xf]
  %v3629 = vld [vmem:[%s3 + $0xc] sm:$0xf]
  %v3758 = vunpack.c.l.b16 %v1970
  %v3759 = vunpack.c.l.b16 %v1983
  %v3760 = vunpack.c.l.b16 %v1996
  %v3761 = vunpack.c.l.b16 %v2009
  %v3762 = vunpack.c.l.b16 %v2022
  %v3763 = vunpack.c.l.b16 %v2035
  %v3764 = vunpack.c.l.b16 %v2048
  %v3765 = vunpack.c.l.b16 %v2061
  %v3766 = vunpack.c.l.b16 %v2074
  %v3767 = vunpack.c.l.b16 %v2087
  %v3768 = vunpack.c.l.b16 %v2100
  %v3769 = vunpack.c.l.b16 %v2113
  %v3770 = vunpack.c.l.b16 %v2126
  %v3771 = vunpack.c.l.b16 %v2139
  %v3772 = vunpack.c.l.b16 %v2152
  %v3773 = vunpack.c.l.b16 %v2165
  %v3774 = vunpack.c.l.b16 %v2178
  %v3775 = vunpack.c.l.b16 %v2191
  %v3776 = vunpack.c.l.b16 %v2204
  %v3777 = vunpack.c.l.b16 %v2217
  %v3778 = vunpack.c.l.b16 %v2230
  %v3779 = vunpack.c.l.b16 %v2243
  %v3780 = vunpack.c.l.b16 %v2256
  %v3781 = vunpack.c.l.b16 %v2269
  %v3782 = vunpack.c.l.b16 %v2282
  %v3783 = vunpack.c.l.b16 %v2295
  %v3784 = vunpack.c.l.b16 %v2308
  %v3785 = vunpack.c.l.b16 %v2321
  %v3786 = vunpack.c.l.b16 %v2334
  %v3787 = vunpack.c.l.b16 %v2347
  %v3788 = vunpack.c.l.b16 %v2360
  %v3789 = vunpack.c.l.b16 %v2373
  %v3790 = vunpack.c.l.b16 %v2386
  %v3791 = vunpack.c.l.b16 %v2399
  %v3792 = vunpack.c.l.b16 %v2412
  %v3793 = vunpack.c.l.b16 %v2425
  %v3794 = vunpack.c.l.b16 %v2438
  %v3795 = vunpack.c.l.b16 %v2451
  %v3796 = vunpack.c.l.b16 %v2464
  %v3797 = vunpack.c.l.b16 %v2477
  %v3798 = vunpack.c.l.b16 %v2490
  %v3799 = vunpack.c.l.b16 %v2503
  %v3800 = vunpack.c.l.b16 %v2516
  %v3801 = vunpack.c.l.b16 %v2529
  %v3802 = vunpack.c.l.b16 %v2542
  %v3803 = vunpack.c.l.b16 %v2555
  %v3804 = vunpack.c.l.b16 %v2568
  %v3805 = vunpack.c.l.b16 %v2581
  %v3806 = vunpack.c.l.b16 %v2594
  %v3807 = vunpack.c.l.b16 %v2607
  %v3808 = vunpack.c.l.b16 %v2620
  %v3809 = vunpack.c.l.b16 %v2633
  %v3810 = vunpack.c.l.b16 %v2646
  %v3811 = vunpack.c.l.b16 %v2659
  %v3812 = vunpack.c.l.b16 %v2672
  %v3813 = vunpack.c.l.b16 %v2685
  %v3814 = vunpack.c.l.b16 %v2698
  %v3815 = vunpack.c.l.b16 %v2711
  %v3816 = vunpack.c.l.b16 %v2724
  %v3817 = vunpack.c.l.b16 %v2737
  %v3818 = vunpack.c.l.b16 %v2750
  %v3819 = vunpack.c.l.b16 %v2763
  %v3820 = vunpack.c.l.b16 %v2776
  %v3821 = vunpack.c.l.b16 %v2789
  %v3822 = vunpack.c.l.b16 %v2802
  %v3823 = vunpack.c.l.b16 %v2815
  %v3824 = vunpack.c.l.b16 %v2828
  %v3825 = vunpack.c.l.b16 %v2841
  %v3826 = vunpack.c.l.b16 %v2854
  %v3827 = vunpack.c.l.b16 %v2867
  %v3828 = vunpack.c.l.b16 %v2880
  %v3829 = vunpack.c.l.b16 %v2893
  %v3830 = vunpack.c.l.b16 %v2906
  %v3831 = vunpack.c.l.b16 %v2919
  %v3832 = vunpack.c.l.b16 %v2932
  %v3833 = vunpack.c.l.b16 %v2945
  %v3834 = vunpack.c.l.b16 %v2958
  %v3835 = vunpack.c.l.b16 %v2971
  %v3836 = vunpack.c.l.b16 %v2984
  %v3837 = vunpack.c.l.b16 %v2997
  %v3838 = vunpack.c.l.b16 %v3010
  %v3839 = vunpack.c.l.b16 %v3023
  %v3840 = vunpack.c.l.b16 %v3036
  %v3841 = vunpack.c.l.b16 %v3049
  %v3842 = vunpack.c.l.b16 %v3062
  %v3843 = vunpack.c.l.b16 %v3075
  %v3844 = vunpack.c.l.b16 %v3088
  %v3845 = vunpack.c.l.b16 %v3101
  %v3846 = vunpack.c.l.b16 %v3114
  %v3847 = vunpack.c.l.b16 %v3127
  %v3848 = vunpack.c.l.b16 %v3140
  %v3849 = vunpack.c.l.b16 %v3153
  %v3850 = vunpack.c.l.b16 %v3166
  %v3851 = vunpack.c.l.b16 %v3179
  %v3852 = vunpack.c.l.b16 %v3192
  %v3853 = vunpack.c.l.b16 %v3205
  %v3854 = vunpack.c.l.b16 %v3218
  %v3855 = vunpack.c.l.b16 %v3231
  %v3856 = vunpack.c.l.b16 %v3244
  %v3857 = vunpack.c.l.b16 %v3257
  %v3858 = vunpack.c.l.b16 %v3270
  %v3859 = vunpack.c.l.b16 %v3283
  %v3860 = vunpack.c.l.b16 %v3296
  %v3861 = vunpack.c.l.b16 %v3309
  %v3862 = vunpack.c.l.b16 %v3322
  %v3863 = vunpack.c.l.b16 %v3335
  %v3864 = vunpack.c.l.b16 %v3348
  %v3865 = vunpack.c.l.b16 %v3361
  %v3866 = vunpack.c.l.b16 %v3374
  %v3867 = vunpack.c.l.b16 %v3387
  %v3868 = vunpack.c.l.b16 %v3400
  %v3869 = vunpack.c.l.b16 %v3413
  %v3870 = vunpack.c.l.b16 %v3426
  %v3871 = vunpack.c.l.b16 %v3439
  %v3872 = vunpack.c.l.b16 %v3452
  %v3873 = vunpack.c.l.b16 %v3465
  %v3874 = vunpack.c.l.b16 %v3478
  %v3875 = vunpack.c.l.b16 %v3491
  %v3876 = vunpack.c.l.b16 %v3504
  %v3877 = vunpack.c.l.b16 %v3517
  %v3878 = vunpack.c.l.b16 %v3530
  %v3879 = vunpack.c.l.b16 %v3543
  %v3880 = vunpack.c.l.b16 %v3556
  %v3881 = vunpack.c.l.b16 %v3569
  %v3882 = vunpack.c.l.b16 %v3582
  %v3883 = vunpack.c.l.b16 %v3595
  %v3884 = vunpack.c.l.b16 %v3608
  %v3885 = vunpack.c.l.b16 %v3621
  %vm3886 = vcmask 1041409
  %v3887 = vsel %vm3886, %v3759, %v3758
  %vm3888 = vcmask 1042434
  %v3889 = vsel %vm3888, %v3760, %v3887
  %vm3890 = vcmask 1043459
  %v3891 = vsel %vm3890, %v3761, %v3889
  %vm3892 = vcmask 1044484
  %v3893 = vsel %vm3892, %v3762, %v3891
  %vm3894 = vcmask 1045509
  %v3895 = vsel %vm3894, %v3763, %v3893
  %vm3896 = vcmask 1046534
  %v3897 = vsel %vm3896, %v3764, %v3895
  %vm3898 = vcmask 1047559
  %v3899 = vsel %vm3898, %v3765, %v3897
  %v3900 = vsel %vm3886, %v3767, %v3766
  %v3901 = vsel %vm3888, %v3768, %v3900
  %v3902 = vsel %vm3890, %v3769, %v3901
  %v3903 = vsel %vm3892, %v3770, %v3902
  %v3904 = vsel %vm3894, %v3771, %v3903
  %v3905 = vsel %vm3896, %v3772, %v3904
  %v3906 = vsel %vm3898, %v3773, %v3905
  %v3907 = vsel %vm3886, %v3775, %v3774
  %v3908 = vsel %vm3888, %v3776, %v3907
  %v3909 = vsel %vm3890, %v3777, %v3908
  %v3910 = vsel %vm3892, %v3778, %v3909
  %v3911 = vsel %vm3894, %v3779, %v3910
  %v3912 = vsel %vm3896, %v3780, %v3911
  %v3913 = vsel %vm3898, %v3781, %v3912
  %v3914 = vsel %vm3886, %v3783, %v3782
  %v3915 = vsel %vm3888, %v3784, %v3914
  %v3916 = vsel %vm3890, %v3785, %v3915
  %v3917 = vsel %vm3892, %v3786, %v3916
  %v3918 = vsel %vm3894, %v3787, %v3917
  %v3919 = vsel %vm3896, %v3788, %v3918
  %v3920 = vsel %vm3898, %v3789, %v3919
  %v3921 = vsel %vm3886, %v3791, %v3790
  %v3922 = vsel %vm3888, %v3792, %v3921
  %v3923 = vsel %vm3890, %v3793, %v3922
  %v3924 = vsel %vm3892, %v3794, %v3923
  %v3925 = vsel %vm3894, %v3795, %v3924
  %v3926 = vsel %vm3896, %v3796, %v3925
  %v3927 = vsel %vm3898, %v3797, %v3926
  %v3928 = vsel %vm3886, %v3799, %v3798
  %v3929 = vsel %vm3888, %v3800, %v3928
  %v3930 = vsel %vm3890, %v3801, %v3929
  %v3931 = vsel %vm3892, %v3802, %v3930
  %v3932 = vsel %vm3894, %v3803, %v3931
  %v3933 = vsel %vm3896, %v3804, %v3932
  %v3934 = vsel %vm3898, %v3805, %v3933
  %v3935 = vsel %vm3886, %v3807, %v3806
  %v3936 = vsel %vm3888, %v3808, %v3935
  %v3937 = vsel %vm3890, %v3809, %v3936
  %v3938 = vsel %vm3892, %v3810, %v3937
  %v3939 = vsel %vm3894, %v3811, %v3938
  %v3940 = vsel %vm3896, %v3812, %v3939
  %v3941 = vsel %vm3898, %v3813, %v3940
  %v3942 = vsel %vm3886, %v3815, %v3814
  %v3943 = vsel %vm3888, %v3816, %v3942
  %v3944 = vsel %vm3890, %v3817, %v3943
  %v3945 = vsel %vm3892, %v3818, %v3944
  %v3946 = vsel %vm3894, %v3819, %v3945
  %v3947 = vsel %vm3896, %v3820, %v3946
  %v3948 = vsel %vm3898, %v3821, %v3947
  %v3949 = vsel %vm3886, %v3823, %v3822
  %v3950 = vsel %vm3888, %v3824, %v3949
  %v3951 = vsel %vm3890, %v3825, %v3950
  %v3952 = vsel %vm3892, %v3826, %v3951
  %v3953 = vsel %vm3894, %v3827, %v3952
  %v3954 = vsel %vm3896, %v3828, %v3953
  %v3955 = vsel %vm3898, %v3829, %v3954
  %v3956 = vsel %vm3886, %v3831, %v3830
  %v3957 = vsel %vm3888, %v3832, %v3956
  %v3958 = vsel %vm3890, %v3833, %v3957
  %v3959 = vsel %vm3892, %v3834, %v3958
  %v3960 = vsel %vm3894, %v3835, %v3959
  %v3961 = vsel %vm3896, %v3836, %v3960
  %v3962 = vsel %vm3898, %v3837, %v3961
  %v3963 = vsel %vm3886, %v3839, %v3838
  %v3964 = vsel %vm3888, %v3840, %v3963
  %v3965 = vsel %vm3890, %v3841, %v3964
  %v3966 = vsel %vm3892, %v3842, %v3965
  %v3967 = vsel %vm3894, %v3843, %v3966
  %v3968 = vsel %vm3896, %v3844, %v3967
  %v3969 = vsel %vm3898, %v3845, %v3968
  %v3970 = vsel %vm3886, %v3847, %v3846
  %v3971 = vsel %vm3888, %v3848, %v3970
  %v3972 = vsel %vm3890, %v3849, %v3971
  %v3973 = vsel %vm3892, %v3850, %v3972
  %v3974 = vsel %vm3894, %v3851, %v3973
  %v3975 = vsel %vm3896, %v3852, %v3974
  %v3976 = vsel %vm3898, %v3853, %v3975
  %v3977 = vsel %vm3886, %v3855, %v3854
  %v3978 = vsel %vm3888, %v3856, %v3977
  %v3979 = vsel %vm3890, %v3857, %v3978
  %v3980 = vsel %vm3892, %v3858, %v3979
  %v3981 = vsel %vm3894, %v3859, %v3980
  %v3982 = vsel %vm3896, %v3860, %v3981
  %v3983 = vsel %vm3898, %v3861, %v3982
  %v3984 = vsel %vm3886, %v3863, %v3862
  %v3985 = vsel %vm3888, %v3864, %v3984
  %v3986 = vsel %vm3890, %v3865, %v3985
  %v3987 = vsel %vm3892, %v3866, %v3986
  %v3988 = vsel %vm3894, %v3867, %v3987
  %v3989 = vsel %vm3896, %v3868, %v3988
  %v3990 = vsel %vm3898, %v3869, %v3989
  %v3991 = vsel %vm3886, %v3871, %v3870
  %v3992 = vsel %vm3888, %v3872, %v3991
  %v3993 = vsel %vm3890, %v3873, %v3992
  %v3994 = vsel %vm3892, %v3874, %v3993
  %v3995 = vsel %vm3894, %v3875, %v3994
  %v3996 = vsel %vm3896, %v3876, %v3995
  %v3997 = vsel %vm3898, %v3877, %v3996
  %v3998 = vsel %vm3886, %v3879, %v3878
  %v3999 = vsel %vm3888, %v3880, %v3998
  %v4000 = vsel %vm3890, %v3881, %v3999
  %v4001 = vsel %vm3892, %v3882, %v4000
  %v4002 = vsel %vm3894, %v3883, %v4001
  %v4003 = vsel %vm3896, %v3884, %v4002
  %v4004 = vsel %vm3898, %v3885, %v4003
  %v4005 = vpack.c.b16 %v3906, %v3899
  %v4006 = vpack.c.b16 %v3920, %v3913
  %v4007 = vpack.c.b16 %v3934, %v3927
  %v4008 = vpack.c.b16 %v3948, %v3941
  %v4009 = vpack.c.b16 %v3962, %v3955
  %v4010 = vpack.c.b16 %v3976, %v3969
  %v4011 = vpack.c.b16 %v3990, %v3983
  %v4012 = vpack.c.b16 %v4004, %v3997
  %v4017 = vunpack.c.l.b16 %v3626
  %v4018 = vunpack.c.l.b16 %v3627
  %v4019 = vunpack.c.l.b16 %v3628
  %v4020 = vunpack.c.l.b16 %v3629
  %v4021 = vpack.c.b16 %v4018, %v4017
  %v4022 = vpack.c.b16 %v4020, %v4019
  %vm4025 = vcmask 261120
  %v4027 = vsel %vm4025, %v4005, 0
  %v4030 = vsel %vm4025, %v4006, 0
  %v4033 = vsel %vm4025, %v4007, 0
  %v4036 = vsel %vm4025, %v4008, 0
  %v4039 = vsel %vm4025, %v4009, 0
  %v4042 = vsel %vm4025, %v4010, 0
  %v4045 = vsel %vm4025, %v4011, 0
  %v4048 = vsel %vm4025, %v4012, 0
  %4050 = vmatprep.subr.bf16.mxu0 0
  %4051 = vmatpush1.bf16.msra.mxu0 %v4021
  %4052 = vmatprep.subr.bf16.mxu0 0
  %4053 = vmatpush1.bf16.msra.mxu0 %v4022
  %4054 = vmatprep.subr.bf16.mxu0 0
  %4055 = vmatpush1.bf16.msra.mxu0 0
  %4056 = vmatprep.subr.bf16.mxu0 0
  %4057 = vmatpush1.bf16.msra.mxu0 0
  %4058 = vmatprep.subr.bf16.mxu0 0
  %4059 = vmatpush1.bf16.msra.mxu0 0
  %4060 = vmatprep.subr.bf16.mxu0 0
  %4061 = vmatpush1.bf16.msra.mxu0 0
  %4062 = vmatprep.subr.bf16.mxu0 0
  %4063 = vmatpush1.bf16.msra.mxu0 0
  %4064 = vmatprep.subr.bf16.mxu0 0
  %4065 = vmatpush1.bf16.msra.mxu0 0
  %4066 = vmatprep.subr.bf16.mxu0 0
  %4067 = vmatpush1.bf16.msra.mxu0 0
  %4068 = vmatprep.subr.bf16.mxu0 0
  %4069 = vmatpush1.bf16.msra.mxu0 0
  %4070 = vmatprep.subr.bf16.mxu0 0
  %4071 = vmatpush1.bf16.msra.mxu0 0
  %4072 = vmatprep.subr.bf16.mxu0 0
  %4073 = vmatpush1.bf16.msra.mxu0 0
  %4074 = vmatprep.subr.bf16.mxu0 0
  %4075 = vmatpush1.bf16.msra.mxu0 0
  %4076 = vmatprep.subr.bf16.mxu0 0
  %4077 = vmatpush1.bf16.msra.mxu0 0
  %4078 = vmatprep.subr.bf16.mxu0 0
  %4079 = vmatpush1.bf16.msra.mxu0 0
  %4080 = vmatprep.subr.bf16.mxu0 0
  %4081 = vmatpush1.bf16.msra.mxu0 0
  %4082 = vmatprep.mubr.bf16.mxu0 0
  %4083 = vmatmul.mubr.bf16.gmra.mrb[0].mxu0 %v4027
  %v4084 = vpop.f32.mrb[0].mxu0
  %v4085 = vadd.f32 0.0, %v4084
  %v4086 = vpop.f32.mrb[0].mxu0
  %v4087 = vpop.f32.mrb[0].mxu0
  %v4088 = vadd.f32 0.0, %v4087
  %v4089 = vpop.f32.mrb[0].mxu0
  %4090 = vmatprep.mubr.bf16.mxu0 0
  %4091 = vmatmul.mubr.bf16.gmra.mrb[0].mxu0 %v4030
  %v4092 = vpop.f32.mrb[0].mxu0
  %v4093 = vadd.f32 0.0, %v4092
  %v4094 = vpop.f32.mrb[0].mxu0
  %v4095 = vpop.f32.mrb[0].mxu0
  %v4096 = vadd.f32 0.0, %v4095
  %v4097 = vpop.f32.mrb[0].mxu0
  %4098 = vmatprep.mubr.bf16.mxu0 0
  %4099 = vmatmul.mubr.bf16.gmra.mrb[0].mxu0 %v4033
  %v4100 = vpop.f32.mrb[0].mxu0
  %v4101 = vadd.f32 0.0, %v4100
  %v4102 = vpop.f32.mrb[0].mxu0
  %v4103 = vpop.f32.mrb[0].mxu0
  %v4104 = vadd.f32 0.0, %v4103
  %v4105 = vpop.f32.mrb[0].mxu0
  %4106 = vmatprep.mubr.bf16.mxu0 0
  %4107 = vmatmul.mubr.bf16.gmra.mrb[0].mxu0 %v4036
  %v4108 = vpop.f32.mrb[0].mxu0
  %v4109 = vadd.f32 0.0, %v4108
  %v4110 = vpop.f32.mrb[0].mxu0
  %v4111 = vpop.f32.mrb[0].mxu0
  %v4112 = vadd.f32 0.0, %v4111
  %v4113 = vpop.f32.mrb[0].mxu0
  %4114 = vmatprep.mubr.bf16.mxu0 0
  %4115 = vmatmul.mubr.bf16.gmra.mrb[0].mxu0 %v4039
  %v4116 = vpop.f32.mrb[0].mxu0
  %v4117 = vadd.f32 0.0, %v4116
  %v4118 = vpop.f32.mrb[0].mxu0
  %v4119 = vpop.f32.mrb[0].mxu0
  %v4120 = vadd.f32 0.0, %v4119
  %v4121 = vpop.f32.mrb[0].mxu0
  %4122 = vmatprep.mubr.bf16.mxu0 0
  %4123 = vmatmul.mubr.bf16.gmra.mrb[0].mxu0 %v4042
  %v4124 = vpop.f32.mrb[0].mxu0
  %v4125 = vadd.f32 0.0, %v4124
  %v4126 = vpop.f32.mrb[0].mxu0
  %v4127 = vpop.f32.mrb[0].mxu0
  %v4128 = vadd.f32 0.0, %v4127
  %v4129 = vpop.f32.mrb[0].mxu0
  %4130 = vmatprep.mubr.bf16.mxu0 0
  %4131 = vmatmul.mubr.bf16.gmra.mrb[0].mxu0 %v4045
  %v4132 = vpop.f32.mrb[0].mxu0
  %v4133 = vadd.f32 0.0, %v4132
  %v4134 = vpop.f32.mrb[0].mxu0
  %v4135 = vpop.f32.mrb[0].mxu0
  %v4136 = vadd.f32 0.0, %v4135
  %v4137 = vpop.f32.mrb[0].mxu0
  %4138 = vmatprep.mubr.bf16.mxu0 0
  %4139 = vmatmul.mubr.bf16.gmra.mrb[0].mxu0 %v4048
  %v4140 = vpop.f32.mrb[0].mxu0
  %v4141 = vadd.f32 0.0, %v4140
  %v4142 = vpop.f32.mrb[0].mxu0
  %v4143 = vpop.f32.mrb[0].mxu0
  %v4144 = vadd.f32 0.0, %v4143
  %v4145 = vpop.f32.mrb[0].mxu0
  %4146 = vdwg.mxu0
  %v4275 = vunpack.c.l.b16 %v178
  %v4276 = vunpack.c.l.b16 %v191
  %v4277 = vunpack.c.l.b16 %v204
  %v4278 = vunpack.c.l.b16 %v217
  %v4279 = vunpack.c.l.b16 %v230
  %v4280 = vunpack.c.l.b16 %v243
  %v4281 = vunpack.c.l.b16 %v256
  %v4282 = vunpack.c.l.b16 %v269
  %v4283 = vunpack.c.l.b16 %v282
  %v4284 = vunpack.c.l.b16 %v295
  %v4285 = vunpack.c.l.b16 %v308
  %v4286 = vunpack.c.l.b16 %v321
  %v4287 = vunpack.c.l.b16 %v334
  %v4288 = vunpack.c.l.b16 %v347
  %v4289 = vunpack.c.l.b16 %v360
  %v4290 = vunpack.c.l.b16 %v373
  %v4291 = vunpack.c.l.b16 %v386
  %v4292 = vunpack.c.l.b16 %v399
  %v4293 = vunpack.c.l.b16 %v412
  %v4294 = vunpack.c.l.b16 %v425
  %v4295 = vunpack.c.l.b16 %v438
  %v4296 = vunpack.c.l.b16 %v451
  %v4297 = vunpack.c.l.b16 %v464
  %v4298 = vunpack.c.l.b16 %v477
  %v4299 = vunpack.c.l.b16 %v490
  %v4300 = vunpack.c.l.b16 %v503
  %v4301 = vunpack.c.l.b16 %v516
  %v4302 = vunpack.c.l.b16 %v529
  %v4303 = vunpack.c.l.b16 %v542
  %v4304 = vunpack.c.l.b16 %v555
  %v4305 = vunpack.c.l.b16 %v568
  %v4306 = vunpack.c.l.b16 %v581
  %v4307 = vunpack.c.l.b16 %v594
  %v4308 = vunpack.c.l.b16 %v607
  %v4309 = vunpack.c.l.b16 %v620
  %v4310 = vunpack.c.l.b16 %v633
  %v4311 = vunpack.c.l.b16 %v646
  %v4312 = vunpack.c.l.b16 %v659
  %v4313 = vunpack.c.l.b16 %v672
  %v4314 = vunpack.c.l.b16 %v685
  %v4315 = vunpack.c.l.b16 %v698
  %v4316 = vunpack.c.l.b16 %v711
  %v4317 = vunpack.c.l.b16 %v724
  %v4318 = vunpack.c.l.b16 %v737
  %v4319 = vunpack.c.l.b16 %v750
  %v4320 = vunpack.c.l.b16 %v763
  %v4321 = vunpack.c.l.b16 %v776
  %v4322 = vunpack.c.l.b16 %v789
  %v4323 = vunpack.c.l.b16 %v802
  %v4324 = vunpack.c.l.b16 %v815
  %v4325 = vunpack.c.l.b16 %v828
  %v4326 = vunpack.c.l.b16 %v841
  %v4327 = vunpack.c.l.b16 %v854
  %v4328 = vunpack.c.l.b16 %v867
  %v4329 = vunpack.c.l.b16 %v880
  %v4330 = vunpack.c.l.b16 %v893
  %v4331 = vunpack.c.l.b16 %v906
  %v4332 = vunpack.c.l.b16 %v919
  %v4333 = vunpack.c.l.b16 %v932
  %v4334 = vunpack.c.l.b16 %v945
  %v4335 = vunpack.c.l.b16 %v958
  %v4336 = vunpack.c.l.b16 %v971
  %v4337 = vunpack.c.l.b16 %v984
  %v4338 = vunpack.c.l.b16 %v997
  %v4339 = vunpack.c.l.b16 %v1010
  %v4340 = vunpack.c.l.b16 %v1023
  %v4341 = vunpack.c.l.b16 %v1036
  %v4342 = vunpack.c.l.b16 %v1049
  %v4343 = vunpack.c.l.b16 %v1062
  %v4344 = vunpack.c.l.b16 %v1075
  %v4345 = vunpack.c.l.b16 %v1088
  %v4346 = vunpack.c.l.b16 %v1101
  %v4347 = vunpack.c.l.b16 %v1114
  %v4348 = vunpack.c.l.b16 %v1127
  %v4349 = vunpack.c.l.b16 %v1140
  %v4350 = vunpack.c.l.b16 %v1153
  %v4351 = vunpack.c.l.b16 %v1166
  %v4352 = vunpack.c.l.b16 %v1179
  %v4353 = vunpack.c.l.b16 %v1192
  %v4354 = vunpack.c.l.b16 %v1205
  %v4355 = vunpack.c.l.b16 %v1218
  %v4356 = vunpack.c.l.b16 %v1231
  %v4357 = vunpack.c.l.b16 %v1244
  %v4358 = vunpack.c.l.b16 %v1257
  %v4359 = vunpack.c.l.b16 %v1270
  %v4360 = vunpack.c.l.b16 %v1283
  %v4361 = vunpack.c.l.b16 %v1296
  %v4362 = vunpack.c.l.b16 %v1309
  %v4363 = vunpack.c.l.b16 %v1322
  %v4364 = vunpack.c.l.b16 %v1335
  %v4365 = vunpack.c.l.b16 %v1348
  %v4366 = vunpack.c.l.b16 %v1361
  %v4367 = vunpack.c.l.b16 %v1374
  %v4368 = vunpack.c.l.b16 %v1387
  %v4369 = vunpack.c.l.b16 %v1400
  %v4370 = vunpack.c.l.b16 %v1413
  %v4371 = vunpack.c.l.b16 %v1426
  %v4372 = vunpack.c.l.b16 %v1439
  %v4373 = vunpack.c.l.b16 %v1452
  %v4374 = vunpack.c.l.b16 %v1465
  %v4375 = vunpack.c.l.b16 %v1478
  %v4376 = vunpack.c.l.b16 %v1491
  %v4377 = vunpack.c.l.b16 %v1504
  %v4378 = vunpack.c.l.b16 %v1517
  %v4379 = vunpack.c.l.b16 %v1530
  %v4380 = vunpack.c.l.b16 %v1543
  %v4381 = vunpack.c.l.b16 %v1556
  %v4382 = vunpack.c.l.b16 %v1569
  %v4383 = vunpack.c.l.b16 %v1582
  %v4384 = vunpack.c.l.b16 %v1595
  %v4385 = vunpack.c.l.b16 %v1608
  %v4386 = vunpack.c.l.b16 %v1621
  %v4387 = vunpack.c.l.b16 %v1634
  %v4388 = vunpack.c.l.b16 %v1647
  %v4389 = vunpack.c.l.b16 %v1660
  %v4390 = vunpack.c.l.b16 %v1673
  %v4391 = vunpack.c.l.b16 %v1686
  %v4392 = vunpack.c.l.b16 %v1699
  %v4393 = vunpack.c.l.b16 %v1712
  %v4394 = vunpack.c.l.b16 %v1725
  %v4395 = vunpack.c.l.b16 %v1738
  %v4396 = vunpack.c.l.b16 %v1751
  %v4397 = vunpack.c.l.b16 %v1764
  %v4398 = vunpack.c.l.b16 %v1777
  %v4399 = vunpack.c.l.b16 %v1790
  %v4400 = vunpack.c.l.b16 %v1803
  %v4401 = vunpack.c.l.b16 %v1816
  %v4402 = vunpack.c.l.b16 %v1829
  %v4403 = vsel %vm3886, %v4276, %v4275
  %v4404 = vsel %vm3888, %v4277, %v4403
  %v4405 = vsel %vm3890, %v4278, %v4404
  %v4406 = vsel %vm3892, %v4279, %v4405
  %v4407 = vsel %vm3894, %v4280, %v4406
  %v4408 = vsel %vm3896, %v4281, %v4407
  %v4409 = vsel %vm3898, %v4282, %v4408
  %v4410 = vsel %vm3886, %v4284, %v4283
  %v4411 = vsel %vm3888, %v4285, %v4410
  %v4412 = vsel %vm3890, %v4286, %v4411
  %v4413 = vsel %vm3892, %v4287, %v4412
  %v4414 = vsel %vm3894, %v4288, %v4413
  %v4415 = vsel %vm3896, %v4289, %v4414
  %v4416 = vsel %vm3898, %v4290, %v4415
  %v4417 = vsel %vm3886, %v4292, %v4291
  %v4418 = vsel %vm3888, %v4293, %v4417
  %v4419 = vsel %vm3890, %v4294, %v4418
  %v4420 = vsel %vm3892, %v4295, %v4419
  %v4421 = vsel %vm3894, %v4296, %v4420
  %v4422 = vsel %vm3896, %v4297, %v4421
  %v4423 = vsel %vm3898, %v4298, %v4422
  %v4424 = vsel %vm3886, %v4300, %v4299
  %v4425 = vsel %vm3888, %v4301, %v4424
  %v4426 = vsel %vm3890, %v4302, %v4425
  %v4427 = vsel %vm3892, %v4303, %v4426
  %v4428 = vsel %vm3894, %v4304, %v4427
  %v4429 = vsel %vm3896, %v4305, %v4428
  %v4430 = vsel %vm3898, %v4306, %v4429
  %v4431 = vsel %vm3886, %v4308, %v4307
  %v4432 = vsel %vm3888, %v4309, %v4431
  %v4433 = vsel %vm3890, %v4310, %v4432
  %v4434 = vsel %vm3892, %v4311, %v4433
  %v4435 = vsel %vm3894, %v4312, %v4434
  %v4436 = vsel %vm3896, %v4313, %v4435
  %v4437 = vsel %vm3898, %v4314, %v4436
  %v4438 = vsel %vm3886, %v4316, %v4315
  %v4439 = vsel %vm3888, %v4317, %v4438
  %v4440 = vsel %vm3890, %v4318, %v4439
  %v4441 = vsel %vm3892, %v4319, %v4440
  %v4442 = vsel %vm3894, %v4320, %v4441
  %v4443 = vsel %vm3896, %v4321, %v4442
  %v4444 = vsel %vm3898, %v4322, %v4443
  %v4445 = vsel %vm3886, %v4324, %v4323
  %v4446 = vsel %vm3888, %v4325, %v4445
  %v4447 = vsel %vm3890, %v4326, %v4446
  %v4448 = vsel %vm3892, %v4327, %v4447
  %v4449 = vsel %vm3894, %v4328, %v4448
  %v4450 = vsel %vm3896, %v4329, %v4449
  %v4451 = vsel %vm3898, %v4330, %v4450
  %v4452 = vsel %vm3886, %v4332, %v4331
  %v4453 = vsel %vm3888, %v4333, %v4452
  %v4454 = vsel %vm3890, %v4334, %v4453
  %v4455 = vsel %vm3892, %v4335, %v4454
  %v4456 = vsel %vm3894, %v4336, %v4455
  %v4457 = vsel %vm3896, %v4337, %v4456
  %v4458 = vsel %vm3898, %v4338, %v4457
  %v4459 = vsel %vm3886, %v4340, %v4339
  %v4460 = vsel %vm3888, %v4341, %v4459
  %v4461 = vsel %vm3890, %v4342, %v4460
  %v4462 = vsel %vm3892, %v4343, %v4461
  %v4463 = vsel %vm3894, %v4344, %v4462
  %v4464 = vsel %vm3896, %v4345, %v4463
  %v4465 = vsel %vm3898, %v4346, %v4464
  %v4466 = vsel %vm3886, %v4348, %v4347
  %v4467 = vsel %vm3888, %v4349, %v4466
  %v4468 = vsel %vm3890, %v4350, %v4467
  %v4469 = vsel %vm3892, %v4351, %v4468
  %v4470 = vsel %vm3894, %v4352, %v4469
  %v4471 = vsel %vm3896, %v4353, %v4470
  %v4472 = vsel %vm3898, %v4354, %v4471
  %v4473 = vsel %vm3886, %v4356, %v4355
  %v4474 = vsel %vm3888, %v4357, %v4473
  %v4475 = vsel %vm3890, %v4358, %v4474
  %v4476 = vsel %vm3892, %v4359, %v4475
  %v4477 = vsel %vm3894, %v4360, %v4476
  %v4478 = vsel %vm3896, %v4361, %v4477
  %v4479 = vsel %vm3898, %v4362, %v4478
  %v4480 = vsel %vm3886, %v4364, %v4363
  %v4481 = vsel %vm3888, %v4365, %v4480
  %v4482 = vsel %vm3890, %v4366, %v4481
  %v4483 = vsel %vm3892, %v4367, %v4482
  %v4484 = vsel %vm3894, %v4368, %v4483
  %v4485 = vsel %vm3896, %v4369, %v4484
  %v4486 = vsel %vm3898, %v4370, %v4485
  %v4487 = vsel %vm3886, %v4372, %v4371
  %v4488 = vsel %vm3888, %v4373, %v4487
  %v4489 = vsel %vm3890, %v4374, %v4488
  %v4490 = vsel %vm3892, %v4375, %v4489
  %v4491 = vsel %vm3894, %v4376, %v4490
  %v4492 = vsel %vm3896, %v4377, %v4491
  %v4493 = vsel %vm3898, %v4378, %v4492
  %v4494 = vsel %vm3886, %v4380, %v4379
  %v4495 = vsel %vm3888, %v4381, %v4494
  %v4496 = vsel %vm3890, %v4382, %v4495
  %v4497 = vsel %vm3892, %v4383, %v4496
  %v4498 = vsel %vm3894, %v4384, %v4497
  %v4499 = vsel %vm3896, %v4385, %v4498
  %v4500 = vsel %vm3898, %v4386, %v4499
  %v4501 = vsel %vm3886, %v4388, %v4387
  %v4502 = vsel %vm3888, %v4389, %v4501
  %v4503 = vsel %vm3890, %v4390, %v4502
  %v4504 = vsel %vm3892, %v4391, %v4503
  %v4505 = vsel %vm3894, %v4392, %v4504
  %v4506 = vsel %vm3896, %v4393, %v4505
  %v4507 = vsel %vm3898, %v4394, %v4506
  %v4508 = vsel %vm3886, %v4396, %v4395
  %v4509 = vsel %vm3888, %v4397, %v4508
  %v4510 = vsel %vm3890, %v4398, %v4509
  %v4511 = vsel %vm3892, %v4399, %v4510
  %v4512 = vsel %vm3894, %v4400, %v4511
  %v4513 = vsel %vm3896, %v4401, %v4512
  %v4514 = vsel %vm3898, %v4402, %v4513
  %v4515 = vpack.c.b16 %v4416, %v4409
  %v4516 = vpack.c.b16 %v4430, %v4423
  %v4517 = vpack.c.b16 %v4444, %v4437
  %v4518 = vpack.c.b16 %v4458, %v4451
  %v4519 = vpack.c.b16 %v4472, %v4465
  %v4520 = vpack.c.b16 %v4486, %v4479
  %v4521 = vpack.c.b16 %v4500, %v4493
  %v4522 = vpack.c.b16 %v4514, %v4507
  %v4527 = vunpack.c.l.b16 %v3622
  %v4528 = vunpack.c.l.b16 %v3623
  %v4529 = vunpack.c.l.b16 %v3624
  %v4530 = vunpack.c.l.b16 %v3625
  %v4531 = vpack.c.b16 %v4528, %v4527
  %v4532 = vpack.c.b16 %v4530, %v4529
  %v4536 = vsel %vm4025, %v4515, 0
  %v4539 = vsel %vm4025, %v4516, 0
  %v4542 = vsel %vm4025, %v4517, 0
  %v4545 = vsel %vm4025, %v4518, 0
  %v4548 = vsel %vm4025, %v4519, 0
  %v4551 = vsel %vm4025, %v4520, 0
  %v4554 = vsel %vm4025, %v4521, 0
  %v4557 = vsel %vm4025, %v4522, 0
  %4559 = vmatprep.subr.bf16.mxu0 0
  %4560 = vmatpush1.bf16.msra.mxu0 %v4531
  %4561 = vmatprep.subr.bf16.mxu0 0
  %4562 = vmatpush1.bf16.msra.mxu0 %v4532
  %4563 = vmatprep.subr.bf16.mxu0 0
  %4564 = vmatpush1.bf16.msra.mxu0 0
  %4565 = vmatprep.subr.bf16.mxu0 0
  %4566 = vmatpush1.bf16.msra.mxu0 0
  %4567 = vmatprep.subr.bf16.mxu0 0
  %4568 = vmatpush1.bf16.msra.mxu0 0
  %4569 = vmatprep.subr.bf16.mxu0 0
  %4570 = vmatpush1.bf16.msra.mxu0 0
  %4571 = vmatprep.subr.bf16.mxu0 0
  %4572 = vmatpush1.bf16.msra.mxu0 0
  %4573 = vmatprep.subr.bf16.mxu0 0
  %4574 = vmatpush1.bf16.msra.mxu0 0
  %4575 = vmatprep.subr.bf16.mxu0 0
  %4576 = vmatpush1.bf16.msra.mxu0 0
  %4577 = vmatprep.subr.bf16.mxu0 0
  %4578 = vmatpush1.bf16.msra.mxu0 0
  %4579 = vmatprep.subr.bf16.mxu0 0
  %4580 = vmatpush1.bf16.msra.mxu0 0
  %4581 = vmatprep.subr.bf16.mxu0 0
  %4582 = vmatpush1.bf16.msra.mxu0 0
  %4583 = vmatprep.subr.bf16.mxu0 0
  %4584 = vmatpush1.bf16.msra.mxu0 0
  %4585 = vmatprep.subr.bf16.mxu0 0
  %4586 = vmatpush1.bf16.msra.mxu0 0
  %4587 = vmatprep.subr.bf16.mxu0 0
  %4588 = vmatpush1.bf16.msra.mxu0 0
  %4589 = vmatprep.subr.bf16.mxu0 0
  %4590 = vmatpush1.bf16.msra.mxu0 0
  %4591 = vmatprep.mubr.bf16.mxu0 0
  %4592 = vmatmul.mubr.bf16.gmra.mrb[0].mxu0 %v4536
  %v4593 = vpop.f32.mrb[0].mxu0
  %v4594 = vadd.f32 %v4085, %v4593
  %v4595 = vpop.f32.mrb[0].mxu0
  %v4596 = vpop.f32.mrb[0].mxu0
  %v4597 = vadd.f32 %v4088, %v4596
  %v4598 = vpop.f32.mrb[0].mxu0
  %4599 = vmatprep.mubr.bf16.mxu0 0
  %4600 = vmatmul.mubr.bf16.gmra.mrb[0].mxu0 %v4539
  %v4601 = vpop.f32.mrb[0].mxu0
  %v4602 = vadd.f32 %v4093, %v4601
  %v4603 = vpop.f32.mrb[0].mxu0
  %v4604 = vpop.f32.mrb[0].mxu0
  %v4605 = vadd.f32 %v4096, %v4604
  %v4606 = vpop.f32.mrb[0].mxu0
  %4607 = vmatprep.mubr.bf16.mxu0 0
  %4608 = vmatmul.mubr.bf16.gmra.mrb[0].mxu0 %v4542
  %v4609 = vpop.f32.mrb[0].mxu0
  %v4610 = vadd.f32 %v4101, %v4609
  %v4611 = vpop.f32.mrb[0].mxu0
  %v4612 = vpop.f32.mrb[0].mxu0
  %v4613 = vadd.f32 %v4104, %v4612
  %v4614 = vpop.f32.mrb[0].mxu0
  %4615 = vmatprep.mubr.bf16.mxu0 0
  %4616 = vmatmul.mubr.bf16.gmra.mrb[0].mxu0 %v4545
  %v4617 = vpop.f32.mrb[0].mxu0
  %v4618 = vadd.f32 %v4109, %v4617
  %v4619 = vpop.f32.mrb[0].mxu0
  %v4620 = vpop.f32.mrb[0].mxu0
  %v4621 = vadd.f32 %v4112, %v4620
  %v4622 = vpop.f32.mrb[0].mxu0
  %4623 = vmatprep.mubr.bf16.mxu0 0
  %4624 = vmatmul.mubr.bf16.gmra.mrb[0].mxu0 %v4548
  %v4625 = vpop.f32.mrb[0].mxu0
  %v4626 = vadd.f32 %v4117, %v4625
  %v4627 = vpop.f32.mrb[0].mxu0
  %v4628 = vpop.f32.mrb[0].mxu0
  %v4629 = vadd.f32 %v4120, %v4628
  %v4630 = vpop.f32.mrb[0].mxu0
  %4631 = vmatprep.mubr.bf16.mxu0 0
  %4632 = vmatmul.mubr.bf16.gmra.mrb[0].mxu0 %v4551
  %v4633 = vpop.f32.mrb[0].mxu0
  %v4634 = vadd.f32 %v4125, %v4633
  %v4635 = vpop.f32.mrb[0].mxu0
  %v4636 = vpop.f32.mrb[0].mxu0
  %v4637 = vadd.f32 %v4128, %v4636
  %v4638 = vpop.f32.mrb[0].mxu0
  %4639 = vmatprep.mubr.bf16.mxu0 0
  %4640 = vmatmul.mubr.bf16.gmra.mrb[0].mxu0 %v4554
  %v4641 = vpop.f32.mrb[0].mxu0
  %v4642 = vadd.f32 %v4133, %v4641
  %v4643 = vpop.f32.mrb[0].mxu0
  %v4644 = vpop.f32.mrb[0].mxu0
  %v4645 = vadd.f32 %v4136, %v4644
  %v4646 = vpop.f32.mrb[0].mxu0
  %4647 = vmatprep.mubr.bf16.mxu0 0
  %4648 = vmatmul.mubr.bf16.gmra.mrb[0].mxu0 %v4557
  %v4649 = vpop.f32.mrb[0].mxu0
  %v4650 = vadd.f32 %v4141, %v4649
  %v4651 = vpop.f32.mrb[0].mxu0
  %v4652 = vpop.f32.mrb[0].mxu0
  %v4653 = vadd.f32 %v4144, %v4652
  %v4654 = vpop.f32.mrb[0].mxu0
  %4655 = vdwg.mxu0
  %v4656 = vld [vmem:[%s4] sm:$0x1]
  %v4658 = vlaneseq
  %v4659 = vshrl.u32 %v4658, 7
  %v4660 = vsub.s32 0, %v4659
  %v4661 = vrot.slane %v4656, %v4660
  %v4663 = vadd.f32 %v4594, %v4661
  %v4664 = vadd.f32 %v4597, %v4661
  %v4665 = vadd.f32 %v4602, %v4661
  %v4666 = vadd.f32 %v4605, %v4661
  %v4667 = vadd.f32 %v4610, %v4661
  %v4668 = vadd.f32 %v4613, %v4661
  %v4669 = vadd.f32 %v4618, %v4661
  %v4670 = vadd.f32 %v4621, %v4661
  %v4671 = vadd.f32 %v4626, %v4661
  %v4672 = vadd.f32 %v4629, %v4661
  %v4673 = vadd.f32 %v4634, %v4661
  %v4674 = vadd.f32 %v4637, %v4661
  %v4675 = vadd.f32 %v4642, %v4661
  %v4676 = vadd.f32 %v4645, %v4661
  %v4677 = vadd.f32 %v4650, %v4661
  %v4678 = vadd.f32 %v4653, %v4661
  %v4679 = vmax.f32 %v4663, 0.0
  %v4680 = vmax.f32 %v4664, 0.0
  %v4681 = vmax.f32 %v4665, 0.0
  %v4682 = vmax.f32 %v4666, 0.0
  %v4683 = vmax.f32 %v4667, 0.0
  %v4684 = vmax.f32 %v4668, 0.0
  %v4685 = vmax.f32 %v4669, 0.0
  %v4686 = vmax.f32 %v4670, 0.0
  %v4687 = vmax.f32 %v4671, 0.0
  %v4688 = vmax.f32 %v4672, 0.0
  %v4689 = vmax.f32 %v4673, 0.0
  %v4690 = vmax.f32 %v4674, 0.0
  %v4691 = vmax.f32 %v4675, 0.0
  %v4692 = vmax.f32 %v4676, 0.0
  %v4693 = vmax.f32 %v4677, 0.0
  %v4694 = vmax.f32 %v4678, 0.0
  %v4695 = vld [vmem:[%s5] sm:$0xf]
  %v4696 = vld [vmem:[%s5 + $0x4] sm:$0xf]
  %v4697 = vld [vmem:[%s5 + $0x8] sm:$0xf]
  %v4698 = vld [vmem:[%s5 + $0xc] sm:$0xf]
  %v4699 = vld [vmem:[%s5 + $0x10] sm:$0xf]
  %v4700 = vld [vmem:[%s5 + $0x14] sm:$0xf]
  %v4701 = vld [vmem:[%s5 + $0x18] sm:$0xf]
  %v4702 = vld [vmem:[%s5 + $0x1c] sm:$0xf]
  %v4703 = vld [vmem:[%s5 + $0x20] sm:$0xf]
  %v4704 = vld [vmem:[%s5 + $0x24] sm:$0xf]
  %v4705 = vld [vmem:[%s5 + $0x28] sm:$0xf]
  %v4706 = vld [vmem:[%s5 + $0x2c] sm:$0xf]
  %v4707 = vld [vmem:[%s5 + $0x30] sm:$0xf]
  %v4708 = vld [vmem:[%s5 + $0x34] sm:$0xf]
  %v4709 = vld [vmem:[%s5 + $0x38] sm:$0xf]
  %v4710 = vld [vmem:[%s5 + $0x3c] sm:$0xf]
  %v4711 = vld [vmem:[%s6] sm:$0x1]
  %v4712 = vpack.c.bf16 %v4680, %v4679
  %v4713 = vpack.c.bf16 %v4682, %v4681
  %v4714 = vpack.c.bf16 %v4684, %v4683
  %v4715 = vpack.c.bf16 %v4686, %v4685
  %v4716 = vpack.c.bf16 %v4688, %v4687
  %v4717 = vpack.c.bf16 %v4690, %v4689
  %v4718 = vpack.c.bf16 %v4692, %v4691
  %v4719 = vpack.c.bf16 %v4694, %v4693
  %v4721 = vlaneseq
  %v4722 = vshrl.u32 %v4721, 7
  %v4723 = vsub.s32 0, %v4722
  %v4724 = vrot.slane %v4711, %v4723
  %v4742 = vunpack.c.l.b16 %v4695
  %v4743 = vunpack.c.l.b16 %v4696
  %v4744 = vunpack.c.l.b16 %v4697
  %v4745 = vunpack.c.l.b16 %v4698
  %v4746 = vunpack.c.l.b16 %v4699
  %v4747 = vunpack.c.l.b16 %v4700
  %v4748 = vunpack.c.l.b16 %v4701
  %v4749 = vunpack.c.l.b16 %v4702
  %v4750 = vunpack.c.l.b16 %v4703
  %v4751 = vunpack.c.l.b16 %v4704
  %v4752 = vunpack.c.l.b16 %v4705
  %v4753 = vunpack.c.l.b16 %v4706
  %v4754 = vunpack.c.l.b16 %v4707
  %v4755 = vunpack.c.l.b16 %v4708
  %v4756 = vunpack.c.l.b16 %v4709
  %v4757 = vunpack.c.l.b16 %v4710
  %v4758 = vpack.c.b16 %v4743, %v4742
  %v4759 = vpack.c.b16 %v4745, %v4744
  %v4760 = vpack.c.b16 %v4747, %v4746
  %v4761 = vpack.c.b16 %v4749, %v4748
  %v4762 = vpack.c.b16 %v4751, %v4750
  %v4763 = vpack.c.b16 %v4753, %v4752
  %v4764 = vpack.c.b16 %v4755, %v4754
  %v4765 = vpack.c.b16 %v4757, %v4756
  %4774 = vmatprep.subr.bf16.mxu0 0
  %4775 = vmatpush1.bf16.msra.mxu0 %v4758
  %4776 = vmatprep.subr.bf16.mxu0 0
  %4777 = vmatpush1.bf16.msra.mxu0 %v4759
  %4778 = vmatprep.subr.bf16.mxu0 0
  %4779 = vmatpush1.bf16.msra.mxu0 %v4760
  %4780 = vmatprep.subr.bf16.mxu0 0
  %4781 = vmatpush1.bf16.msra.mxu0 %v4761
  %4782 = vmatprep.subr.bf16.mxu0 0
  %4783 = vmatpush1.bf16.msra.mxu0 %v4762
  %4784 = vmatprep.subr.bf16.mxu0 0
  %4785 = vmatpush1.bf16.msra.mxu0 %v4763
  %4786 = vmatprep.subr.bf16.mxu0 0
  %4787 = vmatpush1.bf16.msra.mxu0 %v4764
  %4788 = vmatprep.subr.bf16.mxu0 0
  %4789 = vmatpush1.bf16.msra.mxu0 %v4765
  %4790 = vmatprep.subr.bf16.mxu0 0
  %4791 = vmatpush1.bf16.msra.mxu0 0
  %4792 = vmatprep.subr.bf16.mxu0 0
  %4793 = vmatpush1.bf16.msra.mxu0 0
  %4794 = vmatprep.subr.bf16.mxu0 0
  %4795 = vmatpush1.bf16.msra.mxu0 0
  %4796 = vmatprep.subr.bf16.mxu0 0
  %4797 = vmatpush1.bf16.msra.mxu0 0
  %4798 = vmatprep.subr.bf16.mxu0 0
  %4799 = vmatpush1.bf16.msra.mxu0 0
  %4800 = vmatprep.subr.bf16.mxu0 0
  %4801 = vmatpush1.bf16.msra.mxu0 0
  %4802 = vmatprep.subr.bf16.mxu0 0
  %4803 = vmatpush1.bf16.msra.mxu0 0
  %4804 = vmatprep.subr.bf16.mxu0 0
  %4805 = vmatpush1.bf16.msra.mxu0 0
  %4806 = vmatprep.mubr.bf16.mxu0 0
  %4807 = vmatmul.mubr.bf16.gmra.mrb[0].mxu0 %v4712
  %v4808 = vpop.f32.mrb[0].mxu0
  %v4809 = vadd.f32 %v4724, %v4808
  %v4810 = vpop.f32.mrb[0].mxu0
  %v4811 = vpop.f32.mrb[0].mxu0
  %v4812 = vadd.f32 %v4724, %v4811
  %v4813 = vpop.f32.mrb[0].mxu0
  %4814 = vmatprep.mubr.bf16.mxu0 0
  %4815 = vmatmul.mubr.bf16.gmra.mrb[0].mxu0 %v4713
  %v4816 = vpop.f32.mrb[0].mxu0
  %v4817 = vadd.f32 %v4724, %v4816
  %v4818 = vpop.f32.mrb[0].mxu0
  %v4819 = vpop.f32.mrb[0].mxu0
  %v4820 = vadd.f32 %v4724, %v4819
  %v4821 = vpop.f32.mrb[0].mxu0
  %4822 = vmatprep.mubr.bf16.mxu0 0
  %4823 = vmatmul.mubr.bf16.gmra.mrb[0].mxu0 %v4714
  %v4824 = vpop.f32.mrb[0].mxu0
  %v4825 = vadd.f32 %v4724, %v4824
  %v4826 = vpop.f32.mrb[0].mxu0
  %v4827 = vpop.f32.mrb[0].mxu0
  %v4828 = vadd.f32 %v4724, %v4827
  %v4829 = vpop.f32.mrb[0].mxu0
  %4830 = vmatprep.mubr.bf16.mxu0 0
  %4831 = vmatmul.mubr.bf16.gmra.mrb[0].mxu0 %v4715
  %v4832 = vpop.f32.mrb[0].mxu0
  %v4833 = vadd.f32 %v4724, %v4832
  %v4834 = vpop.f32.mrb[0].mxu0
  %v4835 = vpop.f32.mrb[0].mxu0
  %v4836 = vadd.f32 %v4724, %v4835
  %v4837 = vpop.f32.mrb[0].mxu0
  %4838 = vmatprep.mubr.bf16.mxu0 0
  %4839 = vmatmul.mubr.bf16.gmra.mrb[0].mxu0 %v4716
  %v4840 = vpop.f32.mrb[0].mxu0
  %v4841 = vadd.f32 %v4724, %v4840
  %v4842 = vpop.f32.mrb[0].mxu0
  %v4843 = vpop.f32.mrb[0].mxu0
  %v4844 = vadd.f32 %v4724, %v4843
  %v4845 = vpop.f32.mrb[0].mxu0
  %4846 = vmatprep.mubr.bf16.mxu0 0
  %4847 = vmatmul.mubr.bf16.gmra.mrb[0].mxu0 %v4717
  %v4848 = vpop.f32.mrb[0].mxu0
  %v4849 = vadd.f32 %v4724, %v4848
  %v4850 = vpop.f32.mrb[0].mxu0
  %v4851 = vpop.f32.mrb[0].mxu0
  %v4852 = vadd.f32 %v4724, %v4851
  %v4853 = vpop.f32.mrb[0].mxu0
  %4854 = vmatprep.mubr.bf16.mxu0 0
  %4855 = vmatmul.mubr.bf16.gmra.mrb[0].mxu0 %v4718
  %v4856 = vpop.f32.mrb[0].mxu0
  %v4857 = vadd.f32 %v4724, %v4856
  %v4858 = vpop.f32.mrb[0].mxu0
  %v4859 = vpop.f32.mrb[0].mxu0
  %v4860 = vadd.f32 %v4724, %v4859
  %v4861 = vpop.f32.mrb[0].mxu0
  %4862 = vmatprep.mubr.bf16.mxu0 0
  %4863 = vmatmul.mubr.bf16.gmra.mrb[0].mxu0 %v4719
  %v4864 = vpop.f32.mrb[0].mxu0
  %v4865 = vadd.f32 %v4724, %v4864
  %v4866 = vpop.f32.mrb[0].mxu0
  %v4867 = vpop.f32.mrb[0].mxu0
  %v4868 = vadd.f32 %v4724, %v4867
  %v4869 = vpop.f32.mrb[0].mxu0
  %4870 = vdwg.mxu0
  %v4871 = vmax.f32 %v4809, 0.0
  %v4872 = vmax.f32 %v4812, 0.0
  %v4873 = vmax.f32 %v4817, 0.0
  %v4874 = vmax.f32 %v4820, 0.0
  %v4875 = vmax.f32 %v4825, 0.0
  %v4876 = vmax.f32 %v4828, 0.0
  %v4877 = vmax.f32 %v4833, 0.0
  %v4878 = vmax.f32 %v4836, 0.0
  %v4879 = vmax.f32 %v4841, 0.0
  %v4880 = vmax.f32 %v4844, 0.0
  %v4881 = vmax.f32 %v4849, 0.0
  %v4882 = vmax.f32 %v4852, 0.0
  %v4883 = vmax.f32 %v4857, 0.0
  %v4884 = vmax.f32 %v4860, 0.0
  %v4885 = vmax.f32 %v4865, 0.0
  %v4886 = vmax.f32 %v4868, 0.0
  %v4887 = vld [vmem:[%s7] sm:$0x1]
  %v4888 = vpack.c.bf16 %v4872, %v4871
  %v4889 = vpack.c.bf16 %v4874, %v4873
  %v4890 = vpack.c.bf16 %v4876, %v4875
  %v4891 = vpack.c.bf16 %v4878, %v4877
  %v4892 = vpack.c.bf16 %v4880, %v4879
  %v4893 = vpack.c.bf16 %v4882, %v4881
  %v4894 = vpack.c.bf16 %v4884, %v4883
  %v4895 = vpack.c.bf16 %v4886, %v4885
  %v4896 = vld [vmem:[#allocation2] sm:$0x1]
  %4898 = vset.pattern.permute.xlu0 0
  %4899 = vperm.xlu0 %4898, %v4896
  %v4900 = vpop.permute.xlu0 %4899
  %v4902 = vlaneseq
  %v4903 = vshrl.u32 %v4902, 7
  %v4904 = vsub.s32 0, %v4903
  %v4905 = vrot.slane %v4900, %v4904
  %4906 = vmatprep.subr.bf16.mxu0 0
  %4907 = vmatpush1.bf16.xpose.msra.mxu0 %v4888
  %4908 = vmatprep.subr.bf16.mxu0 0
  %4909 = vmatpush1.bf16.xpose.msra.mxu0 %v4889
  %4910 = vmatprep.subr.bf16.mxu0 0
  %4911 = vmatpush1.bf16.xpose.msra.mxu0 %v4890
  %4912 = vmatprep.subr.bf16.mxu0 0
  %4913 = vmatpush1.bf16.xpose.msra.mxu0 %v4891
  %4914 = vmatprep.subr.bf16.mxu0 0
  %4915 = vmatpush1.bf16.xpose.msra.mxu0 %v4892
  %4916 = vmatprep.subr.bf16.mxu0 0
  %4917 = vmatpush1.bf16.xpose.msra.mxu0 %v4893
  %4918 = vmatprep.subr.bf16.mxu0 0
  %4919 = vmatpush1.bf16.xpose.msra.mxu0 %v4894
  %4920 = vmatprep.subr.bf16.mxu0 0
  %4921 = vmatpush1.bf16.xpose.msra.mxu0 %v4895
  %4922 = vmatprep.subr.bf16.mxu0 0
  %4923 = vmatpush1.bf16.xpose.msra.mxu0 0
  %4924 = vmatprep.subr.bf16.mxu0 0
  %4925 = vmatpush1.bf16.xpose.msra.mxu0 0
  %4926 = vmatprep.subr.bf16.mxu0 0
  %4927 = vmatpush1.bf16.xpose.msra.mxu0 0
  %4928 = vmatprep.subr.bf16.mxu0 0
  %4929 = vmatpush1.bf16.xpose.msra.mxu0 0
  %4930 = vmatprep.subr.bf16.mxu0 0
  %4931 = vmatpush1.bf16.xpose.msra.mxu0 0
  %4932 = vmatprep.subr.bf16.mxu0 0
  %4933 = vmatpush1.bf16.xpose.msra.mxu0 0
  %4934 = vmatprep.subr.bf16.mxu0 0
  %4935 = vmatpush1.bf16.xpose.msra.mxu0 0
  %4936 = vmatprep.subr.bf16.mxu0 0
  %4937 = vmatpush1.bf16.xpose.msra.mxu0 0
  %4938 = vmatprep.mubr.bf16.mxu0 0
  %4939 = vmatmul.mubr.bf16.gmra.mrb[0].mxu0 %v4887
  %v4940 = vpop.f32.mrb[0].mxu0
  %v4941 = vadd.f32 %v4905, %v4940
  %v4942 = vpop.f32.mrb[0].mxu0
  %v4943 = vpop.f32.mrb[0].mxu0
  %v4944 = vpop.f32.mrb[0].mxu0
  %4945 = vdwg.mxu0
  %v4946 = vsub.f32 0.0, %v4941
  %v4947 = vmul.f32 %v4946, 1.442695
  %v4948 = vpow.pop %v4947
  %v4949 = vadd.f32 %v4948, 1.0
  %v4950 = vrcp.pop %v4949
  %4951 = vst [vmem:[%s9] sm:$0x1] %v4950
  // Predicated region
  $region38: #{deep_network_forward.1} parent=0 // pred_check
    _
  $region39: #{deep_network_forward.1} parent=0 // pred_check_branch
    %4953 = sbr.rel (0) target = $region41
  $region40: #{deep_network_forward.1} parent=0 // pred_region
    _
  $region41: #{deep_network_forward.1} parent=0 // pred_fallthru
    _
  // Predicated region
  $region42: #{deep_network_forward.1} parent=0 // pred_check
    _
  $region43: #{deep_network_forward.1} parent=0 // pred_check_branch
    %4955 = sbr.rel (0) target = $region45
  $region44: #{deep_network_forward.1} parent=0 // pred_region
    _
  $region45: #{deep_network_forward.1} parent=0 // pred_fallthru
    _

</llo_original>
